<compile_context>
chip_gen: v7x
topology: tpu7x:2x2x1
jax: 0.10.0
libtpu: 0.0.40
codegen_flags: <defaults>
</compile_context>

<pallas_src>
import functools

import jax
import jax.numpy as jnp
import numpy as np
from jax.experimental import pallas as pl
from jax.experimental.pallas import tpu as pltpu


def _fused_kernel(x_ref, w_ref, s_ref, b_ref, o_ref):
    # x_ref: (Cin, HWc) f32          w_ref: (Cout_blk, Cin) f32
    # s_ref: (HWc, HWo) bf16 0/1     b_ref: (Cout_blk, 1) f32
    # o_ref: (Cout_blk, HWo) f32  -- lane-dense flattened (H_out*W_out) output
    core = jnp.dot(w_ref[...], x_ref[...],
                   preferred_element_type=jnp.float32)            # (Cout_blk, HWc)
    # Row+column stride-2 scatter as a single lane-dense 0/1 matmul. Each output
    # column of S has at most one '1', so the bf16 spread is exact up to rounding
    # `core` to bf16 (rel err ~2^-9, far inside the 2e-2 tolerance).
    spread = jnp.dot(core.astype(jnp.bfloat16), s_ref[...],
                     preferred_element_type=jnp.float32)          # (Cout_blk, HWo)
    # Untouched positions: |0 + b| = |b|; touched ones: |core + b|.
    o_ref[...] = jnp.abs(spread + b_ref[...])


@functools.lru_cache(maxsize=None)
def _scatter_matrix_np(H_core, W_core, H_out, W_out):
    """0/1 scatter: core pixel (i, j) -> flat output index (2i+1)*W_out + (2j+1)."""
    s = np.zeros((H_core * W_core, H_out * W_out), dtype=np.float32)
    ii = np.repeat(np.arange(H_core), W_core)
    jj = np.tile(np.arange(W_core), H_core)
    src = ii * W_core + jj
    dst = (2 * ii + 1) * W_out + (2 * jj + 1)
    s[src, dst] = 1.0
    return s


def _n_cout_blocks(Cout):
    """Split Cout across the two TensorCores on v7x only (per perf review)."""
    try:
        kind = jax.devices()[0].device_kind.lower()
    except Exception:
        return 1
    if ("v7" in kind or "7x" in kind) and Cout % 16 == 0:
        return 2
    return 1


def convt1x1_abs_fused(x_mat, w_t, s_big, b_col, n_cout_blocks):
    Cin, HWc = x_mat.shape
    Cout = w_t.shape[0]
    HWo = s_big.shape[1]
    nb = n_cout_blocks
    assert Cout % nb == 0
    cb = Cout // nb

    flops = 2 * Cout * Cin * HWc + 2 * Cout * HWc * HWo
    bytes_accessed = (4 * (x_mat.size + w_t.size + b_col.size + Cout * HWo)
                      + 2 * s_big.size)

    return pl.pallas_call(
        _fused_kernel,
        out_shape=jax.ShapeDtypeStruct((Cout, HWo), jnp.float32),
        grid=(nb,),
        in_specs=[
            pl.BlockSpec((Cin, HWc), lambda i: (0, 0)),   # x replicated
            pl.BlockSpec((cb, Cin), lambda i: (i, 0)),    # weights split over Cout
            pl.BlockSpec((HWc, HWo), lambda i: (0, 0)),   # scatter matrix replicated
            pl.BlockSpec((cb, 1), lambda i: (i, 0)),      # bias split over Cout
        ],
        out_specs=pl.BlockSpec((cb, HWo), lambda i: (i, 0)),
        compiler_params=pltpu.CompilerParams(
            dimension_semantics=("parallel",)),
        cost_estimate=pl.CostEstimate(flops=flops, transcendentals=0,
                                      bytes_accessed=bytes_accessed),
    )(x_mat, w_t, s_big, b_col)


def model_forward(x, weight, bias):
    """Fused ConvTranspose2d(k=1, stride=2, padding=1, out_pad=0) + abs.

    x: (1, Cin, H, W) f32 NCHW; weight: (Cin, Cout, 1, 1) (PyTorch ConvTranspose2d
    layout); bias: (Cout,).
    """
    N, Cin, H, W = x.shape
    assert N == 1
    Cin_w, Cout, kH, kW = weight.shape
    # Index math below is hard-wired to kernel=1, stride=2, padding=1, out_pad=0.
    assert Cin_w == Cin and (kH, kW) == (1, 1)
    stride, padding = 2, 1

    H_out = (H - 1) * stride - 2 * padding + kH      # 39
    W_out = (W - 1) * stride - 2 * padding + kW      # 41
    assert H_out > 0 and W_out > 0 and H_out % 2 == 1 and W_out % 2 == 1
    H_core = H_out // 2                              # 19
    W_core = W_out // 2                              # 20

    # Channel-major throughout: crop to the valid pixels, flatten spatial dims.
    x_mat = x[0, :, 1:1 + H_core, 1:1 + W_core].reshape(Cin, H_core * W_core)
    w_t = weight[:, :, 0, 0].T                       # (Cout, Cin)
    b_col = bias.reshape(Cout, 1)
    # Compile-time 0/1 scatter constant (bf16: values exact, half the HBM read).
    s_big = jnp.asarray(_scatter_matrix_np(H_core, W_core, H_out, W_out),
                        dtype=jnp.bfloat16)

    nb = _n_cout_blocks(Cout)
    out_flat = convt1x1_abs_fused(x_mat, w_t, s_big, b_col, nb)
    # Contiguous reshape to NCHW; free.
    return out_flat.reshape(1, Cout, H_out, W_out)


if __name__ == "__main__":
    key = jax.random.PRNGKey(0)
    kx, kw, kb = jax.random.split(key, 3)

    # Shapes implied by the module: x (1, 64, 21, 22), ConvTranspose2d(64, 128, 1).
    x = jax.random.normal(kx, (1, 64, 21, 22), dtype=jnp.float32)
    bound = 1.0 / (64 ** 0.5)  # PyTorch default init bound: 1/sqrt(Cin*kH*kW)
    weight = jax.random.uniform(kw, (64, 128, 1, 1), jnp.float32, -bound, bound)
    bias = jax.random.uniform(kb, (128,), jnp.float32, -bound, bound)

    fwd = jax.jit(model_forward)
    out = jax.block_until_ready(fwd(x, weight, bias))

    assert out.shape == (1, 128, 39, 41), out.shape
    assert bool(jnp.all(out >= 0.0))

    # float64 numpy reference of ConvTranspose2d(k=1, s=2, p=1) + |.|
    xn = np.asarray(x, dtype=np.float64)[0]                  # (64, 21, 22)
    wn = np.asarray(weight, dtype=np.float64)[:, :, 0, 0]    # (64, 128)
    bn = np.asarray(bias, dtype=np.float64)                  # (128,)
    y = np.einsum("khw,kc->chw", xn, wn) + bn[:, None, None]
    ref = np.broadcast_to(bn[:, None, None], (128, 39, 41)).copy()
    ref[:, 1:39:2, 1:41:2] = y[:, 1:20, 1:21]
    ref = np.abs(ref)
    err = float(np.max(np.abs(np.asarray(out[0], dtype=np.float64) - ref)))
    assert err < 2e-2, f"max abs err vs reference: {err}"

    print("KERNEL_OK")
</pallas_src>

<mosaic_0001>
module attributes {stable_mosaic.version = 11 : i64} {
  func.func @_fused_kernel(%arg0: i32, %arg1: memref<64x380xf32, #tpu.memory_space<vmem>>, %arg2: memref<128x64xf32, #tpu.memory_space<vmem>>, %arg3: memref<380x1599xbf16, #tpu.memory_space<vmem>>, %arg4: memref<128x1xf32, #tpu.memory_space<vmem>>, %arg5: memref<128x1599xf32, #tpu.memory_space<vmem>>) attributes {dimension_semantics = [#tpu.dimension_semantics<parallel>], iteration_bounds = array<i64: 1>, scalar_prefetch = 0 : i64, scratch_operands = 0 : i64, tpu.core_type = #tpu.core_type<tc>, window_params = [{pipeline_mode = #tpu.pipeline_mode<synchronous>, transform_indices = @transform_0, window_bounds = array<i64: 64, 380>}, {transform_indices = @transform_1, window_bounds = array<i64: 128, 64>}, {pipeline_mode = #tpu.pipeline_mode<synchronous>, transform_indices = @transform_2, window_bounds = array<i64: 380, 1599>}, {transform_indices = @transform_3, window_bounds = array<i64: 128, 1>}, {transform_indices = @transform_4, window_bounds = array<i64: 128, 1599>}]} {
    %c0 = arith.constant 0 : index
    %c0_0 = arith.constant 0 : index
    %0 = vector.load %arg2[%c0, %c0_0] : memref<128x64xf32, #tpu.memory_space<vmem>>, vector<128x64xf32>
    %c0_1 = arith.constant 0 : index
    %c0_2 = arith.constant 0 : index
    %1 = vector.load %arg1[%c0_1, %c0_2] : memref<64x380xf32, #tpu.memory_space<vmem>>, vector<64x380xf32>
    %cst = arith.constant dense<0.000000e+00> : vector<128x380xf32>
    %2 = tpu.matmul %0, %1, %cst {dimension_numbers = #tpu.dot_dimension_numbers<[1], [0], [0], [1], [0, 0, 1, 1], [], []>} : vector<128x64xf32>, vector<64x380xf32>, vector<128x380xf32> -> vector<128x380xf32>
    %3 = arith.truncf %2 : vector<128x380xf32> to vector<128x380xbf16>
    %c0_3 = arith.constant 0 : index
    %c0_4 = arith.constant 0 : index
    %4 = vector.load %arg3[%c0_3, %c0_4] : memref<380x1599xbf16, #tpu.memory_space<vmem>>, vector<380x1599xbf16>
    %cst_5 = arith.constant dense<0.000000e+00> : vector<128x1599xf32>
    %5 = tpu.matmul %3, %4, %cst_5 {dimension_numbers = #tpu.dot_dimension_numbers<[1], [0], [0], [1], [0, 0, 1, 1], [], []>} : vector<128x380xbf16>, vector<380x1599xbf16>, vector<128x1599xf32> -> vector<128x1599xf32>
    %c0_6 = arith.constant 0 : index
    %c0_7 = arith.constant 0 : index
    %6 = vector.load %arg4[%c0_6, %c0_7] : memref<128x1xf32, #tpu.memory_space<vmem>>, vector<128x1xf32>
    %7 = vector.broadcast %6 : vector<128x1xf32> to vector<128x1599xf32>
    %8 = arith.addf %5, %7 : vector<128x1599xf32>
    %9 = math.absf %8 : vector<128x1599xf32>
    %c0_8 = arith.constant 0 : index
    %c0_9 = arith.constant 0 : index
    %10 = vector.load %arg5[%c0_8, %c0_9] : memref<128x1599xf32, #tpu.memory_space<vmem>>, vector<128x1599xf32>
    tpu.vector_store %arg5[%c0_8, %c0_9], %9 {strides = array<i32>} : memref<128x1599xf32, #tpu.memory_space<vmem>>, vector<128x1599xf32>,
    return
  }
  func.func @transform_0(%arg0: i32) -> (i32, i32) {
    %c0_i32 = arith.constant 0 : i32
    %c0_i32_0 = arith.constant 0 : i32
    %c0_i32_1 = arith.constant 0 : i32
    return %c0_i32, %c0_i32_0 : i32, i32
  }
  func.func @transform_1(%arg0: i32) -> (i32, i32) {
    %c0_i32 = arith.constant 0 : i32
    %c0_i32_0 = arith.constant 0 : i32
    return %arg0, %c0_i32 : i32, i32
  }
  func.func @transform_2(%arg0: i32) -> (i32, i32) {
    %c0_i32 = arith.constant 0 : i32
    %c0_i32_0 = arith.constant 0 : i32
    %c0_i32_1 = arith.constant 0 : i32
    return %c0_i32, %c0_i32_0 : i32, i32
  }
  func.func @transform_3(%arg0: i32) -> (i32, i32) {
    %c0_i32 = arith.constant 0 : i32
    %c0_i32_0 = arith.constant 0 : i32
    return %arg0, %c0_i32 : i32, i32
  }
  func.func @transform_4(%arg0: i32) -> (i32, i32) {
    %c0_i32 = arith.constant 0 : i32
    %c0_i32_0 = arith.constant 0 : i32
    return %arg0, %c0_i32 : i32, i32
  }
}

</mosaic_0001>

<llo_original>
// kernel: squeeze.2
$region0: #{squeeze.2}
  %s0 = inlined_call_operand.vmem [shape: f32[64,19,20], index: 0, kind: input, shape index: {}]
  %s1 = inlined_call_operand.vmem [shape: f32[64,380], index: 1, kind: output, shape index: {}]
  %v2 = vld [vmem:[%s0] sm:$0xff]
  %vm3 = vcmask 523264
  %4 = vst.msk [vmem:[%s1] sm:$0xff] %vm3, %v2
  %s5 = scalar_lea.vmem %s0, 8
  %v6 = vld [vmem:[%s5] sm:$0xff]
  %vm7 = vcmask 523264
  %s8 = scalar_lea.vmem %s1, 8
  %9 = vst.msk [vmem:[%s8] sm:$0xff] %vm7, %v6
  %s10 = scalar_lea.vmem %s0, 16
  %v11 = vld [vmem:[%s10] sm:$0xf]
  %vm12 = vcmask 523264
  %s13 = scalar_lea.vmem %s1, 16
  %14 = vst.msk [vmem:[%s13] sm:$0xf] %vm12, %v11
  %s15 = scalar_lea.vmem %s0, 24
  %v16 = vld [vmem:[%s15] sm:$0xff]
  %vm17 = vcmask 523264
  %s18 = scalar_lea.vmem %s1, 20
  %19 = vst.msk [vmem:[%s18] sm:$0xff] %vm17, %v16
  %s20 = scalar_lea.vmem %s0, 32
  %v21 = vld [vmem:[%s20] sm:$0xff]
  %vm22 = vcmask 523264
  %s23 = scalar_lea.vmem %s1, 28
  %24 = vst.msk [vmem:[%s23] sm:$0xff] %vm22, %v21
  %s25 = scalar_lea.vmem %s0, 40
  %v26 = vld [vmem:[%s25] sm:$0xf]
  %vm27 = vcmask 523264
  %s28 = scalar_lea.vmem %s1, 36
  %29 = vst.msk [vmem:[%s28] sm:$0xf] %vm27, %v26
  %s30 = scalar_lea.vmem %s0, 48
  %v31 = vld [vmem:[%s30] sm:$0xff]
  %vm32 = vcmask 523264
  %s33 = scalar_lea.vmem %s1, 40
  %34 = vst.msk [vmem:[%s33] sm:$0xff] %vm32, %v31
  %s35 = scalar_lea.vmem %s0, 56
  %v36 = vld [vmem:[%s35] sm:$0xff]
  %vm37 = vcmask 523264
  %s38 = scalar_lea.vmem %s1, 48
  %39 = vst.msk [vmem:[%s38] sm:$0xff] %vm37, %v36
  %s40 = scalar_lea.vmem %s0, 64
  %v41 = vld [vmem:[%s40] sm:$0xf]
  %vm42 = vcmask 523264
  %s43 = scalar_lea.vmem %s1, 56
  %44 = vst.msk [vmem:[%s43] sm:$0xf] %vm42, %v41
  %s45 = scalar_lea.vmem %s0, 72
  %v46 = vld [vmem:[%s45] sm:$0xff]
  %vm47 = vcmask 523264
  %s48 = scalar_lea.vmem %s1, 60
  %49 = vst.msk [vmem:[%s48] sm:$0xff] %vm47, %v46
  %s50 = scalar_lea.vmem %s0, 80
  %v51 = vld [vmem:[%s50] sm:$0xff]
  %vm52 = vcmask 523264
  %s53 = scalar_lea.vmem %s1, 68
  %54 = vst.msk [vmem:[%s53] sm:$0xff] %vm52, %v51
  %s55 = scalar_lea.vmem %s0, 88
  %v56 = vld [vmem:[%s55] sm:$0xf]
  %vm57 = vcmask 523264
  %s58 = scalar_lea.vmem %s1, 76
  %59 = vst.msk [vmem:[%s58] sm:$0xf] %vm57, %v56
  %s60 = scalar_lea.vmem %s0, 96
  %v61 = vld [vmem:[%s60] sm:$0xff]
  %vm62 = vcmask 523264
  %s63 = scalar_lea.vmem %s1, 80
  %64 = vst.msk [vmem:[%s63] sm:$0xff] %vm62, %v61
  %s65 = scalar_lea.vmem %s0, 104
  %v66 = vld [vmem:[%s65] sm:$0xff]
  %vm67 = vcmask 523264
  %s68 = scalar_lea.vmem %s1, 88
  %69 = vst.msk [vmem:[%s68] sm:$0xff] %vm67, %v66
  %s70 = scalar_lea.vmem %s0, 112
  %v71 = vld [vmem:[%s70] sm:$0xf]
  %vm72 = vcmask 523264
  %s73 = scalar_lea.vmem %s1, 96
  %74 = vst.msk [vmem:[%s73] sm:$0xf] %vm72, %v71
  %s75 = scalar_lea.vmem %s0, 120
  %v76 = vld [vmem:[%s75] sm:$0xff]
  %vm77 = vcmask 523264
  %s78 = scalar_lea.vmem %s1, 100
  %79 = vst.msk [vmem:[%s78] sm:$0xff] %vm77, %v76
  %s80 = scalar_lea.vmem %s0, 128
  %v81 = vld [vmem:[%s80] sm:$0xff]
  %vm82 = vcmask 523264
  %s83 = scalar_lea.vmem %s1, 108
  %84 = vst.msk [vmem:[%s83] sm:$0xff] %vm82, %v81
  %s85 = scalar_lea.vmem %s0, 136
  %v86 = vld [vmem:[%s85] sm:$0xf]
  %vm87 = vcmask 523264
  %s88 = scalar_lea.vmem %s1, 116
  %89 = vst.msk [vmem:[%s88] sm:$0xf] %vm87, %v86
  %s90 = scalar_lea.vmem %s0, 144
  %v91 = vld [vmem:[%s90] sm:$0xff]
  %vm92 = vcmask 523264
  %s93 = scalar_lea.vmem %s1, 120
  %94 = vst.msk [vmem:[%s93] sm:$0xff] %vm92, %v91
  %s95 = scalar_lea.vmem %s0, 152
  %v96 = vld [vmem:[%s95] sm:$0xff]
  %vm97 = vcmask 523264
  %s98 = scalar_lea.vmem %s1, 128
  %99 = vst.msk [vmem:[%s98] sm:$0xff] %vm97, %v96
  %s100 = scalar_lea.vmem %s0, 160
  %v101 = vld [vmem:[%s100] sm:$0xf]
  %vm102 = vcmask 523264
  %s103 = scalar_lea.vmem %s1, 136
  %104 = vst.msk [vmem:[%s103] sm:$0xf] %vm102, %v101
  %s105 = scalar_lea.vmem %s0, 168
  %v106 = vld [vmem:[%s105] sm:$0xff]
  %vm107 = vcmask 523264
  %s108 = scalar_lea.vmem %s1, 140
  %109 = vst.msk [vmem:[%s108] sm:$0xff] %vm107, %v106
  %s110 = scalar_lea.vmem %s0, 176
  %v111 = vld [vmem:[%s110] sm:$0xff]
  %vm112 = vcmask 523264
  %s113 = scalar_lea.vmem %s1, 148
  %114 = vst.msk [vmem:[%s113] sm:$0xff] %vm112, %v111
  %s115 = scalar_lea.vmem %s0, 184
  %v116 = vld [vmem:[%s115] sm:$0xf]
  %vm117 = vcmask 523264
  %s118 = scalar_lea.vmem %s1, 156
  %119 = vst.msk [vmem:[%s118] sm:$0xf] %vm117, %v116
  %s120 = scalar_lea.vmem %s0, 192
  %v121 = vld [vmem:[%s120] sm:$0xff]
  %vm122 = vcmask 523264
  %s123 = scalar_lea.vmem %s1, 160
  %124 = vst.msk [vmem:[%s123] sm:$0xff] %vm122, %v121
  %s125 = scalar_lea.vmem %s0, 200
  %v126 = vld [vmem:[%s125] sm:$0xff]
  %vm127 = vcmask 523264
  %s128 = scalar_lea.vmem %s1, 168
  %129 = vst.msk [vmem:[%s128] sm:$0xff] %vm127, %v126
  %s130 = scalar_lea.vmem %s0, 208
  %v131 = vld [vmem:[%s130] sm:$0xf]
  %vm132 = vcmask 523264
  %s133 = scalar_lea.vmem %s1, 176
  %134 = vst.msk [vmem:[%s133] sm:$0xf] %vm132, %v131
  %s135 = scalar_lea.vmem %s0, 216
  %v136 = vld [vmem:[%s135] sm:$0xff]
  %vm137 = vcmask 523264
  %s138 = scalar_lea.vmem %s1, 180
  %139 = vst.msk [vmem:[%s138] sm:$0xff] %vm137, %v136
  %s140 = scalar_lea.vmem %s0, 224
  %v141 = vld [vmem:[%s140] sm:$0xff]
  %vm142 = vcmask 523264
  %s143 = scalar_lea.vmem %s1, 188
  %144 = vst.msk [vmem:[%s143] sm:$0xff] %vm142, %v141
  %s145 = scalar_lea.vmem %s0, 232
  %v146 = vld [vmem:[%s145] sm:$0xf]
  %vm147 = vcmask 523264
  %s148 = scalar_lea.vmem %s1, 196
  %149 = vst.msk [vmem:[%s148] sm:$0xf] %vm147, %v146
  %s150 = scalar_lea.vmem %s0, 240
  %v151 = vld [vmem:[%s150] sm:$0xff]
  %vm152 = vcmask 523264
  %s153 = scalar_lea.vmem %s1, 200
  %154 = vst.msk [vmem:[%s153] sm:$0xff] %vm152, %v151
  %s155 = scalar_lea.vmem %s0, 248
  %v156 = vld [vmem:[%s155] sm:$0xff]
  %vm157 = vcmask 523264
  %s158 = scalar_lea.vmem %s1, 208
  %159 = vst.msk [vmem:[%s158] sm:$0xff] %vm157, %v156
  %s160 = scalar_lea.vmem %s0, 256
  %v161 = vld [vmem:[%s160] sm:$0xf]
  %vm162 = vcmask 523264
  %s163 = scalar_lea.vmem %s1, 216
  %164 = vst.msk [vmem:[%s163] sm:$0xf] %vm162, %v161
  %s165 = scalar_lea.vmem %s0, 264
  %v166 = vld [vmem:[%s165] sm:$0xff]
  %vm167 = vcmask 523264
  %s168 = scalar_lea.vmem %s1, 220
  %169 = vst.msk [vmem:[%s168] sm:$0xff] %vm167, %v166
  %s170 = scalar_lea.vmem %s0, 272
  %v171 = vld [vmem:[%s170] sm:$0xff]
  %vm172 = vcmask 523264
  %s173 = scalar_lea.vmem %s1, 228
  %174 = vst.msk [vmem:[%s173] sm:$0xff] %vm172, %v171
  %s175 = scalar_lea.vmem %s0, 280
  %v176 = vld [vmem:[%s175] sm:$0xf]
  %vm177 = vcmask 523264
  %s178 = scalar_lea.vmem %s1, 236
  %179 = vst.msk [vmem:[%s178] sm:$0xf] %vm177, %v176
  %s180 = scalar_lea.vmem %s0, 288
  %v181 = vld [vmem:[%s180] sm:$0xff]
  %vm182 = vcmask 523264
  %s183 = scalar_lea.vmem %s1, 240
  %184 = vst.msk [vmem:[%s183] sm:$0xff] %vm182, %v181
  %s185 = scalar_lea.vmem %s0, 296
  %v186 = vld [vmem:[%s185] sm:$0xff]
  %vm187 = vcmask 523264
  %s188 = scalar_lea.vmem %s1, 248
  %189 = vst.msk [vmem:[%s188] sm:$0xff] %vm187, %v186
  %s190 = scalar_lea.vmem %s0, 304
  %v191 = vld [vmem:[%s190] sm:$0xf]
  %vm192 = vcmask 523264
  %s193 = scalar_lea.vmem %s1, 256
  %194 = vst.msk [vmem:[%s193] sm:$0xf] %vm192, %v191
  %s195 = scalar_lea.vmem %s0, 312
  %v196 = vld [vmem:[%s195] sm:$0xff]
  %vm197 = vcmask 523264
  %s198 = scalar_lea.vmem %s1, 260
  %199 = vst.msk [vmem:[%s198] sm:$0xff] %vm197, %v196
  %s200 = scalar_lea.vmem %s0, 320
  %v201 = vld [vmem:[%s200] sm:$0xff]
  %vm202 = vcmask 523264
  %s203 = scalar_lea.vmem %s1, 268
  %204 = vst.msk [vmem:[%s203] sm:$0xff] %vm202, %v201
  %s205 = scalar_lea.vmem %s0, 328
  %v206 = vld [vmem:[%s205] sm:$0xf]
  %vm207 = vcmask 523264
  %s208 = scalar_lea.vmem %s1, 276
  %209 = vst.msk [vmem:[%s208] sm:$0xf] %vm207, %v206
  %s210 = scalar_lea.vmem %s0, 336
  %v211 = vld [vmem:[%s210] sm:$0xff]
  %vm212 = vcmask 523264
  %s213 = scalar_lea.vmem %s1, 280
  %214 = vst.msk [vmem:[%s213] sm:$0xff] %vm212, %v211
  %s215 = scalar_lea.vmem %s0, 344
  %v216 = vld [vmem:[%s215] sm:$0xff]
  %vm217 = vcmask 523264
  %s218 = scalar_lea.vmem %s1, 288
  %219 = vst.msk [vmem:[%s218] sm:$0xff] %vm217, %v216
  %s220 = scalar_lea.vmem %s0, 352
  %v221 = vld [vmem:[%s220] sm:$0xf]
  %vm222 = vcmask 523264
  %s223 = scalar_lea.vmem %s1, 296
  %224 = vst.msk [vmem:[%s223] sm:$0xf] %vm222, %v221
  %s225 = scalar_lea.vmem %s0, 360
  %v226 = vld [vmem:[%s225] sm:$0xff]
  %vm227 = vcmask 523264
  %s228 = scalar_lea.vmem %s1, 300
  %229 = vst.msk [vmem:[%s228] sm:$0xff] %vm227, %v226
  %s230 = scalar_lea.vmem %s0, 368
  %v231 = vld [vmem:[%s230] sm:$0xff]
  %vm232 = vcmask 523264
  %s233 = scalar_lea.vmem %s1, 308
  %234 = vst.msk [vmem:[%s233] sm:$0xff] %vm232, %v231
  %s235 = scalar_lea.vmem %s0, 376
  %v236 = vld [vmem:[%s235] sm:$0xf]
  %vm237 = vcmask 523264
  %s238 = scalar_lea.vmem %s1, 316
  %239 = vst.msk [vmem:[%s238] sm:$0xf] %vm237, %v236
  %s240 = scalar_lea.vmem %s0, 384
  %v241 = vld [vmem:[%s240] sm:$0xff]
  %vm242 = vcmask 523264
  %s243 = scalar_lea.vmem %s1, 320
  %244 = vst.msk [vmem:[%s243] sm:$0xff] %vm242, %v241
  %s245 = scalar_lea.vmem %s0, 392
  %v246 = vld [vmem:[%s245] sm:$0xff]
  %vm247 = vcmask 523264
  %s248 = scalar_lea.vmem %s1, 328
  %249 = vst.msk [vmem:[%s248] sm:$0xff] %vm247, %v246
  %s250 = scalar_lea.vmem %s0, 400
  %v251 = vld [vmem:[%s250] sm:$0xf]
  %vm252 = vcmask 523264
  %s253 = scalar_lea.vmem %s1, 336
  %254 = vst.msk [vmem:[%s253] sm:$0xf] %vm252, %v251
  %s255 = scalar_lea.vmem %s0, 408
  %v256 = vld [vmem:[%s255] sm:$0xff]
  %vm257 = vcmask 523264
  %s258 = scalar_lea.vmem %s1, 340
  %259 = vst.msk [vmem:[%s258] sm:$0xff] %vm257, %v256
  %s260 = scalar_lea.vmem %s0, 416
  %v261 = vld [vmem:[%s260] sm:$0xff]
  %vm262 = vcmask 523264
  %s263 = scalar_lea.vmem %s1, 348
  %264 = vst.msk [vmem:[%s263] sm:$0xff] %vm262, %v261
  %s265 = scalar_lea.vmem %s0, 424
  %v266 = vld [vmem:[%s265] sm:$0xf]
  %vm267 = vcmask 523264
  %s268 = scalar_lea.vmem %s1, 356
  %269 = vst.msk [vmem:[%s268] sm:$0xf] %vm267, %v266
  %s270 = scalar_lea.vmem %s0, 432
  %v271 = vld [vmem:[%s270] sm:$0xff]
  %vm272 = vcmask 523264
  %s273 = scalar_lea.vmem %s1, 360
  %274 = vst.msk [vmem:[%s273] sm:$0xff] %vm272, %v271
  %s275 = scalar_lea.vmem %s0, 440
  %v276 = vld [vmem:[%s275] sm:$0xff]
  %vm277 = vcmask 523264
  %s278 = scalar_lea.vmem %s1, 368
  %279 = vst.msk [vmem:[%s278] sm:$0xff] %vm277, %v276
  %s280 = scalar_lea.vmem %s0, 448
  %v281 = vld [vmem:[%s280] sm:$0xf]
  %vm282 = vcmask 523264
  %s283 = scalar_lea.vmem %s1, 376
  %284 = vst.msk [vmem:[%s283] sm:$0xf] %vm282, %v281

// kernel: model_forward.1
$region0: #{model_forward.1}
  #allocation0 [shape = 'u32[]', space=smem, size = 0x4, offset = 0x4, fixed_abs, tag = 'smem constant byte address 0x4 - core index']
  #allocation1 [shape = 'u32[144,128]{1,0:T(1,128)}', space=vmem, size = 0x12000, scoped, tag = 'internal scratch']
  %s0 = inlined_call_operand.vmem [shape: f32[64,380], index: 0, kind: input, shape index: {}]
  %s1 = inlined_call_operand.vmem [shape: f32[128,64], index: 1, kind: input, shape index: {}]
  %s2 = inlined_call_operand.vmem [shape: bf16[380,1599], index: 2, kind: input, shape index: {}]
  %s3 = inlined_call_operand.vmem [shape: f32[128,1], index: 3, kind: input, shape index: {}]
  %s4 = inlined_call_operand.vmem [shape: f32[128,1599], index: 4, kind: output, shape index: {}]
  %s5 = sld [smem:[#allocation0]]
  $region26: #{model_forward.1} parent=0
    _
  %s7 = ssub.s32 1, %s5
  %s8 = scalar_select 0, %s7, %s5
  // Predicated region
  $region2: #{model_forward.1} parent=0 // pred_check
    _
  $region3: #{model_forward.1} parent=0 // pred_check_branch
    %10 = sbr.rel (0) target = $region5
  $region4: #{model_forward.1} parent=0 // pred_region
    _
  $region5: #{model_forward.1} parent=0 // pred_fallthru
    _
  // Predicated region
  $region6: #{model_forward.1} parent=0 // pred_check
    _
  $region7: #{model_forward.1} parent=0 // pred_check_branch
    %12 = sbr.rel (0) target = $region9
  $region8: #{model_forward.1} parent=0 // pred_region
    _
  $region9: #{model_forward.1} parent=0 // pred_fallthru
    _
  // Predicated region
  $region10: #{model_forward.1} parent=0 // pred_check
    _
  $region11: #{model_forward.1} parent=0 // pred_check_branch
    %14 = sbr.rel (0) target = $region13
  $region12: #{model_forward.1} parent=0 // pred_region
    _
  $region13: #{model_forward.1} parent=0 // pred_fallthru
    _
  // Predicated region
  $region14: #{model_forward.1} parent=0 // pred_check
    _
  $region15: #{model_forward.1} parent=0 // pred_check_branch
    %16 = sbr.rel (0) target = $region17
  $region16: #{model_forward.1} parent=0 // pred_region
    _
  $region17: #{model_forward.1} parent=0 // pred_fallthru
    _
  %v18 = vld [vmem:[%s1] sm:$0xff]
  %v19 = vld [vmem:[%s1 + $0x8] sm:$0xff]
  %v20 = vld [vmem:[%s1 + $0x10] sm:$0xff]
  %v21 = vld [vmem:[%s1 + $0x18] sm:$0xff]
  %v22 = vld [vmem:[%s1 + $0x20] sm:$0xff]
  %v23 = vld [vmem:[%s1 + $0x28] sm:$0xff]
  %v24 = vld [vmem:[%s1 + $0x30] sm:$0xff]
  %v25 = vld [vmem:[%s1 + $0x38] sm:$0xff]
  %v26 = vld [vmem:[%s1 + $0x40] sm:$0xff]
  %v27 = vld [vmem:[%s1 + $0x48] sm:$0xff]
  %v28 = vld [vmem:[%s1 + $0x50] sm:$0xff]
  %v29 = vld [vmem:[%s1 + $0x58] sm:$0xff]
  %v30 = vld [vmem:[%s1 + $0x60] sm:$0xff]
  %v31 = vld [vmem:[%s1 + $0x68] sm:$0xff]
  %v32 = vld [vmem:[%s1 + $0x70] sm:$0xff]
  %v33 = vld [vmem:[%s1 + $0x78] sm:$0xff]
  %v34 = vld [vmem:[%s0] sm:$0xff]
  %v35 = vld [vmem:[%s0 + $0x8] sm:$0xff]
  %v36 = vld [vmem:[%s0 + $0x10] sm:$0xff]
  %v37 = vld [vmem:[%s0 + $0x18] sm:$0xff]
  %v38 = vld [vmem:[%s0 + $0x20] sm:$0xff]
  %v39 = vld [vmem:[%s0 + $0x28] sm:$0xff]
  %v40 = vld [vmem:[%s0 + $0x30] sm:$0xff]
  %v41 = vld [vmem:[%s0 + $0x38] sm:$0xff]
  %v42 = vld [vmem:[%s0 + $0x40] sm:$0xff]
  %v43 = vld [vmem:[%s0 + $0x48] sm:$0xff]
  %v44 = vld [vmem:[%s0 + $0x50] sm:$0xff]
  %v45 = vld [vmem:[%s0 + $0x58] sm:$0xff]
  %v46 = vld [vmem:[%s0 + $0x60] sm:$0xff]
  %v47 = vld [vmem:[%s0 + $0x68] sm:$0xff]
  %v48 = vld [vmem:[%s0 + $0x70] sm:$0xff]
  %v49 = vld [vmem:[%s0 + $0x78] sm:$0xff]
  %v50 = vld [vmem:[%s0 + $0x80] sm:$0xff]
  %v51 = vld [vmem:[%s0 + $0x88] sm:$0xff]
  %v52 = vld [vmem:[%s0 + $0x90] sm:$0xff]
  %v53 = vld [vmem:[%s0 + $0x98] sm:$0xff]
  %v54 = vld [vmem:[%s0 + $0xa0] sm:$0xff]
  %v55 = vld [vmem:[%s0 + $0xa8] sm:$0xff]
  %v56 = vld [vmem:[%s0 + $0xb0] sm:$0xff]
  %v57 = vld [vmem:[%s0 + $0xb8] sm:$0xff]
  %vm58 = vcmask 523264
  %v60 = vsel %vm58, %v18, 0
  %v63 = vsel %vm58, %v19, 0
  %v66 = vsel %vm58, %v20, 0
  %v69 = vsel %vm58, %v21, 0
  %v72 = vsel %vm58, %v22, 0
  %v75 = vsel %vm58, %v23, 0
  %v78 = vsel %vm58, %v24, 0
  %v81 = vsel %vm58, %v25, 0
  %v84 = vsel %vm58, %v26, 0
  %v87 = vsel %vm58, %v27, 0
  %v90 = vsel %vm58, %v28, 0
  %v93 = vsel %vm58, %v29, 0
  %v96 = vsel %vm58, %v30, 0
  %v99 = vsel %vm58, %v31, 0
  %v102 = vsel %vm58, %v32, 0
  %v105 = vsel %vm58, %v33, 0
  %107 = vmatprep.subr.mxu0 %v35
  %108 = vmatpush1.msra.mxu0 %v34
  %109 = vmatprep.subr.mxu0 %v38
  %110 = vmatpush1.msra.mxu0 %v37
  %111 = vmatprep.subr.mxu0 %v41
  %112 = vmatpush1.msra.mxu0 %v40
  %113 = vmatprep.subr.mxu0 %v44
  %114 = vmatpush1.msra.mxu0 %v43
  %115 = vmatprep.subr.mxu0 %v47
  %116 = vmatpush1.msra.mxu0 %v46
  %117 = vmatprep.subr.mxu0 %v50
  %118 = vmatpush1.msra.mxu0 %v49
  %119 = vmatprep.subr.mxu0 %v53
  %120 = vmatpush1.msra.mxu0 %v52
  %121 = vmatprep.subr.mxu0 %v56
  %122 = vmatpush1.msra.mxu0 %v55
  %123 = vmatprep.subr.mxu0 0.0
  %124 = vmatpush1.msra.mxu0 0.0
  %125 = vmatprep.subr.mxu0 0.0
  %126 = vmatpush1.msra.mxu0 0.0
  %127 = vmatprep.subr.mxu0 0.0
  %128 = vmatpush1.msra.mxu0 0.0
  %129 = vmatprep.subr.mxu0 0.0
  %130 = vmatpush1.msra.mxu0 0.0
  %131 = vmatprep.subr.mxu0 0.0
  %132 = vmatpush1.msra.mxu0 0.0
  %133 = vmatprep.subr.mxu0 0.0
  %134 = vmatpush1.msra.mxu0 0.0
  %135 = vmatprep.subr.mxu0 0.0
  %136 = vmatpush1.msra.mxu0 0.0
  %137 = vmatprep.subr.mxu0 0.0
  %138 = vmatpush1.msra.mxu0 0.0
  %139 = vmatprep.subr.mxu0 0.0
  %140 = vmatpush1.msra.mxu0 0.0
  %141 = vmatprep.subr.mxu0 0.0
  %142 = vmatpush1.msra.mxu0 0.0
  %143 = vmatprep.subr.mxu0 0.0
  %144 = vmatpush1.msra.mxu0 0.0
  %145 = vmatprep.subr.mxu0 0.0
  %146 = vmatpush1.msra.mxu0 0.0
  %147 = vmatprep.subr.mxu0 0.0
  %148 = vmatpush1.msra.mxu0 0.0
  %149 = vmatprep.subr.mxu0 0.0
  %150 = vmatpush1.msra.mxu0 0.0
  %151 = vmatprep.subr.mxu0 0.0
  %152 = vmatpush1.msra.mxu0 0.0
  %153 = vmatprep.subr.mxu0 0.0
  %154 = vmatpush1.msra.mxu0 0.0
  %155 = vmatprep.subr.mxu0 0.0
  %156 = vmatpush1.msra.mxu0 0.0
  %157 = vmatprep.subr.mxu0 0.0
  %158 = vmatpush1.msra.mxu0 0.0
  %159 = vmatprep.subr.mxu0 0.0
  %160 = vmatpush1.msra.mxu0 0.0
  %161 = vmatprep.subr.mxu0 0.0
  %162 = vmatpush1.msra.mxu0 0.0
  %163 = vmatprep.subr.mxu0 0.0
  %164 = vmatpush1.msra.mxu0 0.0
  %165 = vmatprep.subr.mxu0 0.0
  %166 = vmatpush1.msra.mxu0 0.0
  %167 = vmatprep.subr.mxu0 0.0
  %168 = vmatpush1.msra.mxu0 0.0
  %169 = vmatprep.subr.mxu0 0.0
  %170 = vmatpush1.msra.mxu0 0.0
  %171 = vmatprep.mubr.f32.mxu0 0.0
  %172 = vmatmul.mubr.f32.gmra.mrb[0].mxu0 %v60
  %v173 = vpop.f32.mrb[0].mxu0
  %v174 = vadd.f32 0.0, %v173
  %v175 = vpop.f32.mrb[0].mxu0
  %v176 = vadd.f32 0.0, %v175
  %177 = vmatprep.mubr.f32.mxu0 0.0
  %178 = vmatmul.mubr.f32.gmra.mrb[0].mxu0 %v63
  %v179 = vpop.f32.mrb[0].mxu0
  %v180 = vadd.f32 0.0, %v179
  %v181 = vpop.f32.mrb[0].mxu0
  %v182 = vadd.f32 0.0, %v181
  %183 = vmatprep.mubr.f32.mxu0 0.0
  %184 = vmatmul.mubr.f32.gmra.mrb[0].mxu0 %v66
  %v185 = vpop.f32.mrb[0].mxu0
  %v186 = vadd.f32 0.0, %v185
  %v187 = vpop.f32.mrb[0].mxu0
  %v188 = vadd.f32 0.0, %v187
  %189 = vmatprep.mubr.f32.mxu0 0.0
  %190 = vmatmul.mubr.f32.gmra.mrb[0].mxu0 %v69
  %v191 = vpop.f32.mrb[0].mxu0
  %v192 = vadd.f32 0.0, %v191
  %v193 = vpop.f32.mrb[0].mxu0
  %v194 = vadd.f32 0.0, %v193
  %195 = vmatprep.mubr.f32.mxu0 0.0
  %196 = vmatmul.mubr.f32.gmra.mrb[0].mxu0 %v72
  %v197 = vpop.f32.mrb[0].mxu0
  %v198 = vadd.f32 0.0, %v197
  %v199 = vpop.f32.mrb[0].mxu0
  %v200 = vadd.f32 0.0, %v199
  %201 = vmatprep.mubr.f32.mxu0 0.0
  %202 = vmatmul.mubr.f32.gmra.mrb[0].mxu0 %v75
  %v203 = vpop.f32.mrb[0].mxu0
  %v204 = vadd.f32 0.0, %v203
  %v205 = vpop.f32.mrb[0].mxu0
  %v206 = vadd.f32 0.0, %v205
  %207 = vmatprep.mubr.f32.mxu0 0.0
  %208 = vmatmul.mubr.f32.gmra.mrb[0].mxu0 %v78
  %v209 = vpop.f32.mrb[0].mxu0
  %v210 = vadd.f32 0.0, %v209
  %v211 = vpop.f32.mrb[0].mxu0
  %v212 = vadd.f32 0.0, %v211
  %213 = vmatprep.mubr.f32.mxu0 0.0
  %214 = vmatmul.mubr.f32.gmra.mrb[0].mxu0 %v81
  %v215 = vpop.f32.mrb[0].mxu0
  %v216 = vadd.f32 0.0, %v215
  %v217 = vpop.f32.mrb[0].mxu0
  %v218 = vadd.f32 0.0, %v217
  %219 = vmatprep.mubr.f32.mxu0 0.0
  %220 = vmatmul.mubr.f32.gmra.mrb[0].mxu0 %v84
  %v221 = vpop.f32.mrb[0].mxu0
  %v222 = vadd.f32 0.0, %v221
  %v223 = vpop.f32.mrb[0].mxu0
  %v224 = vadd.f32 0.0, %v223
  %225 = vmatprep.mubr.f32.mxu0 0.0
  %226 = vmatmul.mubr.f32.gmra.mrb[0].mxu0 %v87
  %v227 = vpop.f32.mrb[0].mxu0
  %v228 = vadd.f32 0.0, %v227
  %v229 = vpop.f32.mrb[0].mxu0
  %v230 = vadd.f32 0.0, %v229
  %231 = vmatprep.mubr.f32.mxu0 0.0
  %232 = vmatmul.mubr.f32.gmra.mrb[0].mxu0 %v90
  %v233 = vpop.f32.mrb[0].mxu0
  %v234 = vadd.f32 0.0, %v233
  %v235 = vpop.f32.mrb[0].mxu0
  %v236 = vadd.f32 0.0, %v235
  %237 = vmatprep.mubr.f32.mxu0 0.0
  %238 = vmatmul.mubr.f32.gmra.mrb[0].mxu0 %v93
  %v239 = vpop.f32.mrb[0].mxu0
  %v240 = vadd.f32 0.0, %v239
  %v241 = vpop.f32.mrb[0].mxu0
  %v242 = vadd.f32 0.0, %v241
  %243 = vmatprep.mubr.f32.mxu0 0.0
  %244 = vmatmul.mubr.f32.gmra.mrb[0].mxu0 %v96
  %v245 = vpop.f32.mrb[0].mxu0
  %v246 = vadd.f32 0.0, %v245
  %v247 = vpop.f32.mrb[0].mxu0
  %v248 = vadd.f32 0.0, %v247
  %249 = vmatprep.mubr.f32.mxu0 0.0
  %250 = vmatmul.mubr.f32.gmra.mrb[0].mxu0 %v99
  %v251 = vpop.f32.mrb[0].mxu0
  %v252 = vadd.f32 0.0, %v251
  %v253 = vpop.f32.mrb[0].mxu0
  %v254 = vadd.f32 0.0, %v253
  %255 = vmatprep.mubr.f32.mxu0 0.0
  %256 = vmatmul.mubr.f32.gmra.mrb[0].mxu0 %v102
  %v257 = vpop.f32.mrb[0].mxu0
  %v258 = vadd.f32 0.0, %v257
  %v259 = vpop.f32.mrb[0].mxu0
  %v260 = vadd.f32 0.0, %v259
  %261 = vmatprep.mubr.f32.mxu0 0.0
  %262 = vmatmul.mubr.f32.gmra.mrb[0].mxu0 %v105
  %v263 = vpop.f32.mrb[0].mxu0
  %v264 = vadd.f32 0.0, %v263
  %v265 = vpop.f32.mrb[0].mxu0
  %v266 = vadd.f32 0.0, %v265
  %267 = vdwg.mxu0
  %268 = vmatprep.subr.mxu0 0.0
  %269 = vmatpush1.msra.mxu0 %v36
  %270 = vmatprep.subr.mxu0 0.0
  %271 = vmatpush1.msra.mxu0 %v39
  %272 = vmatprep.subr.mxu0 0.0
  %273 = vmatpush1.msra.mxu0 %v42
  %274 = vmatprep.subr.mxu0 0.0
  %275 = vmatpush1.msra.mxu0 %v45
  %276 = vmatprep.subr.mxu0 0.0
  %277 = vmatpush1.msra.mxu0 %v48
  %278 = vmatprep.subr.mxu0 0.0
  %279 = vmatpush1.msra.mxu0 %v51
  %280 = vmatprep.subr.mxu0 0.0
  %281 = vmatpush1.msra.mxu0 %v54
  %282 = vmatprep.subr.mxu0 0.0
  %283 = vmatpush1.msra.mxu0 %v57
  %284 = vmatprep.subr.mxu0 0.0
  %285 = vmatpush1.msra.mxu0 0.0
  %286 = vmatprep.subr.mxu0 0.0
  %287 = vmatpush1.msra.mxu0 0.0
  %288 = vmatprep.subr.mxu0 0.0
  %289 = vmatpush1.msra.mxu0 0.0
  %290 = vmatprep.subr.mxu0 0.0
  %291 = vmatpush1.msra.mxu0 0.0
  %292 = vmatprep.subr.mxu0 0.0
  %293 = vmatpush1.msra.mxu0 0.0
  %294 = vmatprep.subr.mxu0 0.0
  %295 = vmatpush1.msra.mxu0 0.0
  %296 = vmatprep.subr.mxu0 0.0
  %297 = vmatpush1.msra.mxu0 0.0
  %298 = vmatprep.subr.mxu0 0.0
  %299 = vmatpush1.msra.mxu0 0.0
  %300 = vmatprep.subr.mxu0 0.0
  %301 = vmatpush1.msra.mxu0 0.0
  %302 = vmatprep.subr.mxu0 0.0
  %303 = vmatpush1.msra.mxu0 0.0
  %304 = vmatprep.subr.mxu0 0.0
  %305 = vmatpush1.msra.mxu0 0.0
  %306 = vmatprep.subr.mxu0 0.0
  %307 = vmatpush1.msra.mxu0 0.0
  %308 = vmatprep.subr.mxu0 0.0
  %309 = vmatpush1.msra.mxu0 0.0
  %310 = vmatprep.subr.mxu0 0.0
  %311 = vmatpush1.msra.mxu0 0.0
  %312 = vmatprep.subr.mxu0 0.0
  %313 = vmatpush1.msra.mxu0 0.0
  %314 = vmatprep.subr.mxu0 0.0
  %315 = vmatpush1.msra.mxu0 0.0
  %316 = vmatprep.subr.mxu0 0.0
  %317 = vmatpush1.msra.mxu0 0.0
  %318 = vmatprep.subr.mxu0 0.0
  %319 = vmatpush1.msra.mxu0 0.0
  %320 = vmatprep.subr.mxu0 0.0
  %321 = vmatpush1.msra.mxu0 0.0
  %322 = vmatprep.subr.mxu0 0.0
  %323 = vmatpush1.msra.mxu0 0.0
  %324 = vmatprep.subr.mxu0 0.0
  %325 = vmatpush1.msra.mxu0 0.0
  %326 = vmatprep.subr.mxu0 0.0
  %327 = vmatpush1.msra.mxu0 0.0
  %328 = vmatprep.subr.mxu0 0.0
  %329 = vmatpush1.msra.mxu0 0.0
  %330 = vmatprep.subr.mxu0 0.0
  %331 = vmatpush1.msra.mxu0 0.0
  %332 = vmatprep.mubr.f32.mxu0 0.0
  %333 = vmatmul.mubr.f32.gmra.mrb[0].mxu0 %v60
  %v334 = vpop.f32.mrb[0].mxu0
  %v335 = vadd.f32 0.0, %v334
  %v336 = vpop.f32.mrb[0].mxu0
  %337 = vmatprep.mubr.f32.mxu0 0.0
  %338 = vmatmul.mubr.f32.gmra.mrb[0].mxu0 %v63
  %v339 = vpop.f32.mrb[0].mxu0
  %v340 = vadd.f32 0.0, %v339
  %v341 = vpop.f32.mrb[0].mxu0
  %342 = vmatprep.mubr.f32.mxu0 0.0
  %343 = vmatmul.mubr.f32.gmra.mrb[0].mxu0 %v66
  %v344 = vpop.f32.mrb[0].mxu0
  %v345 = vadd.f32 0.0, %v344
  %v346 = vpop.f32.mrb[0].mxu0
  %347 = vmatprep.mubr.f32.mxu0 0.0
  %348 = vmatmul.mubr.f32.gmra.mrb[0].mxu0 %v69
  %v349 = vpop.f32.mrb[0].mxu0
  %v350 = vadd.f32 0.0, %v349
  %v351 = vpop.f32.mrb[0].mxu0
  %352 = vmatprep.mubr.f32.mxu0 0.0
  %353 = vmatmul.mubr.f32.gmra.mrb[0].mxu0 %v72
  %v354 = vpop.f32.mrb[0].mxu0
  %v355 = vadd.f32 0.0, %v354
  %v356 = vpop.f32.mrb[0].mxu0
  %357 = vmatprep.mubr.f32.mxu0 0.0
  %358 = vmatmul.mubr.f32.gmra.mrb[0].mxu0 %v75
  %v359 = vpop.f32.mrb[0].mxu0
  %v360 = vadd.f32 0.0, %v359
  %v361 = vpop.f32.mrb[0].mxu0
  %362 = vmatprep.mubr.f32.mxu0 0.0
  %363 = vmatmul.mubr.f32.gmra.mrb[0].mxu0 %v78
  %v364 = vpop.f32.mrb[0].mxu0
  %v365 = vadd.f32 0.0, %v364
  %v366 = vpop.f32.mrb[0].mxu0
  %367 = vmatprep.mubr.f32.mxu0 0.0
  %368 = vmatmul.mubr.f32.gmra.mrb[0].mxu0 %v81
  %v369 = vpop.f32.mrb[0].mxu0
  %v370 = vadd.f32 0.0, %v369
  %v371 = vpop.f32.mrb[0].mxu0
  %372 = vmatprep.mubr.f32.mxu0 0.0
  %373 = vmatmul.mubr.f32.gmra.mrb[0].mxu0 %v84
  %v374 = vpop.f32.mrb[0].mxu0
  %v375 = vadd.f32 0.0, %v374
  %v376 = vpop.f32.mrb[0].mxu0
  %377 = vmatprep.mubr.f32.mxu0 0.0
  %378 = vmatmul.mubr.f32.gmra.mrb[0].mxu0 %v87
  %v379 = vpop.f32.mrb[0].mxu0
  %v380 = vadd.f32 0.0, %v379
  %v381 = vpop.f32.mrb[0].mxu0
  %382 = vmatprep.mubr.f32.mxu0 0.0
  %383 = vmatmul.mubr.f32.gmra.mrb[0].mxu0 %v90
  %v384 = vpop.f32.mrb[0].mxu0
  %v385 = vadd.f32 0.0, %v384
  %v386 = vpop.f32.mrb[0].mxu0
  %387 = vmatprep.mubr.f32.mxu0 0.0
  %388 = vmatmul.mubr.f32.gmra.mrb[0].mxu0 %v93
  %v389 = vpop.f32.mrb[0].mxu0
  %v390 = vadd.f32 0.0, %v389
  %v391 = vpop.f32.mrb[0].mxu0
  %392 = vmatprep.mubr.f32.mxu0 0.0
  %393 = vmatmul.mubr.f32.gmra.mrb[0].mxu0 %v96
  %v394 = vpop.f32.mrb[0].mxu0
  %v395 = vadd.f32 0.0, %v394
  %v396 = vpop.f32.mrb[0].mxu0
  %397 = vmatprep.mubr.f32.mxu0 0.0
  %398 = vmatmul.mubr.f32.gmra.mrb[0].mxu0 %v99
  %v399 = vpop.f32.mrb[0].mxu0
  %v400 = vadd.f32 0.0, %v399
  %v401 = vpop.f32.mrb[0].mxu0
  %402 = vmatprep.mubr.f32.mxu0 0.0
  %403 = vmatmul.mubr.f32.gmra.mrb[0].mxu0 %v102
  %v404 = vpop.f32.mrb[0].mxu0
  %v405 = vadd.f32 0.0, %v404
  %v406 = vpop.f32.mrb[0].mxu0
  %407 = vmatprep.mubr.f32.mxu0 0.0
  %408 = vmatmul.mubr.f32.gmra.mrb[0].mxu0 %v105
  %v409 = vpop.f32.mrb[0].mxu0
  %v410 = vadd.f32 0.0, %v409
  %v411 = vpop.f32.mrb[0].mxu0
  %412 = vdwg.mxu0
  %v413 = vpack.c.bf16 %v180, %v174
  %v414 = vpack.c.bf16 %v182, %v176
  %v415 = vpack.c.bf16 %v340, %v335
  %v416 = vpack.c.bf16 %v192, %v186
  %v417 = vpack.c.bf16 %v194, %v188
  %v418 = vpack.c.bf16 %v350, %v345
  %v419 = vpack.c.bf16 %v204, %v198
  %v420 = vpack.c.bf16 %v206, %v200
  %v421 = vpack.c.bf16 %v360, %v355
  %v422 = vpack.c.bf16 %v216, %v210
  %v423 = vpack.c.bf16 %v218, %v212
  %v424 = vpack.c.bf16 %v370, %v365
  %v425 = vpack.c.bf16 %v228, %v222
  %v426 = vpack.c.bf16 %v230, %v224
  %v427 = vpack.c.bf16 %v380, %v375
  %v428 = vpack.c.bf16 %v240, %v234
  %v429 = vpack.c.bf16 %v242, %v236
  %v430 = vpack.c.bf16 %v390, %v385
  %v431 = vpack.c.bf16 %v252, %v246
  %v432 = vpack.c.bf16 %v254, %v248
  %v433 = vpack.c.bf16 %v400, %v395
  %v434 = vpack.c.bf16 %v264, %v258
  %v435 = vpack.c.bf16 %v266, %v260
  %v436 = vpack.c.bf16 %v410, %v405
  %v437 = vld [vmem:[%s2] sm:$0xff]
  %v438 = vld [vmem:[%s2 + $0x8] sm:$0xff]
  %v439 = vld [vmem:[%s2 + $0x10] sm:$0xff]
  %v440 = vld [vmem:[%s2 + $0x18] sm:$0xff]
  %v441 = vld [vmem:[%s2 + $0x20] sm:$0xff]
  %v442 = vld [vmem:[%s2 + $0x28] sm:$0xff]
  %v443 = vld [vmem:[%s2 + $0x30] sm:$0xf]
  %v444 = vld [vmem:[%s2 + $0x34] sm:$0xff]
  %v445 = vld [vmem:[%s2 + $0x3c] sm:$0xff]
  %v446 = vld [vmem:[%s2 + $0x44] sm:$0xff]
  %v447 = vld [vmem:[%s2 + $0x4c] sm:$0xff]
  %v448 = vld [vmem:[%s2 + $0x54] sm:$0xff]
  %v449 = vld [vmem:[%s2 + $0x5c] sm:$0xff]
  %v450 = vld [vmem:[%s2 + $0x64] sm:$0xf]
  %v451 = vld [vmem:[%s2 + $0x68] sm:$0xff]
  %v452 = vld [vmem:[%s2 + $0x70] sm:$0xff]
  %v453 = vld [vmem:[%s2 + $0x78] sm:$0xff]
  %v454 = vld [vmem:[%s2 + $0x80] sm:$0xff]
  %v455 = vld [vmem:[%s2 + $0x88] sm:$0xff]
  %v456 = vld [vmem:[%s2 + $0x90] sm:$0xff]
  %v457 = vld [vmem:[%s2 + $0x98] sm:$0xf]
  %v458 = vld [vmem:[%s2 + $0x9c] sm:$0xff]
  %v459 = vld [vmem:[%s2 + $0xa4] sm:$0xff]
  %v460 = vld [vmem:[%s2 + $0xac] sm:$0xff]
  %v461 = vld [vmem:[%s2 + $0xb4] sm:$0xff]
  %v462 = vld [vmem:[%s2 + $0xbc] sm:$0xff]
  %v463 = vld [vmem:[%s2 + $0xc4] sm:$0xff]
  %v464 = vld [vmem:[%s2 + $0xcc] sm:$0xf]
  %v465 = vld [vmem:[%s2 + $0xd0] sm:$0xff]
  %v466 = vld [vmem:[%s2 + $0xd8] sm:$0xff]
  %v467 = vld [vmem:[%s2 + $0xe0] sm:$0xff]
  %v468 = vld [vmem:[%s2 + $0xe8] sm:$0xff]
  %v469 = vld [vmem:[%s2 + $0xf0] sm:$0xff]
  %v470 = vld [vmem:[%s2 + $0xf8] sm:$0xff]
  %v471 = vld [vmem:[%s2 + $0x100] sm:$0xf]
  %v472 = vld [vmem:[%s2 + $0x104] sm:$0xff]
  %v473 = vld [vmem:[%s2 + $0x10c] sm:$0xff]
  %v474 = vld [vmem:[%s2 + $0x114] sm:$0xff]
  %v475 = vld [vmem:[%s2 + $0x11c] sm:$0xff]
  %v476 = vld [vmem:[%s2 + $0x124] sm:$0xff]
  %v477 = vld [vmem:[%s2 + $0x12c] sm:$0xff]
  %v478 = vld [vmem:[%s2 + $0x134] sm:$0xf]
  %v479 = vld [vmem:[%s2 + $0x138] sm:$0xff]
  %v480 = vld [vmem:[%s2 + $0x140] sm:$0xff]
  %v481 = vld [vmem:[%s2 + $0x148] sm:$0xff]
  %v482 = vld [vmem:[%s2 + $0x150] sm:$0xff]
  %v483 = vld [vmem:[%s2 + $0x158] sm:$0xff]
  %v484 = vld [vmem:[%s2 + $0x160] sm:$0xff]
  %v485 = vld [vmem:[%s2 + $0x168] sm:$0xf]
  %v486 = vld [vmem:[%s2 + $0x16c] sm:$0xff]
  %v487 = vld [vmem:[%s2 + $0x174] sm:$0xff]
  %v488 = vld [vmem:[%s2 + $0x17c] sm:$0xff]
  %v489 = vld [vmem:[%s2 + $0x184] sm:$0xff]
  %v490 = vld [vmem:[%s2 + $0x18c] sm:$0xff]
  %v491 = vld [vmem:[%s2 + $0x194] sm:$0xff]
  %v492 = vld [vmem:[%s2 + $0x19c] sm:$0xf]
  %v493 = vld [vmem:[%s2 + $0x1a0] sm:$0xff]
  %v494 = vld [vmem:[%s2 + $0x1a8] sm:$0xff]
  %v495 = vld [vmem:[%s2 + $0x1b0] sm:$0xff]
  %v496 = vld [vmem:[%s2 + $0x1b8] sm:$0xff]
  %v497 = vld [vmem:[%s2 + $0x1c0] sm:$0xff]
  %v498 = vld [vmem:[%s2 + $0x1c8] sm:$0xff]
  %v499 = vld [vmem:[%s2 + $0x1d0] sm:$0xf]
  %v500 = vld [vmem:[%s2 + $0x1d4] sm:$0xff]
  %v501 = vld [vmem:[%s2 + $0x1dc] sm:$0xff]
  %v502 = vld [vmem:[%s2 + $0x1e4] sm:$0xff]
  %v503 = vld [vmem:[%s2 + $0x1ec] sm:$0xff]
  %v504 = vld [vmem:[%s2 + $0x1f4] sm:$0xff]
  %v505 = vld [vmem:[%s2 + $0x1fc] sm:$0xff]
  %v506 = vld [vmem:[%s2 + $0x204] sm:$0xf]
  %v507 = vld [vmem:[%s2 + $0x208] sm:$0xff]
  %v508 = vld [vmem:[%s2 + $0x210] sm:$0xff]
  %v509 = vld [vmem:[%s2 + $0x218] sm:$0xff]
  %v510 = vld [vmem:[%s2 + $0x220] sm:$0xff]
  %v511 = vld [vmem:[%s2 + $0x228] sm:$0xff]
  %v512 = vld [vmem:[%s2 + $0x230] sm:$0xff]
  %v513 = vld [vmem:[%s2 + $0x238] sm:$0xf]
  %v514 = vld [vmem:[%s2 + $0x23c] sm:$0xff]
  %v515 = vld [vmem:[%s2 + $0x244] sm:$0xff]
  %v516 = vld [vmem:[%s2 + $0x24c] sm:$0xff]
  %v517 = vld [vmem:[%s2 + $0x254] sm:$0xff]
  %v518 = vld [vmem:[%s2 + $0x25c] sm:$0xff]
  %v519 = vld [vmem:[%s2 + $0x264] sm:$0xff]
  %v520 = vld [vmem:[%s2 + $0x26c] sm:$0xf]
  %v521 = vld [vmem:[%s2 + $0x270] sm:$0xff]
  %v522 = vld [vmem:[%s2 + $0x278] sm:$0xff]
  %v523 = vld [vmem:[%s2 + $0x280] sm:$0xff]
  %v524 = vld [vmem:[%s2 + $0x288] sm:$0xff]
  %v525 = vld [vmem:[%s2 + $0x290] sm:$0xff]
  %v526 = vld [vmem:[%s2 + $0x298] sm:$0xff]
  %v527 = vld [vmem:[%s2 + $0x2a0] sm:$0xf]
  %v528 = vld [vmem:[%s2 + $0x2a4] sm:$0xff]
  %v529 = vld [vmem:[%s2 + $0x2ac] sm:$0xff]
  %v530 = vld [vmem:[%s2 + $0x2b4] sm:$0xff]
  %v531 = vld [vmem:[%s2 + $0x2bc] sm:$0xff]
  %v532 = vld [vmem:[%s2 + $0x2c4] sm:$0xff]
  %v533 = vld [vmem:[%s2 + $0x2cc] sm:$0xff]
  %v534 = vld [vmem:[%s2 + $0x2d4] sm:$0xf]
  %v535 = vld [vmem:[%s2 + $0x2d8] sm:$0xff]
  %v536 = vld [vmem:[%s2 + $0x2e0] sm:$0xff]
  %v537 = vld [vmem:[%s2 + $0x2e8] sm:$0xff]
  %v538 = vld [vmem:[%s2 + $0x2f0] sm:$0xff]
  %v539 = vld [vmem:[%s2 + $0x2f8] sm:$0xff]
  %v540 = vld [vmem:[%s2 + $0x300] sm:$0xff]
  %v541 = vld [vmem:[%s2 + $0x308] sm:$0xf]
  %v542 = vld [vmem:[%s2 + $0x30c] sm:$0xff]
  %v543 = vld [vmem:[%s2 + $0x314] sm:$0xff]
  %v544 = vld [vmem:[%s2 + $0x31c] sm:$0xff]
  %v545 = vld [vmem:[%s2 + $0x324] sm:$0xff]
  %v546 = vld [vmem:[%s2 + $0x32c] sm:$0xff]
  %v547 = vld [vmem:[%s2 + $0x334] sm:$0xff]
  %v548 = vld [vmem:[%s2 + $0x33c] sm:$0xf]
  %v549 = vld [vmem:[%s2 + $0x340] sm:$0xff]
  %v550 = vld [vmem:[%s2 + $0x348] sm:$0xff]
  %v551 = vld [vmem:[%s2 + $0x350] sm:$0xff]
  %v552 = vld [vmem:[%s2 + $0x358] sm:$0xff]
  %v553 = vld [vmem:[%s2 + $0x360] sm:$0xff]
  %v554 = vld [vmem:[%s2 + $0x368] sm:$0xff]
  %v555 = vld [vmem:[%s2 + $0x370] sm:$0xf]
  %v556 = vld [vmem:[%s2 + $0x374] sm:$0xff]
  %v557 = vld [vmem:[%s2 + $0x37c] sm:$0xff]
  %v558 = vld [vmem:[%s2 + $0x384] sm:$0xff]
  %v559 = vld [vmem:[%s2 + $0x38c] sm:$0xff]
  %v560 = vld [vmem:[%s2 + $0x394] sm:$0xff]
  %v561 = vld [vmem:[%s2 + $0x39c] sm:$0xff]
  %v562 = vld [vmem:[%s2 + $0x3a4] sm:$0xf]
  %v563 = vld [vmem:[%s2 + $0x3a8] sm:$0xff]
  %v564 = vld [vmem:[%s2 + $0x3b0] sm:$0xff]
  %v565 = vld [vmem:[%s2 + $0x3b8] sm:$0xff]
  %v566 = vld [vmem:[%s2 + $0x3c0] sm:$0xff]
  %v567 = vld [vmem:[%s2 + $0x3c8] sm:$0xff]
  %v568 = vld [vmem:[%s2 + $0x3d0] sm:$0xff]
  %v569 = vld [vmem:[%s2 + $0x3d8] sm:$0xf]
  %v570 = vld [vmem:[%s2 + $0x3dc] sm:$0xff]
  %v571 = vld [vmem:[%s2 + $0x3e4] sm:$0xff]
  %v572 = vld [vmem:[%s2 + $0x3ec] sm:$0xff]
  %v573 = vld [vmem:[%s2 + $0x3f4] sm:$0xff]
  %v574 = vld [vmem:[%s2 + $0x3fc] sm:$0xff]
  %v575 = vld [vmem:[%s2 + $0x404] sm:$0xff]
  %v576 = vld [vmem:[%s2 + $0x40c] sm:$0xf]
  %v577 = vld [vmem:[%s2 + $0x410] sm:$0xff]
  %v578 = vld [vmem:[%s2 + $0x418] sm:$0xff]
  %v579 = vld [vmem:[%s2 + $0x420] sm:$0xff]
  %v580 = vld [vmem:[%s2 + $0x428] sm:$0xff]
  %v581 = vld [vmem:[%s2 + $0x430] sm:$0xff]
  %v582 = vld [vmem:[%s2 + $0x438] sm:$0xff]
  %v583 = vld [vmem:[%s2 + $0x440] sm:$0xf]
  %v584 = vld [vmem:[%s2 + $0x444] sm:$0xff]
  %v585 = vld [vmem:[%s2 + $0x44c] sm:$0xff]
  %v586 = vld [vmem:[%s2 + $0x454] sm:$0xff]
  %v587 = vld [vmem:[%s2 + $0x45c] sm:$0xff]
  %v588 = vld [vmem:[%s2 + $0x464] sm:$0xff]
  %v589 = vld [vmem:[%s2 + $0x46c] sm:$0xff]
  %v590 = vld [vmem:[%s2 + $0x474] sm:$0xf]
  %v591 = vld [vmem:[%s2 + $0x478] sm:$0xff]
  %v592 = vld [vmem:[%s2 + $0x480] sm:$0xff]
  %v593 = vld [vmem:[%s2 + $0x488] sm:$0xff]
  %v594 = vld [vmem:[%s2 + $0x490] sm:$0xff]
  %v595 = vld [vmem:[%s2 + $0x498] sm:$0xff]
  %v596 = vld [vmem:[%s2 + $0x4a0] sm:$0xff]
  %v597 = vld [vmem:[%s2 + $0x4a8] sm:$0xf]
  %v598 = vld [vmem:[%s2 + $0x4ac] sm:$0xff]
  %v599 = vld [vmem:[%s2 + $0x4b4] sm:$0xff]
  %v600 = vld [vmem:[%s2 + $0x4bc] sm:$0xff]
  %v601 = vld [vmem:[%s2 + $0x4c4] sm:$0xff]
  %v602 = vld [vmem:[%s2 + $0x4cc] sm:$0xff]
  %v603 = vld [vmem:[%s2 + $0x4d4] sm:$0xff]
  %v604 = vld [vmem:[%s2 + $0x4dc] sm:$0xf]
  %v605 = vld [vmem:[%s2 + $0x4e0] sm:$0xff]
  %v606 = vld [vmem:[%s2 + $0x4e8] sm:$0xff]
  %v607 = vld [vmem:[%s2 + $0x4f0] sm:$0xff]
  %v608 = vld [vmem:[%s2 + $0x4f8] sm:$0xff]
  %v609 = vld [vmem:[%s2 + $0x500] sm:$0xff]
  %v610 = vld [vmem:[%s2 + $0x508] sm:$0xff]
  %v611 = vld [vmem:[%s2 + $0x510] sm:$0xf]
  %v612 = vld [vmem:[%s2 + $0x514] sm:$0xff]
  %v613 = vld [vmem:[%s2 + $0x51c] sm:$0xff]
  %v614 = vld [vmem:[%s2 + $0x524] sm:$0xff]
  %v615 = vld [vmem:[%s2 + $0x52c] sm:$0xff]
  %v616 = vld [vmem:[%s2 + $0x534] sm:$0xff]
  %v617 = vld [vmem:[%s2 + $0x53c] sm:$0xff]
  %v618 = vld [vmem:[%s2 + $0x544] sm:$0xf]
  %v619 = vld [vmem:[%s2 + $0x548] sm:$0xff]
  %v620 = vld [vmem:[%s2 + $0x550] sm:$0xff]
  %v621 = vld [vmem:[%s2 + $0x558] sm:$0xff]
  %v622 = vld [vmem:[%s2 + $0x560] sm:$0xff]
  %v623 = vld [vmem:[%s2 + $0x568] sm:$0xff]
  %v624 = vld [vmem:[%s2 + $0x570] sm:$0xff]
  %v625 = vld [vmem:[%s2 + $0x578] sm:$0xf]
  %v626 = vld [vmem:[%s2 + $0x57c] sm:$0xff]
  %v627 = vld [vmem:[%s2 + $0x584] sm:$0xff]
  %v628 = vld [vmem:[%s2 + $0x58c] sm:$0xff]
  %v629 = vld [vmem:[%s2 + $0x594] sm:$0xff]
  %v630 = vld [vmem:[%s2 + $0x59c] sm:$0xff]
  %v631 = vld [vmem:[%s2 + $0x5a4] sm:$0xff]
  %v632 = vld [vmem:[%s2 + $0x5ac] sm:$0xf]
  %v633 = vld [vmem:[%s2 + $0x5b0] sm:$0xff]
  %v634 = vld [vmem:[%s2 + $0x5b8] sm:$0xff]
  %v635 = vld [vmem:[%s2 + $0x5c0] sm:$0xff]
  %v636 = vld [vmem:[%s2 + $0x5c8] sm:$0xff]
  %v637 = vld [vmem:[%s2 + $0x5d0] sm:$0xff]
  %v638 = vld [vmem:[%s2 + $0x5d8] sm:$0xff]
  %v639 = vld [vmem:[%s2 + $0x5e0] sm:$0xf]
  %v640 = vld [vmem:[%s2 + $0x5e4] sm:$0xff]
  %v641 = vld [vmem:[%s2 + $0x5ec] sm:$0xff]
  %v642 = vld [vmem:[%s2 + $0x5f4] sm:$0xff]
  %v643 = vld [vmem:[%s2 + $0x5fc] sm:$0xff]
  %v644 = vld [vmem:[%s2 + $0x604] sm:$0xff]
  %v645 = vld [vmem:[%s2 + $0x60c] sm:$0xff]
  %v646 = vld [vmem:[%s2 + $0x614] sm:$0xf]
  %v647 = vld [vmem:[%s2 + $0x618] sm:$0xff]
  %v648 = vld [vmem:[%s2 + $0x620] sm:$0xff]
  %v649 = vld [vmem:[%s2 + $0x628] sm:$0xff]
  %v650 = vld [vmem:[%s2 + $0x630] sm:$0xff]
  %v651 = vld [vmem:[%s2 + $0x638] sm:$0xff]
  %v652 = vld [vmem:[%s2 + $0x640] sm:$0xff]
  %v653 = vld [vmem:[%s2 + $0x648] sm:$0xf]
  %v654 = vld [vmem:[%s2 + $0x64c] sm:$0xff]
  %v655 = vld [vmem:[%s2 + $0x654] sm:$0xff]
  %v656 = vld [vmem:[%s2 + $0x65c] sm:$0xff]
  %v657 = vld [vmem:[%s2 + $0x664] sm:$0xff]
  %v658 = vld [vmem:[%s2 + $0x66c] sm:$0xff]
  %v659 = vld [vmem:[%s2 + $0x674] sm:$0xff]
  %v660 = vld [vmem:[%s2 + $0x67c] sm:$0xf]
  %v661 = vld [vmem:[%s2 + $0x680] sm:$0xff]
  %v662 = vld [vmem:[%s2 + $0x688] sm:$0xff]
  %v663 = vld [vmem:[%s2 + $0x690] sm:$0xff]
  %v664 = vld [vmem:[%s2 + $0x698] sm:$0xff]
  %v665 = vld [vmem:[%s2 + $0x6a0] sm:$0xff]
  %v666 = vld [vmem:[%s2 + $0x6a8] sm:$0xff]
  %v667 = vld [vmem:[%s2 + $0x6b0] sm:$0xf]
  %v668 = vld [vmem:[%s2 + $0x6b4] sm:$0xff]
  %v669 = vld [vmem:[%s2 + $0x6bc] sm:$0xff]
  %v670 = vld [vmem:[%s2 + $0x6c4] sm:$0xff]
  %v671 = vld [vmem:[%s2 + $0x6cc] sm:$0xff]
  %v672 = vld [vmem:[%s2 + $0x6d4] sm:$0xff]
  %v673 = vld [vmem:[%s2 + $0x6dc] sm:$0xff]
  %v674 = vld [vmem:[%s2 + $0x6e4] sm:$0xf]
  %v675 = vld [vmem:[%s2 + $0x6e8] sm:$0xff]
  %v676 = vld [vmem:[%s2 + $0x6f0] sm:$0xff]
  %v677 = vld [vmem:[%s2 + $0x6f8] sm:$0xff]
  %v678 = vld [vmem:[%s2 + $0x700] sm:$0xff]
  %v679 = vld [vmem:[%s2 + $0x708] sm:$0xff]
  %v680 = vld [vmem:[%s2 + $0x710] sm:$0xff]
  %v681 = vld [vmem:[%s2 + $0x718] sm:$0xf]
  %v682 = vld [vmem:[%s2 + $0x71c] sm:$0xff]
  %v683 = vld [vmem:[%s2 + $0x724] sm:$0xff]
  %v684 = vld [vmem:[%s2 + $0x72c] sm:$0xff]
  %v685 = vld [vmem:[%s2 + $0x734] sm:$0xff]
  %v686 = vld [vmem:[%s2 + $0x73c] sm:$0xff]
  %v687 = vld [vmem:[%s2 + $0x744] sm:$0xff]
  %v688 = vld [vmem:[%s2 + $0x74c] sm:$0xf]
  %v689 = vld [vmem:[%s2 + $0x750] sm:$0xff]
  %v690 = vld [vmem:[%s2 + $0x758] sm:$0xff]
  %v691 = vld [vmem:[%s2 + $0x760] sm:$0xff]
  %v692 = vld [vmem:[%s2 + $0x768] sm:$0xff]
  %v693 = vld [vmem:[%s2 + $0x770] sm:$0xff]
  %v694 = vld [vmem:[%s2 + $0x778] sm:$0xff]
  %v695 = vld [vmem:[%s2 + $0x780] sm:$0xf]
  %v696 = vld [vmem:[%s2 + $0x784] sm:$0xff]
  %v697 = vld [vmem:[%s2 + $0x78c] sm:$0xff]
  %v698 = vld [vmem:[%s2 + $0x794] sm:$0xff]
  %v699 = vld [vmem:[%s2 + $0x79c] sm:$0xff]
  %v700 = vld [vmem:[%s2 + $0x7a4] sm:$0xff]
  %v701 = vld [vmem:[%s2 + $0x7ac] sm:$0xff]
  %v702 = vld [vmem:[%s2 + $0x7b4] sm:$0xf]
  %v703 = vld [vmem:[%s2 + $0x7b8] sm:$0xff]
  %v704 = vld [vmem:[%s2 + $0x7c0] sm:$0xff]
  %v705 = vld [vmem:[%s2 + $0x7c8] sm:$0xff]
  %v706 = vld [vmem:[%s2 + $0x7d0] sm:$0xff]
  %v707 = vld [vmem:[%s2 + $0x7d8] sm:$0xff]
  %v708 = vld [vmem:[%s2 + $0x7e0] sm:$0xff]
  %v709 = vld [vmem:[%s2 + $0x7e8] sm:$0xf]
  %v710 = vld [vmem:[%s2 + $0x7ec] sm:$0xff]
  %v711 = vld [vmem:[%s2 + $0x7f4] sm:$0xff]
  %v712 = vld [vmem:[%s2 + $0x7fc] sm:$0xff]
  %v713 = vld [vmem:[%s2 + $0x804] sm:$0xff]
  %v714 = vld [vmem:[%s2 + $0x80c] sm:$0xff]
  %v715 = vld [vmem:[%s2 + $0x814] sm:$0xff]
  %v716 = vld [vmem:[%s2 + $0x81c] sm:$0xf]
  %v717 = vld [vmem:[%s2 + $0x820] sm:$0xff]
  %v718 = vld [vmem:[%s2 + $0x828] sm:$0xff]
  %v719 = vld [vmem:[%s2 + $0x830] sm:$0xff]
  %v720 = vld [vmem:[%s2 + $0x838] sm:$0xff]
  %v721 = vld [vmem:[%s2 + $0x840] sm:$0xff]
  %v722 = vld [vmem:[%s2 + $0x848] sm:$0xff]
  %v723 = vld [vmem:[%s2 + $0x850] sm:$0xf]
  %v724 = vld [vmem:[%s2 + $0x854] sm:$0xff]
  %v725 = vld [vmem:[%s2 + $0x85c] sm:$0xff]
  %v726 = vld [vmem:[%s2 + $0x864] sm:$0xff]
  %v727 = vld [vmem:[%s2 + $0x86c] sm:$0xff]
  %v728 = vld [vmem:[%s2 + $0x874] sm:$0xff]
  %v729 = vld [vmem:[%s2 + $0x87c] sm:$0xff]
  %v730 = vld [vmem:[%s2 + $0x884] sm:$0xf]
  %v731 = vld [vmem:[%s2 + $0x888] sm:$0xff]
  %v732 = vld [vmem:[%s2 + $0x890] sm:$0xff]
  %v733 = vld [vmem:[%s2 + $0x898] sm:$0xff]
  %v734 = vld [vmem:[%s2 + $0x8a0] sm:$0xff]
  %v735 = vld [vmem:[%s2 + $0x8a8] sm:$0xff]
  %v736 = vld [vmem:[%s2 + $0x8b0] sm:$0xff]
  %v737 = vld [vmem:[%s2 + $0x8b8] sm:$0xf]
  %v738 = vld [vmem:[%s2 + $0x8bc] sm:$0xff]
  %v739 = vld [vmem:[%s2 + $0x8c4] sm:$0xff]
  %v740 = vld [vmem:[%s2 + $0x8cc] sm:$0xff]
  %v741 = vld [vmem:[%s2 + $0x8d4] sm:$0xff]
  %v742 = vld [vmem:[%s2 + $0x8dc] sm:$0xff]
  %v743 = vld [vmem:[%s2 + $0x8e4] sm:$0xff]
  %v744 = vld [vmem:[%s2 + $0x8ec] sm:$0xf]
  %v745 = vld [vmem:[%s2 + $0x8f0] sm:$0xff]
  %v746 = vld [vmem:[%s2 + $0x8f8] sm:$0xff]
  %v747 = vld [vmem:[%s2 + $0x900] sm:$0xff]
  %v748 = vld [vmem:[%s2 + $0x908] sm:$0xff]
  %v749 = vld [vmem:[%s2 + $0x910] sm:$0xff]
  %v750 = vld [vmem:[%s2 + $0x918] sm:$0xff]
  %v751 = vld [vmem:[%s2 + $0x920] sm:$0xf]
  %v752 = vld [vmem:[%s2 + $0x924] sm:$0xff]
  %v753 = vld [vmem:[%s2 + $0x92c] sm:$0xff]
  %v754 = vld [vmem:[%s2 + $0x934] sm:$0xff]
  %v755 = vld [vmem:[%s2 + $0x93c] sm:$0xff]
  %v756 = vld [vmem:[%s2 + $0x944] sm:$0xff]
  %v757 = vld [vmem:[%s2 + $0x94c] sm:$0xff]
  %v758 = vld [vmem:[%s2 + $0x954] sm:$0xf]
  %v759 = vld [vmem:[%s2 + $0x958] sm:$0xff]
  %v760 = vld [vmem:[%s2 + $0x960] sm:$0xff]
  %v761 = vld [vmem:[%s2 + $0x968] sm:$0xff]
  %v762 = vld [vmem:[%s2 + $0x970] sm:$0xff]
  %v763 = vld [vmem:[%s2 + $0x978] sm:$0xff]
  %v764 = vld [vmem:[%s2 + $0x980] sm:$0xff]
  %v765 = vld [vmem:[%s2 + $0x988] sm:$0xf]
  %v766 = vld [vmem:[%s2 + $0x98c] sm:$0x33]
  %v767 = vld [vmem:[%s2 + $0x994] sm:$0x33]
  %v768 = vld [vmem:[%s2 + $0x99c] sm:$0x33]
  %v769 = vld [vmem:[%s2 + $0x9a4] sm:$0x33]
  %v770 = vld [vmem:[%s2 + $0x9ac] sm:$0x33]
  %v771 = vld [vmem:[%s2 + $0x9b4] sm:$0x33]
  %v772 = vld [vmem:[%s2 + $0x9bc] sm:$0x3]
  %v773 = vld [vmem:[%s3] sm:$0xff]
  %v774 = vld [vmem:[%s3 + $0x8] sm:$0xff]
  %v775 = vld [vmem:[%s3 + $0x10] sm:$0xff]
  %v776 = vld [vmem:[%s3 + $0x18] sm:$0xff]
  %v777 = vld [vmem:[%s3 + $0x20] sm:$0xff]
  %v778 = vld [vmem:[%s3 + $0x28] sm:$0xff]
  %v779 = vld [vmem:[%s3 + $0x30] sm:$0xff]
  %v780 = vld [vmem:[%s3 + $0x38] sm:$0xff]
  %v781 = vld [vmem:[%s3 + $0x40] sm:$0xff]
  %v782 = vld [vmem:[%s3 + $0x48] sm:$0xff]
  %v783 = vld [vmem:[%s3 + $0x50] sm:$0xff]
  %v784 = vld [vmem:[%s3 + $0x58] sm:$0xff]
  %v785 = vld [vmem:[%s3 + $0x60] sm:$0xff]
  %v786 = vld [vmem:[%s3 + $0x68] sm:$0xff]
  %v787 = vld [vmem:[%s3 + $0x70] sm:$0xff]
  %v788 = vld [vmem:[%s3 + $0x78] sm:$0xff]
  %790 = vset.pattern.permute.xlu0 0
  %791 = vperm.xlu0 %790, %v773
  %v792 = vpop.permute.xlu0 %791
  %795 = vset.pattern.permute.xlu0 0
  %796 = vperm.xlu0 %795, %v774
  %v797 = vpop.permute.xlu0 %796
  %800 = vset.pattern.permute.xlu0 0
  %801 = vperm.xlu0 %800, %v775
  %v802 = vpop.permute.xlu0 %801
  %805 = vset.pattern.permute.xlu0 0
  %806 = vperm.xlu0 %805, %v776
  %v807 = vpop.permute.xlu0 %806
  %810 = vset.pattern.permute.xlu0 0
  %811 = vperm.xlu0 %810, %v777
  %v812 = vpop.permute.xlu0 %811
  %815 = vset.pattern.permute.xlu0 0
  %816 = vperm.xlu0 %815, %v778
  %v817 = vpop.permute.xlu0 %816
  %820 = vset.pattern.permute.xlu0 0
  %821 = vperm.xlu0 %820, %v779
  %v822 = vpop.permute.xlu0 %821
  %825 = vset.pattern.permute.xlu0 0
  %826 = vperm.xlu0 %825, %v780
  %v827 = vpop.permute.xlu0 %826
  %830 = vset.pattern.permute.xlu0 0
  %831 = vperm.xlu0 %830, %v781
  %v832 = vpop.permute.xlu0 %831
  %835 = vset.pattern.permute.xlu0 0
  %836 = vperm.xlu0 %835, %v782
  %v837 = vpop.permute.xlu0 %836
  %840 = vset.pattern.permute.xlu0 0
  %841 = vperm.xlu0 %840, %v783
  %v842 = vpop.permute.xlu0 %841
  %845 = vset.pattern.permute.xlu0 0
  %846 = vperm.xlu0 %845, %v784
  %v847 = vpop.permute.xlu0 %846
  %850 = vset.pattern.permute.xlu0 0
  %851 = vperm.xlu0 %850, %v785
  %v852 = vpop.permute.xlu0 %851
  %855 = vset.pattern.permute.xlu0 0
  %856 = vperm.xlu0 %855, %v786
  %v857 = vpop.permute.xlu0 %856
  %860 = vset.pattern.permute.xlu0 0
  %861 = vperm.xlu0 %860, %v787
  %v862 = vpop.permute.xlu0 %861
  %865 = vset.pattern.permute.xlu0 0
  %866 = vperm.xlu0 %865, %v788
  %v867 = vpop.permute.xlu0 %866
  %v1205 = vunpack.c.l.b16 %v437
  %v1206 = vunpack.c.h.b16 %v437
  %v1207 = vunpack.c.l.b16 %v438
  %v1208 = vunpack.c.h.b16 %v438
  %v1209 = vunpack.c.l.b16 %v439
  %v1210 = vunpack.c.h.b16 %v439
  %v1211 = vunpack.c.l.b16 %v440
  %v1212 = vunpack.c.h.b16 %v440
  %v1213 = vunpack.c.l.b16 %v441
  %v1214 = vunpack.c.h.b16 %v441
  %v1215 = vunpack.c.l.b16 %v442
  %v1216 = vunpack.c.h.b16 %v442
  %v1217 = vunpack.c.l.b16 %v443
  %v1218 = vunpack.c.l.b16 %v444
  %v1219 = vunpack.c.h.b16 %v444
  %v1220 = vunpack.c.l.b16 %v445
  %v1221 = vunpack.c.h.b16 %v445
  %v1222 = vunpack.c.l.b16 %v446
  %v1223 = vunpack.c.h.b16 %v446
  %v1224 = vunpack.c.l.b16 %v447
  %v1225 = vunpack.c.h.b16 %v447
  %v1226 = vunpack.c.l.b16 %v448
  %v1227 = vunpack.c.h.b16 %v448
  %v1228 = vunpack.c.l.b16 %v449
  %v1229 = vunpack.c.h.b16 %v449
  %v1230 = vunpack.c.l.b16 %v450
  %v1231 = vunpack.c.l.b16 %v451
  %v1232 = vunpack.c.h.b16 %v451
  %v1233 = vunpack.c.l.b16 %v452
  %v1234 = vunpack.c.h.b16 %v452
  %v1235 = vunpack.c.l.b16 %v453
  %v1236 = vunpack.c.h.b16 %v453
  %v1237 = vunpack.c.l.b16 %v454
  %v1238 = vunpack.c.h.b16 %v454
  %v1239 = vunpack.c.l.b16 %v455
  %v1240 = vunpack.c.h.b16 %v455
  %v1241 = vunpack.c.l.b16 %v456
  %v1242 = vunpack.c.h.b16 %v456
  %v1243 = vunpack.c.l.b16 %v457
  %v1244 = vunpack.c.l.b16 %v458
  %v1245 = vunpack.c.h.b16 %v458
  %v1246 = vunpack.c.l.b16 %v459
  %v1247 = vunpack.c.h.b16 %v459
  %v1248 = vunpack.c.l.b16 %v460
  %v1249 = vunpack.c.h.b16 %v460
  %v1250 = vunpack.c.l.b16 %v461
  %v1251 = vunpack.c.h.b16 %v461
  %v1252 = vunpack.c.l.b16 %v462
  %v1253 = vunpack.c.h.b16 %v462
  %v1254 = vunpack.c.l.b16 %v463
  %v1255 = vunpack.c.h.b16 %v463
  %v1256 = vunpack.c.l.b16 %v464
  %v1257 = vunpack.c.l.b16 %v465
  %v1258 = vunpack.c.h.b16 %v465
  %v1259 = vunpack.c.l.b16 %v466
  %v1260 = vunpack.c.h.b16 %v466
  %v1261 = vunpack.c.l.b16 %v467
  %v1262 = vunpack.c.h.b16 %v467
  %v1263 = vunpack.c.l.b16 %v468
  %v1264 = vunpack.c.h.b16 %v468
  %v1265 = vunpack.c.l.b16 %v469
  %v1266 = vunpack.c.h.b16 %v469
  %v1267 = vunpack.c.l.b16 %v470
  %v1268 = vunpack.c.h.b16 %v470
  %v1269 = vunpack.c.l.b16 %v471
  %v1270 = vunpack.c.l.b16 %v472
  %v1271 = vunpack.c.h.b16 %v472
  %v1272 = vunpack.c.l.b16 %v473
  %v1273 = vunpack.c.h.b16 %v473
  %v1274 = vunpack.c.l.b16 %v474
  %v1275 = vunpack.c.h.b16 %v474
  %v1276 = vunpack.c.l.b16 %v475
  %v1277 = vunpack.c.h.b16 %v475
  %v1278 = vunpack.c.l.b16 %v476
  %v1279 = vunpack.c.h.b16 %v476
  %v1280 = vunpack.c.l.b16 %v477
  %v1281 = vunpack.c.h.b16 %v477
  %v1282 = vunpack.c.l.b16 %v478
  %v1283 = vunpack.c.l.b16 %v479
  %v1284 = vunpack.c.h.b16 %v479
  %v1285 = vunpack.c.l.b16 %v480
  %v1286 = vunpack.c.h.b16 %v480
  %v1287 = vunpack.c.l.b16 %v481
  %v1288 = vunpack.c.h.b16 %v481
  %v1289 = vunpack.c.l.b16 %v482
  %v1290 = vunpack.c.h.b16 %v482
  %v1291 = vunpack.c.l.b16 %v483
  %v1292 = vunpack.c.h.b16 %v483
  %v1293 = vunpack.c.l.b16 %v484
  %v1294 = vunpack.c.h.b16 %v484
  %v1295 = vunpack.c.l.b16 %v485
  %v1296 = vunpack.c.l.b16 %v486
  %v1297 = vunpack.c.h.b16 %v486
  %v1298 = vunpack.c.l.b16 %v487
  %v1299 = vunpack.c.h.b16 %v487
  %v1300 = vunpack.c.l.b16 %v488
  %v1301 = vunpack.c.h.b16 %v488
  %v1302 = vunpack.c.l.b16 %v489
  %v1303 = vunpack.c.h.b16 %v489
  %v1304 = vunpack.c.l.b16 %v490
  %v1305 = vunpack.c.h.b16 %v490
  %v1306 = vunpack.c.l.b16 %v491
  %v1307 = vunpack.c.h.b16 %v491
  %v1308 = vunpack.c.l.b16 %v492
  %v1309 = vunpack.c.l.b16 %v493
  %v1310 = vunpack.c.h.b16 %v493
  %v1311 = vunpack.c.l.b16 %v494
  %v1312 = vunpack.c.h.b16 %v494
  %v1313 = vunpack.c.l.b16 %v495
  %v1314 = vunpack.c.h.b16 %v495
  %v1315 = vunpack.c.l.b16 %v496
  %v1316 = vunpack.c.h.b16 %v496
  %v1317 = vunpack.c.l.b16 %v497
  %v1318 = vunpack.c.h.b16 %v497
  %v1319 = vunpack.c.l.b16 %v498
  %v1320 = vunpack.c.h.b16 %v498
  %v1321 = vunpack.c.l.b16 %v499
  %v1322 = vunpack.c.l.b16 %v500
  %v1323 = vunpack.c.h.b16 %v500
  %v1324 = vunpack.c.l.b16 %v501
  %v1325 = vunpack.c.h.b16 %v501
  %v1326 = vunpack.c.l.b16 %v502
  %v1327 = vunpack.c.h.b16 %v502
  %v1328 = vunpack.c.l.b16 %v503
  %v1329 = vunpack.c.h.b16 %v503
  %v1330 = vunpack.c.l.b16 %v504
  %v1331 = vunpack.c.h.b16 %v504
  %v1332 = vunpack.c.l.b16 %v505
  %v1333 = vunpack.c.h.b16 %v505
  %v1334 = vunpack.c.l.b16 %v506
  %v1335 = vunpack.c.l.b16 %v507
  %v1336 = vunpack.c.h.b16 %v507
  %v1337 = vunpack.c.l.b16 %v508
  %v1338 = vunpack.c.h.b16 %v508
  %v1339 = vunpack.c.l.b16 %v509
  %v1340 = vunpack.c.h.b16 %v509
  %v1341 = vunpack.c.l.b16 %v510
  %v1342 = vunpack.c.h.b16 %v510
  %v1343 = vunpack.c.l.b16 %v511
  %v1344 = vunpack.c.h.b16 %v511
  %v1345 = vunpack.c.l.b16 %v512
  %v1346 = vunpack.c.h.b16 %v512
  %v1347 = vunpack.c.l.b16 %v513
  %v1348 = vunpack.c.l.b16 %v514
  %v1349 = vunpack.c.h.b16 %v514
  %v1350 = vunpack.c.l.b16 %v515
  %v1351 = vunpack.c.h.b16 %v515
  %v1352 = vunpack.c.l.b16 %v516
  %v1353 = vunpack.c.h.b16 %v516
  %v1354 = vunpack.c.l.b16 %v517
  %v1355 = vunpack.c.h.b16 %v517
  %v1356 = vunpack.c.l.b16 %v518
  %v1357 = vunpack.c.h.b16 %v518
  %v1358 = vunpack.c.l.b16 %v519
  %v1359 = vunpack.c.h.b16 %v519
  %v1360 = vunpack.c.l.b16 %v520
  %v1361 = vunpack.c.l.b16 %v521
  %v1362 = vunpack.c.h.b16 %v521
  %v1363 = vunpack.c.l.b16 %v522
  %v1364 = vunpack.c.h.b16 %v522
  %v1365 = vunpack.c.l.b16 %v523
  %v1366 = vunpack.c.h.b16 %v523
  %v1367 = vunpack.c.l.b16 %v524
  %v1368 = vunpack.c.h.b16 %v524
  %v1369 = vunpack.c.l.b16 %v525
  %v1370 = vunpack.c.h.b16 %v525
  %v1371 = vunpack.c.l.b16 %v526
  %v1372 = vunpack.c.h.b16 %v526
  %v1373 = vunpack.c.l.b16 %v527
  %v1374 = vunpack.c.l.b16 %v528
  %v1375 = vunpack.c.h.b16 %v528
  %v1376 = vunpack.c.l.b16 %v529
  %v1377 = vunpack.c.h.b16 %v529
  %v1378 = vunpack.c.l.b16 %v530
  %v1379 = vunpack.c.h.b16 %v530
  %v1380 = vunpack.c.l.b16 %v531
  %v1381 = vunpack.c.h.b16 %v531
  %v1382 = vunpack.c.l.b16 %v532
  %v1383 = vunpack.c.h.b16 %v532
  %v1384 = vunpack.c.l.b16 %v533
  %v1385 = vunpack.c.h.b16 %v533
  %v1386 = vunpack.c.l.b16 %v534
  %v1387 = vunpack.c.l.b16 %v535
  %v1388 = vunpack.c.h.b16 %v535
  %v1389 = vunpack.c.l.b16 %v536
  %v1390 = vunpack.c.h.b16 %v536
  %v1391 = vunpack.c.l.b16 %v537
  %v1392 = vunpack.c.h.b16 %v537
  %v1393 = vunpack.c.l.b16 %v538
  %v1394 = vunpack.c.h.b16 %v538
  %v1395 = vunpack.c.l.b16 %v539
  %v1396 = vunpack.c.h.b16 %v539
  %v1397 = vunpack.c.l.b16 %v540
  %v1398 = vunpack.c.h.b16 %v540
  %v1399 = vunpack.c.l.b16 %v541
  %v1400 = vunpack.c.l.b16 %v542
  %v1401 = vunpack.c.h.b16 %v542
  %v1402 = vunpack.c.l.b16 %v543
  %v1403 = vunpack.c.h.b16 %v543
  %v1404 = vunpack.c.l.b16 %v544
  %v1405 = vunpack.c.h.b16 %v544
  %v1406 = vunpack.c.l.b16 %v545
  %v1407 = vunpack.c.h.b16 %v545
  %v1408 = vunpack.c.l.b16 %v546
  %v1409 = vunpack.c.h.b16 %v546
  %v1410 = vunpack.c.l.b16 %v547
  %v1411 = vunpack.c.h.b16 %v547
  %v1412 = vunpack.c.l.b16 %v548
  %v1413 = vunpack.c.l.b16 %v549
  %v1414 = vunpack.c.h.b16 %v549
  %v1415 = vunpack.c.l.b16 %v550
  %v1416 = vunpack.c.h.b16 %v550
  %v1417 = vunpack.c.l.b16 %v551
  %v1418 = vunpack.c.h.b16 %v551
  %v1419 = vunpack.c.l.b16 %v552
  %v1420 = vunpack.c.h.b16 %v552
  %v1421 = vunpack.c.l.b16 %v553
  %v1422 = vunpack.c.h.b16 %v553
  %v1423 = vunpack.c.l.b16 %v554
  %v1424 = vunpack.c.h.b16 %v554
  %v1425 = vunpack.c.l.b16 %v555
  %v1426 = vunpack.c.l.b16 %v556
  %v1427 = vunpack.c.h.b16 %v556
  %v1428 = vunpack.c.l.b16 %v557
  %v1429 = vunpack.c.h.b16 %v557
  %v1430 = vunpack.c.l.b16 %v558
  %v1431 = vunpack.c.h.b16 %v558
  %v1432 = vunpack.c.l.b16 %v559
  %v1433 = vunpack.c.h.b16 %v559
  %v1434 = vunpack.c.l.b16 %v560
  %v1435 = vunpack.c.h.b16 %v560
  %v1436 = vunpack.c.l.b16 %v561
  %v1437 = vunpack.c.h.b16 %v561
  %v1438 = vunpack.c.l.b16 %v562
  %v1439 = vunpack.c.l.b16 %v563
  %v1440 = vunpack.c.h.b16 %v563
  %v1441 = vunpack.c.l.b16 %v564
  %v1442 = vunpack.c.h.b16 %v564
  %v1443 = vunpack.c.l.b16 %v565
  %v1444 = vunpack.c.h.b16 %v565
  %v1445 = vunpack.c.l.b16 %v566
  %v1446 = vunpack.c.h.b16 %v566
  %v1447 = vunpack.c.l.b16 %v567
  %v1448 = vunpack.c.h.b16 %v567
  %v1449 = vunpack.c.l.b16 %v568
  %v1450 = vunpack.c.h.b16 %v568
  %v1451 = vunpack.c.l.b16 %v569
  %v1452 = vunpack.c.l.b16 %v570
  %v1453 = vunpack.c.h.b16 %v570
  %v1454 = vunpack.c.l.b16 %v571
  %v1455 = vunpack.c.h.b16 %v571
  %v1456 = vunpack.c.l.b16 %v572
  %v1457 = vunpack.c.h.b16 %v572
  %v1458 = vunpack.c.l.b16 %v573
  %v1459 = vunpack.c.h.b16 %v573
  %v1460 = vunpack.c.l.b16 %v574
  %v1461 = vunpack.c.h.b16 %v574
  %v1462 = vunpack.c.l.b16 %v575
  %v1463 = vunpack.c.h.b16 %v575
  %v1464 = vunpack.c.l.b16 %v576
  %v1465 = vunpack.c.l.b16 %v577
  %v1466 = vunpack.c.h.b16 %v577
  %v1467 = vunpack.c.l.b16 %v578
  %v1468 = vunpack.c.h.b16 %v578
  %v1469 = vunpack.c.l.b16 %v579
  %v1470 = vunpack.c.h.b16 %v579
  %v1471 = vunpack.c.l.b16 %v580
  %v1472 = vunpack.c.h.b16 %v580
  %v1473 = vunpack.c.l.b16 %v581
  %v1474 = vunpack.c.h.b16 %v581
  %v1475 = vunpack.c.l.b16 %v582
  %v1476 = vunpack.c.h.b16 %v582
  %v1477 = vunpack.c.l.b16 %v583
  %v1478 = vunpack.c.l.b16 %v584
  %v1479 = vunpack.c.h.b16 %v584
  %v1480 = vunpack.c.l.b16 %v585
  %v1481 = vunpack.c.h.b16 %v585
  %v1482 = vunpack.c.l.b16 %v586
  %v1483 = vunpack.c.h.b16 %v586
  %v1484 = vunpack.c.l.b16 %v587
  %v1485 = vunpack.c.h.b16 %v587
  %v1486 = vunpack.c.l.b16 %v588
  %v1487 = vunpack.c.h.b16 %v588
  %v1488 = vunpack.c.l.b16 %v589
  %v1489 = vunpack.c.h.b16 %v589
  %v1490 = vunpack.c.l.b16 %v590
  %v1491 = vunpack.c.l.b16 %v591
  %v1492 = vunpack.c.h.b16 %v591
  %v1493 = vunpack.c.l.b16 %v592
  %v1494 = vunpack.c.h.b16 %v592
  %v1495 = vunpack.c.l.b16 %v593
  %v1496 = vunpack.c.h.b16 %v593
  %v1497 = vunpack.c.l.b16 %v594
  %v1498 = vunpack.c.h.b16 %v594
  %v1499 = vunpack.c.l.b16 %v595
  %v1500 = vunpack.c.h.b16 %v595
  %v1501 = vunpack.c.l.b16 %v596
  %v1502 = vunpack.c.h.b16 %v596
  %v1503 = vunpack.c.l.b16 %v597
  %v1504 = vunpack.c.l.b16 %v598
  %v1505 = vunpack.c.h.b16 %v598
  %v1506 = vunpack.c.l.b16 %v599
  %v1507 = vunpack.c.h.b16 %v599
  %v1508 = vunpack.c.l.b16 %v600
  %v1509 = vunpack.c.h.b16 %v600
  %v1510 = vunpack.c.l.b16 %v601
  %v1511 = vunpack.c.h.b16 %v601
  %v1512 = vunpack.c.l.b16 %v602
  %v1513 = vunpack.c.h.b16 %v602
  %v1514 = vunpack.c.l.b16 %v603
  %v1515 = vunpack.c.h.b16 %v603
  %v1516 = vunpack.c.l.b16 %v604
  %v1517 = vunpack.c.l.b16 %v605
  %v1518 = vunpack.c.h.b16 %v605
  %v1519 = vunpack.c.l.b16 %v606
  %v1520 = vunpack.c.h.b16 %v606
  %v1521 = vunpack.c.l.b16 %v607
  %v1522 = vunpack.c.h.b16 %v607
  %v1523 = vunpack.c.l.b16 %v608
  %v1524 = vunpack.c.h.b16 %v608
  %v1525 = vunpack.c.l.b16 %v609
  %v1526 = vunpack.c.h.b16 %v609
  %v1527 = vunpack.c.l.b16 %v610
  %v1528 = vunpack.c.h.b16 %v610
  %v1529 = vunpack.c.l.b16 %v611
  %v1530 = vunpack.c.l.b16 %v612
  %v1531 = vunpack.c.h.b16 %v612
  %v1532 = vunpack.c.l.b16 %v613
  %v1533 = vunpack.c.h.b16 %v613
  %v1534 = vunpack.c.l.b16 %v614
  %v1535 = vunpack.c.h.b16 %v614
  %v1536 = vunpack.c.l.b16 %v615
  %v1537 = vunpack.c.h.b16 %v615
  %v1538 = vunpack.c.l.b16 %v616
  %v1539 = vunpack.c.h.b16 %v616
  %v1540 = vunpack.c.l.b16 %v617
  %v1541 = vunpack.c.h.b16 %v617
  %v1542 = vunpack.c.l.b16 %v618
  %v1543 = vunpack.c.l.b16 %v619
  %v1544 = vunpack.c.h.b16 %v619
  %v1545 = vunpack.c.l.b16 %v620
  %v1546 = vunpack.c.h.b16 %v620
  %v1547 = vunpack.c.l.b16 %v621
  %v1548 = vunpack.c.h.b16 %v621
  %v1549 = vunpack.c.l.b16 %v622
  %v1550 = vunpack.c.h.b16 %v622
  %v1551 = vunpack.c.l.b16 %v623
  %v1552 = vunpack.c.h.b16 %v623
  %v1553 = vunpack.c.l.b16 %v624
  %v1554 = vunpack.c.h.b16 %v624
  %v1555 = vunpack.c.l.b16 %v625
  %v1556 = vunpack.c.l.b16 %v626
  %v1557 = vunpack.c.h.b16 %v626
  %v1558 = vunpack.c.l.b16 %v627
  %v1559 = vunpack.c.h.b16 %v627
  %v1560 = vunpack.c.l.b16 %v628
  %v1561 = vunpack.c.h.b16 %v628
  %v1562 = vunpack.c.l.b16 %v629
  %v1563 = vunpack.c.h.b16 %v629
  %v1564 = vunpack.c.l.b16 %v630
  %v1565 = vunpack.c.h.b16 %v630
  %v1566 = vunpack.c.l.b16 %v631
  %v1567 = vunpack.c.h.b16 %v631
  %v1568 = vunpack.c.l.b16 %v632
  %v1569 = vunpack.c.l.b16 %v633
  %v1570 = vunpack.c.h.b16 %v633
  %v1571 = vunpack.c.l.b16 %v634
  %v1572 = vunpack.c.h.b16 %v634
  %v1573 = vunpack.c.l.b16 %v635
  %v1574 = vunpack.c.h.b16 %v635
  %v1575 = vunpack.c.l.b16 %v636
  %v1576 = vunpack.c.h.b16 %v636
  %v1577 = vunpack.c.l.b16 %v637
  %v1578 = vunpack.c.h.b16 %v637
  %v1579 = vunpack.c.l.b16 %v638
  %v1580 = vunpack.c.h.b16 %v638
  %v1581 = vunpack.c.l.b16 %v639
  %v1582 = vunpack.c.l.b16 %v640
  %v1583 = vunpack.c.h.b16 %v640
  %v1584 = vunpack.c.l.b16 %v641
  %v1585 = vunpack.c.h.b16 %v641
  %v1586 = vunpack.c.l.b16 %v642
  %v1587 = vunpack.c.h.b16 %v642
  %v1588 = vunpack.c.l.b16 %v643
  %v1589 = vunpack.c.h.b16 %v643
  %v1590 = vunpack.c.l.b16 %v644
  %v1591 = vunpack.c.h.b16 %v644
  %v1592 = vunpack.c.l.b16 %v645
  %v1593 = vunpack.c.h.b16 %v645
  %v1594 = vunpack.c.l.b16 %v646
  %v1595 = vunpack.c.l.b16 %v647
  %v1596 = vunpack.c.h.b16 %v647
  %v1597 = vunpack.c.l.b16 %v648
  %v1598 = vunpack.c.h.b16 %v648
  %v1599 = vunpack.c.l.b16 %v649
  %v1600 = vunpack.c.h.b16 %v649
  %v1601 = vunpack.c.l.b16 %v650
  %v1602 = vunpack.c.h.b16 %v650
  %v1603 = vunpack.c.l.b16 %v651
  %v1604 = vunpack.c.h.b16 %v651
  %v1605 = vunpack.c.l.b16 %v652
  %v1606 = vunpack.c.h.b16 %v652
  %v1607 = vunpack.c.l.b16 %v653
  %v1608 = vunpack.c.l.b16 %v654
  %v1609 = vunpack.c.h.b16 %v654
  %v1610 = vunpack.c.l.b16 %v655
  %v1611 = vunpack.c.h.b16 %v655
  %v1612 = vunpack.c.l.b16 %v656
  %v1613 = vunpack.c.h.b16 %v656
  %v1614 = vunpack.c.l.b16 %v657
  %v1615 = vunpack.c.h.b16 %v657
  %v1616 = vunpack.c.l.b16 %v658
  %v1617 = vunpack.c.h.b16 %v658
  %v1618 = vunpack.c.l.b16 %v659
  %v1619 = vunpack.c.h.b16 %v659
  %v1620 = vunpack.c.l.b16 %v660
  %v1621 = vunpack.c.l.b16 %v661
  %v1622 = vunpack.c.h.b16 %v661
  %v1623 = vunpack.c.l.b16 %v662
  %v1624 = vunpack.c.h.b16 %v662
  %v1625 = vunpack.c.l.b16 %v663
  %v1626 = vunpack.c.h.b16 %v663
  %v1627 = vunpack.c.l.b16 %v664
  %v1628 = vunpack.c.h.b16 %v664
  %v1629 = vunpack.c.l.b16 %v665
  %v1630 = vunpack.c.h.b16 %v665
  %v1631 = vunpack.c.l.b16 %v666
  %v1632 = vunpack.c.h.b16 %v666
  %v1633 = vunpack.c.l.b16 %v667
  %v1634 = vunpack.c.l.b16 %v668
  %v1635 = vunpack.c.h.b16 %v668
  %v1636 = vunpack.c.l.b16 %v669
  %v1637 = vunpack.c.h.b16 %v669
  %v1638 = vunpack.c.l.b16 %v670
  %v1639 = vunpack.c.h.b16 %v670
  %v1640 = vunpack.c.l.b16 %v671
  %v1641 = vunpack.c.h.b16 %v671
  %v1642 = vunpack.c.l.b16 %v672
  %v1643 = vunpack.c.h.b16 %v672
  %v1644 = vunpack.c.l.b16 %v673
  %v1645 = vunpack.c.h.b16 %v673
  %v1646 = vunpack.c.l.b16 %v674
  %v1647 = vunpack.c.l.b16 %v675
  %v1648 = vunpack.c.h.b16 %v675
  %v1649 = vunpack.c.l.b16 %v676
  %v1650 = vunpack.c.h.b16 %v676
  %v1651 = vunpack.c.l.b16 %v677
  %v1652 = vunpack.c.h.b16 %v677
  %v1653 = vunpack.c.l.b16 %v678
  %v1654 = vunpack.c.h.b16 %v678
  %v1655 = vunpack.c.l.b16 %v679
  %v1656 = vunpack.c.h.b16 %v679
  %v1657 = vunpack.c.l.b16 %v680
  %v1658 = vunpack.c.h.b16 %v680
  %v1659 = vunpack.c.l.b16 %v681
  %v1660 = vunpack.c.l.b16 %v682
  %v1661 = vunpack.c.h.b16 %v682
  %v1662 = vunpack.c.l.b16 %v683
  %v1663 = vunpack.c.h.b16 %v683
  %v1664 = vunpack.c.l.b16 %v684
  %v1665 = vunpack.c.h.b16 %v684
  %v1666 = vunpack.c.l.b16 %v685
  %v1667 = vunpack.c.h.b16 %v685
  %v1668 = vunpack.c.l.b16 %v686
  %v1669 = vunpack.c.h.b16 %v686
  %v1670 = vunpack.c.l.b16 %v687
  %v1671 = vunpack.c.h.b16 %v687
  %v1672 = vunpack.c.l.b16 %v688
  %v1673 = vunpack.c.l.b16 %v689
  %v1674 = vunpack.c.h.b16 %v689
  %v1675 = vunpack.c.l.b16 %v690
  %v1676 = vunpack.c.h.b16 %v690
  %v1677 = vunpack.c.l.b16 %v691
  %v1678 = vunpack.c.h.b16 %v691
  %v1679 = vunpack.c.l.b16 %v692
  %v1680 = vunpack.c.h.b16 %v692
  %v1681 = vunpack.c.l.b16 %v693
  %v1682 = vunpack.c.h.b16 %v693
  %v1683 = vunpack.c.l.b16 %v694
  %v1684 = vunpack.c.h.b16 %v694
  %v1685 = vunpack.c.l.b16 %v695
  %v1686 = vunpack.c.l.b16 %v696
  %v1687 = vunpack.c.h.b16 %v696
  %v1688 = vunpack.c.l.b16 %v697
  %v1689 = vunpack.c.h.b16 %v697
  %v1690 = vunpack.c.l.b16 %v698
  %v1691 = vunpack.c.h.b16 %v698
  %v1692 = vunpack.c.l.b16 %v699
  %v1693 = vunpack.c.h.b16 %v699
  %v1694 = vunpack.c.l.b16 %v700
  %v1695 = vunpack.c.h.b16 %v700
  %v1696 = vunpack.c.l.b16 %v701
  %v1697 = vunpack.c.h.b16 %v701
  %v1698 = vunpack.c.l.b16 %v702
  %v1699 = vunpack.c.l.b16 %v703
  %v1700 = vunpack.c.h.b16 %v703
  %v1701 = vunpack.c.l.b16 %v704
  %v1702 = vunpack.c.h.b16 %v704
  %v1703 = vunpack.c.l.b16 %v705
  %v1704 = vunpack.c.h.b16 %v705
  %v1705 = vunpack.c.l.b16 %v706
  %v1706 = vunpack.c.h.b16 %v706
  %v1707 = vunpack.c.l.b16 %v707
  %v1708 = vunpack.c.h.b16 %v707
  %v1709 = vunpack.c.l.b16 %v708
  %v1710 = vunpack.c.h.b16 %v708
  %v1711 = vunpack.c.l.b16 %v709
  %v1712 = vunpack.c.l.b16 %v710
  %v1713 = vunpack.c.h.b16 %v710
  %v1714 = vunpack.c.l.b16 %v711
  %v1715 = vunpack.c.h.b16 %v711
  %v1716 = vunpack.c.l.b16 %v712
  %v1717 = vunpack.c.h.b16 %v712
  %v1718 = vunpack.c.l.b16 %v713
  %v1719 = vunpack.c.h.b16 %v713
  %v1720 = vunpack.c.l.b16 %v714
  %v1721 = vunpack.c.h.b16 %v714
  %v1722 = vunpack.c.l.b16 %v715
  %v1723 = vunpack.c.h.b16 %v715
  %v1724 = vunpack.c.l.b16 %v716
  %v1725 = vunpack.c.l.b16 %v717
  %v1726 = vunpack.c.h.b16 %v717
  %v1727 = vunpack.c.l.b16 %v718
  %v1728 = vunpack.c.h.b16 %v718
  %v1729 = vunpack.c.l.b16 %v719
  %v1730 = vunpack.c.h.b16 %v719
  %v1731 = vunpack.c.l.b16 %v720
  %v1732 = vunpack.c.h.b16 %v720
  %v1733 = vunpack.c.l.b16 %v721
  %v1734 = vunpack.c.h.b16 %v721
  %v1735 = vunpack.c.l.b16 %v722
  %v1736 = vunpack.c.h.b16 %v722
  %v1737 = vunpack.c.l.b16 %v723
  %v1738 = vunpack.c.l.b16 %v724
  %v1739 = vunpack.c.h.b16 %v724
  %v1740 = vunpack.c.l.b16 %v725
  %v1741 = vunpack.c.h.b16 %v725
  %v1742 = vunpack.c.l.b16 %v726
  %v1743 = vunpack.c.h.b16 %v726
  %v1744 = vunpack.c.l.b16 %v727
  %v1745 = vunpack.c.h.b16 %v727
  %v1746 = vunpack.c.l.b16 %v728
  %v1747 = vunpack.c.h.b16 %v728
  %v1748 = vunpack.c.l.b16 %v729
  %v1749 = vunpack.c.h.b16 %v729
  %v1750 = vunpack.c.l.b16 %v730
  %v1751 = vunpack.c.l.b16 %v731
  %v1752 = vunpack.c.h.b16 %v731
  %v1753 = vunpack.c.l.b16 %v732
  %v1754 = vunpack.c.h.b16 %v732
  %v1755 = vunpack.c.l.b16 %v733
  %v1756 = vunpack.c.h.b16 %v733
  %v1757 = vunpack.c.l.b16 %v734
  %v1758 = vunpack.c.h.b16 %v734
  %v1759 = vunpack.c.l.b16 %v735
  %v1760 = vunpack.c.h.b16 %v735
  %v1761 = vunpack.c.l.b16 %v736
  %v1762 = vunpack.c.h.b16 %v736
  %v1763 = vunpack.c.l.b16 %v737
  %v1764 = vunpack.c.l.b16 %v738
  %v1765 = vunpack.c.h.b16 %v738
  %v1766 = vunpack.c.l.b16 %v739
  %v1767 = vunpack.c.h.b16 %v739
  %v1768 = vunpack.c.l.b16 %v740
  %v1769 = vunpack.c.h.b16 %v740
  %v1770 = vunpack.c.l.b16 %v741
  %v1771 = vunpack.c.h.b16 %v741
  %v1772 = vunpack.c.l.b16 %v742
  %v1773 = vunpack.c.h.b16 %v742
  %v1774 = vunpack.c.l.b16 %v743
  %v1775 = vunpack.c.h.b16 %v743
  %v1776 = vunpack.c.l.b16 %v744
  %v1777 = vunpack.c.l.b16 %v745
  %v1778 = vunpack.c.h.b16 %v745
  %v1779 = vunpack.c.l.b16 %v746
  %v1780 = vunpack.c.h.b16 %v746
  %v1781 = vunpack.c.l.b16 %v747
  %v1782 = vunpack.c.h.b16 %v747
  %v1783 = vunpack.c.l.b16 %v748
  %v1784 = vunpack.c.h.b16 %v748
  %v1785 = vunpack.c.l.b16 %v749
  %v1786 = vunpack.c.h.b16 %v749
  %v1787 = vunpack.c.l.b16 %v750
  %v1788 = vunpack.c.h.b16 %v750
  %v1789 = vunpack.c.l.b16 %v751
  %v1790 = vunpack.c.l.b16 %v752
  %v1791 = vunpack.c.h.b16 %v752
  %v1792 = vunpack.c.l.b16 %v753
  %v1793 = vunpack.c.h.b16 %v753
  %v1794 = vunpack.c.l.b16 %v754
  %v1795 = vunpack.c.h.b16 %v754
  %v1796 = vunpack.c.l.b16 %v755
  %v1797 = vunpack.c.h.b16 %v755
  %v1798 = vunpack.c.l.b16 %v756
  %v1799 = vunpack.c.h.b16 %v756
  %v1800 = vunpack.c.l.b16 %v757
  %v1801 = vunpack.c.h.b16 %v757
  %v1802 = vunpack.c.l.b16 %v758
  %v1803 = vunpack.c.l.b16 %v759
  %v1804 = vunpack.c.h.b16 %v759
  %v1805 = vunpack.c.l.b16 %v760
  %v1806 = vunpack.c.h.b16 %v760
  %v1807 = vunpack.c.l.b16 %v761
  %v1808 = vunpack.c.h.b16 %v761
  %v1809 = vunpack.c.l.b16 %v762
  %v1810 = vunpack.c.h.b16 %v762
  %v1811 = vunpack.c.l.b16 %v763
  %v1812 = vunpack.c.h.b16 %v763
  %v1813 = vunpack.c.l.b16 %v764
  %v1814 = vunpack.c.h.b16 %v764
  %v1815 = vunpack.c.l.b16 %v765
  %v1816 = vunpack.c.l.b16 %v766
  %v1817 = vunpack.c.h.b16 %v766
  %v1818 = vunpack.c.l.b16 %v767
  %v1819 = vunpack.c.h.b16 %v767
  %v1820 = vunpack.c.l.b16 %v768
  %v1821 = vunpack.c.h.b16 %v768
  %v1822 = vunpack.c.l.b16 %v769
  %v1823 = vunpack.c.h.b16 %v769
  %v1824 = vunpack.c.l.b16 %v770
  %v1825 = vunpack.c.h.b16 %v770
  %v1826 = vunpack.c.l.b16 %v771
  %v1827 = vunpack.c.h.b16 %v771
  %v1828 = vunpack.c.l.b16 %v772
  %v1829 = vpack.c.b16 %v1218, %v1205
  %v1830 = vpack.c.b16 %v1219, %v1206
  %v1831 = vpack.c.b16 %v1220, %v1207
  %v1832 = vpack.c.b16 %v1221, %v1208
  %v1833 = vpack.c.b16 %v1222, %v1209
  %v1834 = vpack.c.b16 %v1223, %v1210
  %v1835 = vpack.c.b16 %v1224, %v1211
  %v1836 = vpack.c.b16 %v1225, %v1212
  %v1837 = vpack.c.b16 %v1226, %v1213
  %v1838 = vpack.c.b16 %v1227, %v1214
  %v1839 = vpack.c.b16 %v1228, %v1215
  %v1840 = vpack.c.b16 %v1229, %v1216
  %v1841 = vpack.c.b16 %v1230, %v1217
  %v1842 = vpack.c.b16 %v1244, %v1231
  %v1843 = vpack.c.b16 %v1245, %v1232
  %v1844 = vpack.c.b16 %v1246, %v1233
  %v1845 = vpack.c.b16 %v1247, %v1234
  %v1846 = vpack.c.b16 %v1248, %v1235
  %v1847 = vpack.c.b16 %v1249, %v1236
  %v1848 = vpack.c.b16 %v1250, %v1237
  %v1849 = vpack.c.b16 %v1251, %v1238
  %v1850 = vpack.c.b16 %v1252, %v1239
  %v1851 = vpack.c.b16 %v1253, %v1240
  %v1852 = vpack.c.b16 %v1254, %v1241
  %v1853 = vpack.c.b16 %v1255, %v1242
  %v1854 = vpack.c.b16 %v1256, %v1243
  %v1855 = vpack.c.b16 %v1270, %v1257
  %v1856 = vpack.c.b16 %v1271, %v1258
  %v1857 = vpack.c.b16 %v1272, %v1259
  %v1858 = vpack.c.b16 %v1273, %v1260
  %v1859 = vpack.c.b16 %v1274, %v1261
  %v1860 = vpack.c.b16 %v1275, %v1262
  %v1861 = vpack.c.b16 %v1276, %v1263
  %v1862 = vpack.c.b16 %v1277, %v1264
  %v1863 = vpack.c.b16 %v1278, %v1265
  %v1864 = vpack.c.b16 %v1279, %v1266
  %v1865 = vpack.c.b16 %v1280, %v1267
  %v1866 = vpack.c.b16 %v1281, %v1268
  %v1867 = vpack.c.b16 %v1282, %v1269
  %v1868 = vpack.c.b16 %v1296, %v1283
  %v1869 = vpack.c.b16 %v1297, %v1284
  %v1870 = vpack.c.b16 %v1298, %v1285
  %v1871 = vpack.c.b16 %v1299, %v1286
  %v1872 = vpack.c.b16 %v1300, %v1287
  %v1873 = vpack.c.b16 %v1301, %v1288
  %v1874 = vpack.c.b16 %v1302, %v1289
  %v1875 = vpack.c.b16 %v1303, %v1290
  %v1876 = vpack.c.b16 %v1304, %v1291
  %v1877 = vpack.c.b16 %v1305, %v1292
  %v1878 = vpack.c.b16 %v1306, %v1293
  %v1879 = vpack.c.b16 %v1307, %v1294
  %v1880 = vpack.c.b16 %v1308, %v1295
  %v1881 = vpack.c.b16 %v1322, %v1309
  %v1882 = vpack.c.b16 %v1323, %v1310
  %v1883 = vpack.c.b16 %v1324, %v1311
  %v1884 = vpack.c.b16 %v1325, %v1312
  %v1885 = vpack.c.b16 %v1326, %v1313
  %v1886 = vpack.c.b16 %v1327, %v1314
  %v1887 = vpack.c.b16 %v1328, %v1315
  %v1888 = vpack.c.b16 %v1329, %v1316
  %v1889 = vpack.c.b16 %v1330, %v1317
  %v1890 = vpack.c.b16 %v1331, %v1318
  %v1891 = vpack.c.b16 %v1332, %v1319
  %v1892 = vpack.c.b16 %v1333, %v1320
  %v1893 = vpack.c.b16 %v1334, %v1321
  %v1894 = vpack.c.b16 %v1348, %v1335
  %v1895 = vpack.c.b16 %v1349, %v1336
  %v1896 = vpack.c.b16 %v1350, %v1337
  %v1897 = vpack.c.b16 %v1351, %v1338
  %v1898 = vpack.c.b16 %v1352, %v1339
  %v1899 = vpack.c.b16 %v1353, %v1340
  %v1900 = vpack.c.b16 %v1354, %v1341
  %v1901 = vpack.c.b16 %v1355, %v1342
  %v1902 = vpack.c.b16 %v1356, %v1343
  %v1903 = vpack.c.b16 %v1357, %v1344
  %v1904 = vpack.c.b16 %v1358, %v1345
  %v1905 = vpack.c.b16 %v1359, %v1346
  %v1906 = vpack.c.b16 %v1360, %v1347
  %v1907 = vpack.c.b16 %v1374, %v1361
  %v1908 = vpack.c.b16 %v1375, %v1362
  %v1909 = vpack.c.b16 %v1376, %v1363
  %v1910 = vpack.c.b16 %v1377, %v1364
  %v1911 = vpack.c.b16 %v1378, %v1365
  %v1912 = vpack.c.b16 %v1379, %v1366
  %v1913 = vpack.c.b16 %v1380, %v1367
  %v1914 = vpack.c.b16 %v1381, %v1368
  %v1915 = vpack.c.b16 %v1382, %v1369
  %v1916 = vpack.c.b16 %v1383, %v1370
  %v1917 = vpack.c.b16 %v1384, %v1371
  %v1918 = vpack.c.b16 %v1385, %v1372
  %v1919 = vpack.c.b16 %v1386, %v1373
  %v1920 = vpack.c.b16 %v1400, %v1387
  %v1921 = vpack.c.b16 %v1401, %v1388
  %v1922 = vpack.c.b16 %v1402, %v1389
  %v1923 = vpack.c.b16 %v1403, %v1390
  %v1924 = vpack.c.b16 %v1404, %v1391
  %v1925 = vpack.c.b16 %v1405, %v1392
  %v1926 = vpack.c.b16 %v1406, %v1393
  %v1927 = vpack.c.b16 %v1407, %v1394
  %v1928 = vpack.c.b16 %v1408, %v1395
  %v1929 = vpack.c.b16 %v1409, %v1396
  %v1930 = vpack.c.b16 %v1410, %v1397
  %v1931 = vpack.c.b16 %v1411, %v1398
  %v1932 = vpack.c.b16 %v1412, %v1399
  %v1933 = vpack.c.b16 %v1426, %v1413
  %v1934 = vpack.c.b16 %v1427, %v1414
  %v1935 = vpack.c.b16 %v1428, %v1415
  %v1936 = vpack.c.b16 %v1429, %v1416
  %v1937 = vpack.c.b16 %v1430, %v1417
  %v1938 = vpack.c.b16 %v1431, %v1418
  %v1939 = vpack.c.b16 %v1432, %v1419
  %v1940 = vpack.c.b16 %v1433, %v1420
  %v1941 = vpack.c.b16 %v1434, %v1421
  %v1942 = vpack.c.b16 %v1435, %v1422
  %v1943 = vpack.c.b16 %v1436, %v1423
  %v1944 = vpack.c.b16 %v1437, %v1424
  %v1945 = vpack.c.b16 %v1438, %v1425
  %v1946 = vpack.c.b16 %v1452, %v1439
  %v1947 = vpack.c.b16 %v1453, %v1440
  %v1948 = vpack.c.b16 %v1454, %v1441
  %v1949 = vpack.c.b16 %v1455, %v1442
  %v1950 = vpack.c.b16 %v1456, %v1443
  %v1951 = vpack.c.b16 %v1457, %v1444
  %v1952 = vpack.c.b16 %v1458, %v1445
  %v1953 = vpack.c.b16 %v1459, %v1446
  %v1954 = vpack.c.b16 %v1460, %v1447
  %v1955 = vpack.c.b16 %v1461, %v1448
  %v1956 = vpack.c.b16 %v1462, %v1449
  %v1957 = vpack.c.b16 %v1463, %v1450
  %v1958 = vpack.c.b16 %v1464, %v1451
  %v1959 = vpack.c.b16 %v1478, %v1465
  %v1960 = vpack.c.b16 %v1479, %v1466
  %v1961 = vpack.c.b16 %v1480, %v1467
  %v1962 = vpack.c.b16 %v1481, %v1468
  %v1963 = vpack.c.b16 %v1482, %v1469
  %v1964 = vpack.c.b16 %v1483, %v1470
  %v1965 = vpack.c.b16 %v1484, %v1471
  %v1966 = vpack.c.b16 %v1485, %v1472
  %v1967 = vpack.c.b16 %v1486, %v1473
  %v1968 = vpack.c.b16 %v1487, %v1474
  %v1969 = vpack.c.b16 %v1488, %v1475
  %v1970 = vpack.c.b16 %v1489, %v1476
  %v1971 = vpack.c.b16 %v1490, %v1477
  %v1972 = vpack.c.b16 %v1504, %v1491
  %v1973 = vpack.c.b16 %v1505, %v1492
  %v1974 = vpack.c.b16 %v1506, %v1493
  %v1975 = vpack.c.b16 %v1507, %v1494
  %v1976 = vpack.c.b16 %v1508, %v1495
  %v1977 = vpack.c.b16 %v1509, %v1496
  %v1978 = vpack.c.b16 %v1510, %v1497
  %v1979 = vpack.c.b16 %v1511, %v1498
  %v1980 = vpack.c.b16 %v1512, %v1499
  %v1981 = vpack.c.b16 %v1513, %v1500
  %v1982 = vpack.c.b16 %v1514, %v1501
  %v1983 = vpack.c.b16 %v1515, %v1502
  %v1984 = vpack.c.b16 %v1516, %v1503
  %v1985 = vpack.c.b16 %v1530, %v1517
  %v1986 = vpack.c.b16 %v1531, %v1518
  %v1987 = vpack.c.b16 %v1532, %v1519
  %v1988 = vpack.c.b16 %v1533, %v1520
  %v1989 = vpack.c.b16 %v1534, %v1521
  %v1990 = vpack.c.b16 %v1535, %v1522
  %v1991 = vpack.c.b16 %v1536, %v1523
  %v1992 = vpack.c.b16 %v1537, %v1524
  %v1993 = vpack.c.b16 %v1538, %v1525
  %v1994 = vpack.c.b16 %v1539, %v1526
  %v1995 = vpack.c.b16 %v1540, %v1527
  %v1996 = vpack.c.b16 %v1541, %v1528
  %v1997 = vpack.c.b16 %v1542, %v1529
  %v1998 = vpack.c.b16 %v1556, %v1543
  %v1999 = vpack.c.b16 %v1557, %v1544
  %v2000 = vpack.c.b16 %v1558, %v1545
  %v2001 = vpack.c.b16 %v1559, %v1546
  %v2002 = vpack.c.b16 %v1560, %v1547
  %v2003 = vpack.c.b16 %v1561, %v1548
  %v2004 = vpack.c.b16 %v1562, %v1549
  %v2005 = vpack.c.b16 %v1563, %v1550
  %v2006 = vpack.c.b16 %v1564, %v1551
  %v2007 = vpack.c.b16 %v1565, %v1552
  %v2008 = vpack.c.b16 %v1566, %v1553
  %v2009 = vpack.c.b16 %v1567, %v1554
  %v2010 = vpack.c.b16 %v1568, %v1555
  %v2011 = vpack.c.b16 %v1582, %v1569
  %v2012 = vpack.c.b16 %v1583, %v1570
  %v2013 = vpack.c.b16 %v1584, %v1571
  %v2014 = vpack.c.b16 %v1585, %v1572
  %v2015 = vpack.c.b16 %v1586, %v1573
  %v2016 = vpack.c.b16 %v1587, %v1574
  %v2017 = vpack.c.b16 %v1588, %v1575
  %v2018 = vpack.c.b16 %v1589, %v1576
  %v2019 = vpack.c.b16 %v1590, %v1577
  %v2020 = vpack.c.b16 %v1591, %v1578
  %v2021 = vpack.c.b16 %v1592, %v1579
  %v2022 = vpack.c.b16 %v1593, %v1580
  %v2023 = vpack.c.b16 %v1594, %v1581
  %v2024 = vpack.c.b16 %v1608, %v1595
  %v2025 = vpack.c.b16 %v1609, %v1596
  %v2026 = vpack.c.b16 %v1610, %v1597
  %v2027 = vpack.c.b16 %v1611, %v1598
  %v2028 = vpack.c.b16 %v1612, %v1599
  %v2029 = vpack.c.b16 %v1613, %v1600
  %v2030 = vpack.c.b16 %v1614, %v1601
  %v2031 = vpack.c.b16 %v1615, %v1602
  %v2032 = vpack.c.b16 %v1616, %v1603
  %v2033 = vpack.c.b16 %v1617, %v1604
  %v2034 = vpack.c.b16 %v1618, %v1605
  %v2035 = vpack.c.b16 %v1619, %v1606
  %v2036 = vpack.c.b16 %v1620, %v1607
  %v2037 = vpack.c.b16 %v1634, %v1621
  %v2038 = vpack.c.b16 %v1635, %v1622
  %v2039 = vpack.c.b16 %v1636, %v1623
  %v2040 = vpack.c.b16 %v1637, %v1624
  %v2041 = vpack.c.b16 %v1638, %v1625
  %v2042 = vpack.c.b16 %v1639, %v1626
  %v2043 = vpack.c.b16 %v1640, %v1627
  %v2044 = vpack.c.b16 %v1641, %v1628
  %v2045 = vpack.c.b16 %v1642, %v1629
  %v2046 = vpack.c.b16 %v1643, %v1630
  %v2047 = vpack.c.b16 %v1644, %v1631
  %v2048 = vpack.c.b16 %v1645, %v1632
  %v2049 = vpack.c.b16 %v1646, %v1633
  %v2050 = vpack.c.b16 %v1660, %v1647
  %v2051 = vpack.c.b16 %v1661, %v1648
  %v2052 = vpack.c.b16 %v1662, %v1649
  %v2053 = vpack.c.b16 %v1663, %v1650
  %v2054 = vpack.c.b16 %v1664, %v1651
  %v2055 = vpack.c.b16 %v1665, %v1652
  %v2056 = vpack.c.b16 %v1666, %v1653
  %v2057 = vpack.c.b16 %v1667, %v1654
  %v2058 = vpack.c.b16 %v1668, %v1655
  %v2059 = vpack.c.b16 %v1669, %v1656
  %v2060 = vpack.c.b16 %v1670, %v1657
  %v2061 = vpack.c.b16 %v1671, %v1658
  %v2062 = vpack.c.b16 %v1672, %v1659
  %v2063 = vpack.c.b16 %v1686, %v1673
  %v2064 = vpack.c.b16 %v1687, %v1674
  %v2065 = vpack.c.b16 %v1688, %v1675
  %v2066 = vpack.c.b16 %v1689, %v1676
  %v2067 = vpack.c.b16 %v1690, %v1677
  %v2068 = vpack.c.b16 %v1691, %v1678
  %v2069 = vpack.c.b16 %v1692, %v1679
  %v2070 = vpack.c.b16 %v1693, %v1680
  %v2071 = vpack.c.b16 %v1694, %v1681
  %v2072 = vpack.c.b16 %v1695, %v1682
  %v2073 = vpack.c.b16 %v1696, %v1683
  %v2074 = vpack.c.b16 %v1697, %v1684
  %v2075 = vpack.c.b16 %v1698, %v1685
  %v2076 = vpack.c.b16 %v1712, %v1699
  %v2077 = vpack.c.b16 %v1713, %v1700
  %v2078 = vpack.c.b16 %v1714, %v1701
  %v2079 = vpack.c.b16 %v1715, %v1702
  %v2080 = vpack.c.b16 %v1716, %v1703
  %v2081 = vpack.c.b16 %v1717, %v1704
  %v2082 = vpack.c.b16 %v1718, %v1705
  %v2083 = vpack.c.b16 %v1719, %v1706
  %v2084 = vpack.c.b16 %v1720, %v1707
  %v2085 = vpack.c.b16 %v1721, %v1708
  %v2086 = vpack.c.b16 %v1722, %v1709
  %v2087 = vpack.c.b16 %v1723, %v1710
  %v2088 = vpack.c.b16 %v1724, %v1711
  %v2089 = vpack.c.b16 %v1738, %v1725
  %v2090 = vpack.c.b16 %v1739, %v1726
  %v2091 = vpack.c.b16 %v1740, %v1727
  %v2092 = vpack.c.b16 %v1741, %v1728
  %v2093 = vpack.c.b16 %v1742, %v1729
  %v2094 = vpack.c.b16 %v1743, %v1730
  %v2095 = vpack.c.b16 %v1744, %v1731
  %v2096 = vpack.c.b16 %v1745, %v1732
  %v2097 = vpack.c.b16 %v1746, %v1733
  %v2098 = vpack.c.b16 %v1747, %v1734
  %v2099 = vpack.c.b16 %v1748, %v1735
  %v2100 = vpack.c.b16 %v1749, %v1736
  %v2101 = vpack.c.b16 %v1750, %v1737
  %v2102 = vpack.c.b16 %v1764, %v1751
  %v2103 = vpack.c.b16 %v1765, %v1752
  %v2104 = vpack.c.b16 %v1766, %v1753
  %v2105 = vpack.c.b16 %v1767, %v1754
  %v2106 = vpack.c.b16 %v1768, %v1755
  %v2107 = vpack.c.b16 %v1769, %v1756
  %v2108 = vpack.c.b16 %v1770, %v1757
  %v2109 = vpack.c.b16 %v1771, %v1758
  %v2110 = vpack.c.b16 %v1772, %v1759
  %v2111 = vpack.c.b16 %v1773, %v1760
  %v2112 = vpack.c.b16 %v1774, %v1761
  %v2113 = vpack.c.b16 %v1775, %v1762
  %v2114 = vpack.c.b16 %v1776, %v1763
  %v2115 = vpack.c.b16 %v1790, %v1777
  %v2116 = vpack.c.b16 %v1791, %v1778
  %v2117 = vpack.c.b16 %v1792, %v1779
  %v2118 = vpack.c.b16 %v1793, %v1780
  %v2119 = vpack.c.b16 %v1794, %v1781
  %v2120 = vpack.c.b16 %v1795, %v1782
  %v2121 = vpack.c.b16 %v1796, %v1783
  %v2122 = vpack.c.b16 %v1797, %v1784
  %v2123 = vpack.c.b16 %v1798, %v1785
  %v2124 = vpack.c.b16 %v1799, %v1786
  %v2125 = vpack.c.b16 %v1800, %v1787
  %v2126 = vpack.c.b16 %v1801, %v1788
  %v2127 = vpack.c.b16 %v1802, %v1789
  %v2128 = vpack.c.b16 %v1816, %v1803
  %v2129 = vpack.c.b16 %v1817, %v1804
  %v2130 = vpack.c.b16 %v1818, %v1805
  %v2131 = vpack.c.b16 %v1819, %v1806
  %v2132 = vpack.c.b16 %v1820, %v1807
  %v2133 = vpack.c.b16 %v1821, %v1808
  %v2134 = vpack.c.b16 %v1822, %v1809
  %v2135 = vpack.c.b16 %v1823, %v1810
  %v2136 = vpack.c.b16 %v1824, %v1811
  %v2137 = vpack.c.b16 %v1825, %v1812
  %v2138 = vpack.c.b16 %v1826, %v1813
  %v2139 = vpack.c.b16 %v1827, %v1814
  %v2140 = vpack.c.b16 %v1828, %v1815
  %vm2440 = vcmask 1014784
  %v2442 = vsel %vm2440, %v415, 0
  %v2445 = vsel %vm2440, %v418, 0
  %v2448 = vsel %vm2440, %v421, 0
  %v2451 = vsel %vm2440, %v424, 0
  %v2454 = vsel %vm2440, %v427, 0
  %v2457 = vsel %vm2440, %v430, 0
  %v2460 = vsel %vm2440, %v433, 0
  %v2463 = vsel %vm2440, %v436, 0
  %vm2465 = vcmask 1045504
  %v2467 = vsel %vm2465, %v2128, 0
  %v2470 = vsel %vm2465, %v2129, 0
  %v2473 = vsel %vm2465, %v2130, 0
  %v2476 = vsel %vm2465, %v2131, 0
  %v2479 = vsel %vm2465, %v2132, 0
  %v2482 = vsel %vm2465, %v2133, 0
  %v2485 = vsel %vm2465, %v2134, 0
  %v2488 = vsel %vm2465, %v2135, 0
  %v2491 = vsel %vm2465, %v2136, 0
  %v2494 = vsel %vm2465, %v2137, 0
  %v2497 = vsel %vm2465, %v2138, 0
  %v2500 = vsel %vm2465, %v2139, 0
  %v2503 = vsel %vm2465, %v2140, 0
  %2505 = vmatprep.subr.bf16.mxu0 %v1830
  %2506 = vmatpush1.bf16.msra.mxu0 %v1829
  %2507 = vmatprep.subr.bf16.mxu0 %v1843
  %2508 = vmatpush1.bf16.msra.mxu0 %v1842
  %2509 = vmatprep.subr.bf16.mxu0 %v1856
  %2510 = vmatpush1.bf16.msra.mxu0 %v1855
  %2511 = vmatprep.subr.bf16.mxu0 %v1869
  %2512 = vmatpush1.bf16.msra.mxu0 %v1868
  %2513 = vmatprep.subr.bf16.mxu0 %v1882
  %2514 = vmatpush1.bf16.msra.mxu0 %v1881
  %2515 = vmatprep.subr.bf16.mxu0 %v1895
  %2516 = vmatpush1.bf16.msra.mxu0 %v1894
  %2517 = vmatprep.subr.bf16.mxu0 %v1908
  %2518 = vmatpush1.bf16.msra.mxu0 %v1907
  %2519 = vmatprep.subr.bf16.mxu0 %v1921
  %2520 = vmatpush1.bf16.msra.mxu0 %v1920
  %2521 = vmatprep.subr.bf16.mxu0 %v1934
  %2522 = vmatpush1.bf16.msra.mxu0 %v1933
  %2523 = vmatprep.subr.bf16.mxu0 %v1947
  %2524 = vmatpush1.bf16.msra.mxu0 %v1946
  %2525 = vmatprep.subr.bf16.mxu0 %v1960
  %2526 = vmatpush1.bf16.msra.mxu0 %v1959
  %2527 = vmatprep.subr.bf16.mxu0 %v1973
  %2528 = vmatpush1.bf16.msra.mxu0 %v1972
  %2529 = vmatprep.subr.bf16.mxu0 %v1986
  %2530 = vmatpush1.bf16.msra.mxu0 %v1985
  %2531 = vmatprep.subr.bf16.mxu0 %v1999
  %2532 = vmatpush1.bf16.msra.mxu0 %v1998
  %2533 = vmatprep.subr.bf16.mxu0 %v2012
  %2534 = vmatpush1.bf16.msra.mxu0 %v2011
  %2535 = vmatprep.subr.bf16.mxu0 %v2025
  %2536 = vmatpush1.bf16.msra.mxu0 %v2024
  %2537 = vmatprep.mubr.bf16.mxu0 %v414
  %2538 = vmatmul.mubr.bf16.gmra.mrb[0].mxu0 %v413
  %v2539 = vpop.f32.mrb[0].mxu0
  %v2540 = vadd.f32 %v792, %v2539
  %v2541 = vpop.f32.mrb[0].mxu0
  %v2542 = vadd.f32 %v792, %v2541
  %v2543 = vpop.f32.mrb[0].mxu0
  %v2544 = vadd.f32 %v797, %v2543
  %v2545 = vpop.f32.mrb[0].mxu0
  %v2546 = vadd.f32 %v797, %v2545
  %2547 = vmatprep.mubr.bf16.mxu0 %v417
  %2548 = vmatmul.mubr.bf16.gmra.mrb[0].mxu0 %v416
  %v2549 = vpop.f32.mrb[0].mxu0
  %v2550 = vadd.f32 %v802, %v2549
  %v2551 = vpop.f32.mrb[0].mxu0
  %v2552 = vadd.f32 %v802, %v2551
  %v2553 = vpop.f32.mrb[0].mxu0
  %v2554 = vadd.f32 %v807, %v2553
  %v2555 = vpop.f32.mrb[0].mxu0
  %v2556 = vadd.f32 %v807, %v2555
  %2557 = vmatprep.mubr.bf16.mxu0 %v420
  %2558 = vmatmul.mubr.bf16.gmra.mrb[0].mxu0 %v419
  %v2559 = vpop.f32.mrb[0].mxu0
  %v2560 = vadd.f32 %v812, %v2559
  %v2561 = vpop.f32.mrb[0].mxu0
  %v2562 = vadd.f32 %v812, %v2561
  %v2563 = vpop.f32.mrb[0].mxu0
  %v2564 = vadd.f32 %v817, %v2563
  %v2565 = vpop.f32.mrb[0].mxu0
  %v2566 = vadd.f32 %v817, %v2565
  %2567 = vmatprep.mubr.bf16.mxu0 %v423
  %2568 = vmatmul.mubr.bf16.gmra.mrb[0].mxu0 %v422
  %v2569 = vpop.f32.mrb[0].mxu0
  %v2570 = vadd.f32 %v822, %v2569
  %v2571 = vpop.f32.mrb[0].mxu0
  %v2572 = vadd.f32 %v822, %v2571
  %v2573 = vpop.f32.mrb[0].mxu0
  %v2574 = vadd.f32 %v827, %v2573
  %v2575 = vpop.f32.mrb[0].mxu0
  %v2576 = vadd.f32 %v827, %v2575
  %2577 = vmatprep.mubr.bf16.mxu0 %v426
  %2578 = vmatmul.mubr.bf16.gmra.mrb[0].mxu0 %v425
  %v2579 = vpop.f32.mrb[0].mxu0
  %v2580 = vadd.f32 %v832, %v2579
  %v2581 = vpop.f32.mrb[0].mxu0
  %v2582 = vadd.f32 %v832, %v2581
  %v2583 = vpop.f32.mrb[0].mxu0
  %v2584 = vadd.f32 %v837, %v2583
  %v2585 = vpop.f32.mrb[0].mxu0
  %v2586 = vadd.f32 %v837, %v2585
  %2587 = vmatprep.mubr.bf16.mxu0 %v429
  %2588 = vmatmul.mubr.bf16.gmra.mrb[0].mxu0 %v428
  %v2589 = vpop.f32.mrb[0].mxu0
  %v2590 = vadd.f32 %v842, %v2589
  %v2591 = vpop.f32.mrb[0].mxu0
  %v2592 = vadd.f32 %v842, %v2591
  %v2593 = vpop.f32.mrb[0].mxu0
  %v2594 = vadd.f32 %v847, %v2593
  %v2595 = vpop.f32.mrb[0].mxu0
  %v2596 = vadd.f32 %v847, %v2595
  %2597 = vmatprep.mubr.bf16.mxu0 %v432
  %2598 = vmatmul.mubr.bf16.gmra.mrb[0].mxu0 %v431
  %v2599 = vpop.f32.mrb[0].mxu0
  %v2600 = vadd.f32 %v852, %v2599
  %v2601 = vpop.f32.mrb[0].mxu0
  %v2602 = vadd.f32 %v852, %v2601
  %v2603 = vpop.f32.mrb[0].mxu0
  %v2604 = vadd.f32 %v857, %v2603
  %v2605 = vpop.f32.mrb[0].mxu0
  %v2606 = vadd.f32 %v857, %v2605
  %2607 = vmatprep.mubr.bf16.mxu0 %v435
  %2608 = vmatmul.mubr.bf16.gmra.mrb[0].mxu0 %v434
  %v2609 = vpop.f32.mrb[0].mxu0
  %v2610 = vadd.f32 %v862, %v2609
  %v2611 = vpop.f32.mrb[0].mxu0
  %v2612 = vadd.f32 %v862, %v2611
  %v2613 = vpop.f32.mrb[0].mxu0
  %v2614 = vadd.f32 %v867, %v2613
  %v2615 = vpop.f32.mrb[0].mxu0
  %v2616 = vadd.f32 %v867, %v2615
  %2617 = vdwg.mxu0
  %2618 = vmatprep.subr.bf16.mxu0 %v2038
  %2619 = vmatpush1.bf16.msra.mxu0 %v2037
  %2620 = vmatprep.subr.bf16.mxu0 %v2051
  %2621 = vmatpush1.bf16.msra.mxu0 %v2050
  %2622 = vmatprep.subr.bf16.mxu0 %v2064
  %2623 = vmatpush1.bf16.msra.mxu0 %v2063
  %2624 = vmatprep.subr.bf16.mxu0 %v2077
  %2625 = vmatpush1.bf16.msra.mxu0 %v2076
  %2626 = vmatprep.subr.bf16.mxu0 %v2090
  %2627 = vmatpush1.bf16.msra.mxu0 %v2089
  %2628 = vmatprep.subr.bf16.mxu0 %v2103
  %2629 = vmatpush1.bf16.msra.mxu0 %v2102
  %2630 = vmatprep.subr.bf16.mxu0 %v2116
  %2631 = vmatpush1.bf16.msra.mxu0 %v2115
  %2632 = vmatprep.subr.bf16.mxu0 %v2470
  %2633 = vmatpush1.bf16.msra.mxu0 %v2467
  %2634 = vmatprep.subr.bf16.mxu0 0
  %2635 = vmatpush1.bf16.msra.mxu0 0
  %2636 = vmatprep.subr.bf16.mxu0 0
  %2637 = vmatpush1.bf16.msra.mxu0 0
  %2638 = vmatprep.subr.bf16.mxu0 0
  %2639 = vmatpush1.bf16.msra.mxu0 0
  %2640 = vmatprep.subr.bf16.mxu0 0
  %2641 = vmatpush1.bf16.msra.mxu0 0
  %2642 = vmatprep.subr.bf16.mxu0 0
  %2643 = vmatpush1.bf16.msra.mxu0 0
  %2644 = vmatprep.subr.bf16.mxu0 0
  %2645 = vmatpush1.bf16.msra.mxu0 0
  %2646 = vmatprep.subr.bf16.mxu0 0
  %2647 = vmatpush1.bf16.msra.mxu0 0
  %2648 = vmatprep.subr.bf16.mxu0 0
  %2649 = vmatpush1.bf16.msra.mxu0 0
  %2650 = vmatprep.mubr.bf16.mxu0 0
  %2651 = vmatmul.mubr.bf16.gmra.mrb[0].mxu0 %v2442
  %v2652 = vpop.f32.mrb[0].mxu0
  %v2653 = vadd.f32 %v2540, %v2652
  %v2654 = vpop.f32.mrb[0].mxu0
  %v2655 = vadd.f32 %v2542, %v2654
  %v2656 = vpop.f32.mrb[0].mxu0
  %v2657 = vadd.f32 %v2544, %v2656
  %v2658 = vpop.f32.mrb[0].mxu0
  %v2659 = vadd.f32 %v2546, %v2658
  %2660 = vmatprep.mubr.bf16.mxu0 0
  %2661 = vmatmul.mubr.bf16.gmra.mrb[0].mxu0 %v2445
  %v2662 = vpop.f32.mrb[0].mxu0
  %v2663 = vadd.f32 %v2550, %v2662
  %v2664 = vpop.f32.mrb[0].mxu0
  %v2665 = vadd.f32 %v2552, %v2664
  %v2666 = vpop.f32.mrb[0].mxu0
  %v2667 = vadd.f32 %v2554, %v2666
  %v2668 = vpop.f32.mrb[0].mxu0
  %v2669 = vadd.f32 %v2556, %v2668
  %2670 = vmatprep.mubr.bf16.mxu0 0
  %2671 = vmatmul.mubr.bf16.gmra.mrb[0].mxu0 %v2448
  %v2672 = vpop.f32.mrb[0].mxu0
  %v2673 = vadd.f32 %v2560, %v2672
  %v2674 = vpop.f32.mrb[0].mxu0
  %v2675 = vadd.f32 %v2562, %v2674
  %v2676 = vpop.f32.mrb[0].mxu0
  %v2677 = vadd.f32 %v2564, %v2676
  %v2678 = vpop.f32.mrb[0].mxu0
  %v2679 = vadd.f32 %v2566, %v2678
  %2680 = vmatprep.mubr.bf16.mxu0 0
  %2681 = vmatmul.mubr.bf16.gmra.mrb[0].mxu0 %v2451
  %v2682 = vpop.f32.mrb[0].mxu0
  %v2683 = vadd.f32 %v2570, %v2682
  %v2684 = vpop.f32.mrb[0].mxu0
  %v2685 = vadd.f32 %v2572, %v2684
  %v2686 = vpop.f32.mrb[0].mxu0
  %v2687 = vadd.f32 %v2574, %v2686
  %v2688 = vpop.f32.mrb[0].mxu0
  %v2689 = vadd.f32 %v2576, %v2688
  %2690 = vmatprep.mubr.bf16.mxu0 0
  %2691 = vmatmul.mubr.bf16.gmra.mrb[0].mxu0 %v2454
  %v2692 = vpop.f32.mrb[0].mxu0
  %v2693 = vadd.f32 %v2580, %v2692
  %v2694 = vpop.f32.mrb[0].mxu0
  %v2695 = vadd.f32 %v2582, %v2694
  %v2696 = vpop.f32.mrb[0].mxu0
  %v2697 = vadd.f32 %v2584, %v2696
  %v2698 = vpop.f32.mrb[0].mxu0
  %v2699 = vadd.f32 %v2586, %v2698
  %2700 = vmatprep.mubr.bf16.mxu0 0
  %2701 = vmatmul.mubr.bf16.gmra.mrb[0].mxu0 %v2457
  %v2702 = vpop.f32.mrb[0].mxu0
  %v2703 = vadd.f32 %v2590, %v2702
  %v2704 = vpop.f32.mrb[0].mxu0
  %v2705 = vadd.f32 %v2592, %v2704
  %v2706 = vpop.f32.mrb[0].mxu0
  %v2707 = vadd.f32 %v2594, %v2706
  %v2708 = vpop.f32.mrb[0].mxu0
  %v2709 = vadd.f32 %v2596, %v2708
  %2710 = vmatprep.mubr.bf16.mxu0 0
  %2711 = vmatmul.mubr.bf16.gmra.mrb[0].mxu0 %v2460
  %v2712 = vpop.f32.mrb[0].mxu0
  %v2713 = vadd.f32 %v2600, %v2712
  %v2714 = vpop.f32.mrb[0].mxu0
  %v2715 = vadd.f32 %v2602, %v2714
  %v2716 = vpop.f32.mrb[0].mxu0
  %v2717 = vadd.f32 %v2604, %v2716
  %v2718 = vpop.f32.mrb[0].mxu0
  %v2719 = vadd.f32 %v2606, %v2718
  %2720 = vmatprep.mubr.bf16.mxu0 0
  %2721 = vmatmul.mubr.bf16.gmra.mrb[0].mxu0 %v2463
  %v2722 = vpop.f32.mrb[0].mxu0
  %v2723 = vadd.f32 %v2610, %v2722
  %v2724 = vpop.f32.mrb[0].mxu0
  %v2725 = vadd.f32 %v2612, %v2724
  %v2726 = vpop.f32.mrb[0].mxu0
  %v2727 = vadd.f32 %v2614, %v2726
  %v2728 = vpop.f32.mrb[0].mxu0
  %v2729 = vadd.f32 %v2616, %v2728
  %2730 = vdwg.mxu0
  %2731 = vmatprep.subr.bf16.mxu0 %v1832
  %2732 = vmatpush1.bf16.msra.mxu0 %v1831
  %2733 = vmatprep.subr.bf16.mxu0 %v1845
  %2734 = vmatpush1.bf16.msra.mxu0 %v1844
  %2735 = vmatprep.subr.bf16.mxu0 %v1858
  %2736 = vmatpush1.bf16.msra.mxu0 %v1857
  %2737 = vmatprep.subr.bf16.mxu0 %v1871
  %2738 = vmatpush1.bf16.msra.mxu0 %v1870
  %2739 = vmatprep.subr.bf16.mxu0 %v1884
  %2740 = vmatpush1.bf16.msra.mxu0 %v1883
  %2741 = vmatprep.subr.bf16.mxu0 %v1897
  %2742 = vmatpush1.bf16.msra.mxu0 %v1896
  %2743 = vmatprep.subr.bf16.mxu0 %v1910
  %2744 = vmatpush1.bf16.msra.mxu0 %v1909
  %2745 = vmatprep.subr.bf16.mxu0 %v1923
  %2746 = vmatpush1.bf16.msra.mxu0 %v1922
  %2747 = vmatprep.subr.bf16.mxu0 %v1936
  %2748 = vmatpush1.bf16.msra.mxu0 %v1935
  %2749 = vmatprep.subr.bf16.mxu0 %v1949
  %2750 = vmatpush1.bf16.msra.mxu0 %v1948
  %2751 = vmatprep.subr.bf16.mxu0 %v1962
  %2752 = vmatpush1.bf16.msra.mxu0 %v1961
  %2753 = vmatprep.subr.bf16.mxu0 %v1975
  %2754 = vmatpush1.bf16.msra.mxu0 %v1974
  %2755 = vmatprep.subr.bf16.mxu0 %v1988
  %2756 = vmatpush1.bf16.msra.mxu0 %v1987
  %2757 = vmatprep.subr.bf16.mxu0 %v2001
  %2758 = vmatpush1.bf16.msra.mxu0 %v2000
  %2759 = vmatprep.subr.bf16.mxu0 %v2014
  %2760 = vmatpush1.bf16.msra.mxu0 %v2013
  %2761 = vmatprep.subr.bf16.mxu0 %v2027
  %2762 = vmatpush1.bf16.msra.mxu0 %v2026
  %2763 = vmatprep.mubr.bf16.mxu0 %v414
  %2764 = vmatmul.mubr.bf16.gmra.mrb[0].mxu0 %v413
  %v2765 = vpop.f32.mrb[0].mxu0
  %v2766 = vadd.f32 %v792, %v2765
  %v2767 = vpop.f32.mrb[0].mxu0
  %v2768 = vadd.f32 %v792, %v2767
  %v2769 = vpop.f32.mrb[0].mxu0
  %v2770 = vadd.f32 %v797, %v2769
  %v2771 = vpop.f32.mrb[0].mxu0
  %v2772 = vadd.f32 %v797, %v2771
  %2773 = vmatprep.mubr.bf16.mxu0 %v417
  %2774 = vmatmul.mubr.bf16.gmra.mrb[0].mxu0 %v416
  %v2775 = vpop.f32.mrb[0].mxu0
  %v2776 = vadd.f32 %v802, %v2775
  %v2777 = vpop.f32.mrb[0].mxu0
  %v2778 = vadd.f32 %v802, %v2777
  %v2779 = vpop.f32.mrb[0].mxu0
  %v2780 = vadd.f32 %v807, %v2779
  %v2781 = vpop.f32.mrb[0].mxu0
  %v2782 = vadd.f32 %v807, %v2781
  %2783 = vmatprep.mubr.bf16.mxu0 %v420
  %2784 = vmatmul.mubr.bf16.gmra.mrb[0].mxu0 %v419
  %v2785 = vpop.f32.mrb[0].mxu0
  %v2786 = vadd.f32 %v812, %v2785
  %v2787 = vpop.f32.mrb[0].mxu0
  %v2788 = vadd.f32 %v812, %v2787
  %v2789 = vpop.f32.mrb[0].mxu0
  %v2790 = vadd.f32 %v817, %v2789
  %v2791 = vpop.f32.mrb[0].mxu0
  %v2792 = vadd.f32 %v817, %v2791
  %2793 = vmatprep.mubr.bf16.mxu0 %v423
  %2794 = vmatmul.mubr.bf16.gmra.mrb[0].mxu0 %v422
  %v2795 = vpop.f32.mrb[0].mxu0
  %v2796 = vadd.f32 %v822, %v2795
  %v2797 = vpop.f32.mrb[0].mxu0
  %v2798 = vadd.f32 %v822, %v2797
  %v2799 = vpop.f32.mrb[0].mxu0
  %v2800 = vadd.f32 %v827, %v2799
  %v2801 = vpop.f32.mrb[0].mxu0
  %v2802 = vadd.f32 %v827, %v2801
  %2803 = vmatprep.mubr.bf16.mxu0 %v426
  %2804 = vmatmul.mubr.bf16.gmra.mrb[0].mxu0 %v425
  %v2805 = vpop.f32.mrb[0].mxu0
  %v2806 = vadd.f32 %v832, %v2805
  %v2807 = vpop.f32.mrb[0].mxu0
  %v2808 = vadd.f32 %v832, %v2807
  %v2809 = vpop.f32.mrb[0].mxu0
  %v2810 = vadd.f32 %v837, %v2809
  %v2811 = vpop.f32.mrb[0].mxu0
  %v2812 = vadd.f32 %v837, %v2811
  %2813 = vmatprep.mubr.bf16.mxu0 %v429
  %2814 = vmatmul.mubr.bf16.gmra.mrb[0].mxu0 %v428
  %v2815 = vpop.f32.mrb[0].mxu0
  %v2816 = vadd.f32 %v842, %v2815
  %v2817 = vpop.f32.mrb[0].mxu0
  %v2818 = vadd.f32 %v842, %v2817
  %v2819 = vpop.f32.mrb[0].mxu0
  %v2820 = vadd.f32 %v847, %v2819
  %v2821 = vpop.f32.mrb[0].mxu0
  %v2822 = vadd.f32 %v847, %v2821
  %2823 = vmatprep.mubr.bf16.mxu0 %v432
  %2824 = vmatmul.mubr.bf16.gmra.mrb[0].mxu0 %v431
  %v2825 = vpop.f32.mrb[0].mxu0
  %v2826 = vadd.f32 %v852, %v2825
  %v2827 = vpop.f32.mrb[0].mxu0
  %v2828 = vadd.f32 %v852, %v2827
  %v2829 = vpop.f32.mrb[0].mxu0
  %v2830 = vadd.f32 %v857, %v2829
  %v2831 = vpop.f32.mrb[0].mxu0
  %v2832 = vadd.f32 %v857, %v2831
  %2833 = vmatprep.mubr.bf16.mxu0 %v435
  %2834 = vmatmul.mubr.bf16.gmra.mrb[0].mxu0 %v434
  %v2835 = vpop.f32.mrb[0].mxu0
  %v2836 = vadd.f32 %v862, %v2835
  %v2837 = vpop.f32.mrb[0].mxu0
  %v2838 = vadd.f32 %v862, %v2837
  %v2839 = vpop.f32.mrb[0].mxu0
  %v2840 = vadd.f32 %v867, %v2839
  %v2841 = vpop.f32.mrb[0].mxu0
  %v2842 = vadd.f32 %v867, %v2841
  %2843 = vdwg.mxu0
  %2844 = vmatprep.subr.bf16.mxu0 %v2040
  %2845 = vmatpush1.bf16.msra.mxu0 %v2039
  %2846 = vmatprep.subr.bf16.mxu0 %v2053
  %2847 = vmatpush1.bf16.msra.mxu0 %v2052
  %2848 = vmatprep.subr.bf16.mxu0 %v2066
  %2849 = vmatpush1.bf16.msra.mxu0 %v2065
  %2850 = vmatprep.subr.bf16.mxu0 %v2079
  %2851 = vmatpush1.bf16.msra.mxu0 %v2078
  %2852 = vmatprep.subr.bf16.mxu0 %v2092
  %2853 = vmatpush1.bf16.msra.mxu0 %v2091
  %2854 = vmatprep.subr.bf16.mxu0 %v2105
  %2855 = vmatpush1.bf16.msra.mxu0 %v2104
  %2856 = vmatprep.subr.bf16.mxu0 %v2118
  %2857 = vmatpush1.bf16.msra.mxu0 %v2117
  %2858 = vmatprep.subr.bf16.mxu0 %v2476
  %2859 = vmatpush1.bf16.msra.mxu0 %v2473
  %2860 = vmatprep.subr.bf16.mxu0 0
  %2861 = vmatpush1.bf16.msra.mxu0 0
  %2862 = vmatprep.subr.bf16.mxu0 0
  %2863 = vmatpush1.bf16.msra.mxu0 0
  %2864 = vmatprep.subr.bf16.mxu0 0
  %2865 = vmatpush1.bf16.msra.mxu0 0
  %2866 = vmatprep.subr.bf16.mxu0 0
  %2867 = vmatpush1.bf16.msra.mxu0 0
  %2868 = vmatprep.subr.bf16.mxu0 0
  %2869 = vmatpush1.bf16.msra.mxu0 0
  %2870 = vmatprep.subr.bf16.mxu0 0
  %2871 = vmatpush1.bf16.msra.mxu0 0
  %2872 = vmatprep.subr.bf16.mxu0 0
  %2873 = vmatpush1.bf16.msra.mxu0 0
  %2874 = vmatprep.subr.bf16.mxu0 0
  %2875 = vmatpush1.bf16.msra.mxu0 0
  %2876 = vmatprep.mubr.bf16.mxu0 0
  %2877 = vmatmul.mubr.bf16.gmra.mrb[0].mxu0 %v2442
  %v2878 = vpop.f32.mrb[0].mxu0
  %v2879 = vadd.f32 %v2766, %v2878
  %v2880 = vpop.f32.mrb[0].mxu0
  %v2881 = vadd.f32 %v2768, %v2880
  %v2882 = vpop.f32.mrb[0].mxu0
  %v2883 = vadd.f32 %v2770, %v2882
  %v2884 = vpop.f32.mrb[0].mxu0
  %v2885 = vadd.f32 %v2772, %v2884
  %2886 = vmatprep.mubr.bf16.mxu0 0
  %2887 = vmatmul.mubr.bf16.gmra.mrb[0].mxu0 %v2445
  %v2888 = vpop.f32.mrb[0].mxu0
  %v2889 = vadd.f32 %v2776, %v2888
  %v2890 = vpop.f32.mrb[0].mxu0
  %v2891 = vadd.f32 %v2778, %v2890
  %v2892 = vpop.f32.mrb[0].mxu0
  %v2893 = vadd.f32 %v2780, %v2892
  %v2894 = vpop.f32.mrb[0].mxu0
  %v2895 = vadd.f32 %v2782, %v2894
  %2896 = vmatprep.mubr.bf16.mxu0 0
  %2897 = vmatmul.mubr.bf16.gmra.mrb[0].mxu0 %v2448
  %v2898 = vpop.f32.mrb[0].mxu0
  %v2899 = vadd.f32 %v2786, %v2898
  %v2900 = vpop.f32.mrb[0].mxu0
  %v2901 = vadd.f32 %v2788, %v2900
  %v2902 = vpop.f32.mrb[0].mxu0
  %v2903 = vadd.f32 %v2790, %v2902
  %v2904 = vpop.f32.mrb[0].mxu0
  %v2905 = vadd.f32 %v2792, %v2904
  %2906 = vmatprep.mubr.bf16.mxu0 0
  %2907 = vmatmul.mubr.bf16.gmra.mrb[0].mxu0 %v2451
  %v2908 = vpop.f32.mrb[0].mxu0
  %v2909 = vadd.f32 %v2796, %v2908
  %v2910 = vpop.f32.mrb[0].mxu0
  %v2911 = vadd.f32 %v2798, %v2910
  %v2912 = vpop.f32.mrb[0].mxu0
  %v2913 = vadd.f32 %v2800, %v2912
  %v2914 = vpop.f32.mrb[0].mxu0
  %v2915 = vadd.f32 %v2802, %v2914
  %2916 = vmatprep.mubr.bf16.mxu0 0
  %2917 = vmatmul.mubr.bf16.gmra.mrb[0].mxu0 %v2454
  %v2918 = vpop.f32.mrb[0].mxu0
  %v2919 = vadd.f32 %v2806, %v2918
  %v2920 = vpop.f32.mrb[0].mxu0
  %v2921 = vadd.f32 %v2808, %v2920
  %v2922 = vpop.f32.mrb[0].mxu0
  %v2923 = vadd.f32 %v2810, %v2922
  %v2924 = vpop.f32.mrb[0].mxu0
  %v2925 = vadd.f32 %v2812, %v2924
  %2926 = vmatprep.mubr.bf16.mxu0 0
  %2927 = vmatmul.mubr.bf16.gmra.mrb[0].mxu0 %v2457
  %v2928 = vpop.f32.mrb[0].mxu0
  %v2929 = vadd.f32 %v2816, %v2928
  %v2930 = vpop.f32.mrb[0].mxu0
  %v2931 = vadd.f32 %v2818, %v2930
  %v2932 = vpop.f32.mrb[0].mxu0
  %v2933 = vadd.f32 %v2820, %v2932
  %v2934 = vpop.f32.mrb[0].mxu0
  %v2935 = vadd.f32 %v2822, %v2934
  %2936 = vmatprep.mubr.bf16.mxu0 0
  %2937 = vmatmul.mubr.bf16.gmra.mrb[0].mxu0 %v2460
  %v2938 = vpop.f32.mrb[0].mxu0
  %v2939 = vadd.f32 %v2826, %v2938
  %v2940 = vpop.f32.mrb[0].mxu0
  %v2941 = vadd.f32 %v2828, %v2940
  %v2942 = vpop.f32.mrb[0].mxu0
  %v2943 = vadd.f32 %v2830, %v2942
  %v2944 = vpop.f32.mrb[0].mxu0
  %v2945 = vadd.f32 %v2832, %v2944
  %2946 = vmatprep.mubr.bf16.mxu0 0
  %2947 = vmatmul.mubr.bf16.gmra.mrb[0].mxu0 %v2463
  %v2948 = vpop.f32.mrb[0].mxu0
  %v2949 = vadd.f32 %v2836, %v2948
  %v2950 = vpop.f32.mrb[0].mxu0
  %v2951 = vadd.f32 %v2838, %v2950
  %v2952 = vpop.f32.mrb[0].mxu0
  %v2953 = vadd.f32 %v2840, %v2952
  %v2954 = vpop.f32.mrb[0].mxu0
  %v2955 = vadd.f32 %v2842, %v2954
  %2956 = vdwg.mxu0
  %2957 = vmatprep.subr.bf16.mxu0 %v1834
  %2958 = vmatpush1.bf16.msra.mxu0 %v1833
  %2959 = vmatprep.subr.bf16.mxu0 %v1847
  %2960 = vmatpush1.bf16.msra.mxu0 %v1846
  %2961 = vmatprep.subr.bf16.mxu0 %v1860
  %2962 = vmatpush1.bf16.msra.mxu0 %v1859
  %2963 = vmatprep.subr.bf16.mxu0 %v1873
  %2964 = vmatpush1.bf16.msra.mxu0 %v1872
  %2965 = vmatprep.subr.bf16.mxu0 %v1886
  %2966 = vmatpush1.bf16.msra.mxu0 %v1885
  %2967 = vmatprep.subr.bf16.mxu0 %v1899
  %2968 = vmatpush1.bf16.msra.mxu0 %v1898
  %2969 = vmatprep.subr.bf16.mxu0 %v1912
  %2970 = vmatpush1.bf16.msra.mxu0 %v1911
  %2971 = vmatprep.subr.bf16.mxu0 %v1925
  %2972 = vmatpush1.bf16.msra.mxu0 %v1924
  %2973 = vmatprep.subr.bf16.mxu0 %v1938
  %2974 = vmatpush1.bf16.msra.mxu0 %v1937
  %2975 = vmatprep.subr.bf16.mxu0 %v1951
  %2976 = vmatpush1.bf16.msra.mxu0 %v1950
  %2977 = vmatprep.subr.bf16.mxu0 %v1964
  %2978 = vmatpush1.bf16.msra.mxu0 %v1963
  %2979 = vmatprep.subr.bf16.mxu0 %v1977
  %2980 = vmatpush1.bf16.msra.mxu0 %v1976
  %2981 = vmatprep.subr.bf16.mxu0 %v1990
  %2982 = vmatpush1.bf16.msra.mxu0 %v1989
  %2983 = vmatprep.subr.bf16.mxu0 %v2003
  %2984 = vmatpush1.bf16.msra.mxu0 %v2002
  %2985 = vmatprep.subr.bf16.mxu0 %v2016
  %2986 = vmatpush1.bf16.msra.mxu0 %v2015
  %2987 = vmatprep.subr.bf16.mxu0 %v2029
  %2988 = vmatpush1.bf16.msra.mxu0 %v2028
  %2989 = vmatprep.mubr.bf16.mxu0 %v414
  %2990 = vmatmul.mubr.bf16.gmra.mrb[0].mxu0 %v413
  %v2991 = vpop.f32.mrb[0].mxu0
  %v2992 = vadd.f32 %v792, %v2991
  %v2993 = vpop.f32.mrb[0].mxu0
  %v2994 = vadd.f32 %v792, %v2993
  %v2995 = vpop.f32.mrb[0].mxu0
  %v2996 = vadd.f32 %v797, %v2995
  %v2997 = vpop.f32.mrb[0].mxu0
  %v2998 = vadd.f32 %v797, %v2997
  %2999 = vmatprep.mubr.bf16.mxu0 %v417
  %3000 = vmatmul.mubr.bf16.gmra.mrb[0].mxu0 %v416
  %v3001 = vpop.f32.mrb[0].mxu0
  %v3002 = vadd.f32 %v802, %v3001
  %v3003 = vpop.f32.mrb[0].mxu0
  %v3004 = vadd.f32 %v802, %v3003
  %v3005 = vpop.f32.mrb[0].mxu0
  %v3006 = vadd.f32 %v807, %v3005
  %v3007 = vpop.f32.mrb[0].mxu0
  %v3008 = vadd.f32 %v807, %v3007
  %3009 = vmatprep.mubr.bf16.mxu0 %v420
  %3010 = vmatmul.mubr.bf16.gmra.mrb[0].mxu0 %v419
  %v3011 = vpop.f32.mrb[0].mxu0
  %v3012 = vadd.f32 %v812, %v3011
  %v3013 = vpop.f32.mrb[0].mxu0
  %v3014 = vadd.f32 %v812, %v3013
  %v3015 = vpop.f32.mrb[0].mxu0
  %v3016 = vadd.f32 %v817, %v3015
  %v3017 = vpop.f32.mrb[0].mxu0
  %v3018 = vadd.f32 %v817, %v3017
  %3019 = vmatprep.mubr.bf16.mxu0 %v423
  %3020 = vmatmul.mubr.bf16.gmra.mrb[0].mxu0 %v422
  %v3021 = vpop.f32.mrb[0].mxu0
  %v3022 = vadd.f32 %v822, %v3021
  %v3023 = vpop.f32.mrb[0].mxu0
  %v3024 = vadd.f32 %v822, %v3023
  %v3025 = vpop.f32.mrb[0].mxu0
  %v3026 = vadd.f32 %v827, %v3025
  %v3027 = vpop.f32.mrb[0].mxu0
  %v3028 = vadd.f32 %v827, %v3027
  %3029 = vmatprep.mubr.bf16.mxu0 %v426
  %3030 = vmatmul.mubr.bf16.gmra.mrb[0].mxu0 %v425
  %v3031 = vpop.f32.mrb[0].mxu0
  %v3032 = vadd.f32 %v832, %v3031
  %v3033 = vpop.f32.mrb[0].mxu0
  %v3034 = vadd.f32 %v832, %v3033
  %v3035 = vpop.f32.mrb[0].mxu0
  %v3036 = vadd.f32 %v837, %v3035
  %v3037 = vpop.f32.mrb[0].mxu0
  %v3038 = vadd.f32 %v837, %v3037
  %3039 = vmatprep.mubr.bf16.mxu0 %v429
  %3040 = vmatmul.mubr.bf16.gmra.mrb[0].mxu0 %v428
  %v3041 = vpop.f32.mrb[0].mxu0
  %v3042 = vadd.f32 %v842, %v3041
  %v3043 = vpop.f32.mrb[0].mxu0
  %v3044 = vadd.f32 %v842, %v3043
  %v3045 = vpop.f32.mrb[0].mxu0
  %v3046 = vadd.f32 %v847, %v3045
  %v3047 = vpop.f32.mrb[0].mxu0
  %v3048 = vadd.f32 %v847, %v3047
  %3049 = vmatprep.mubr.bf16.mxu0 %v432
  %3050 = vmatmul.mubr.bf16.gmra.mrb[0].mxu0 %v431
  %v3051 = vpop.f32.mrb[0].mxu0
  %v3052 = vadd.f32 %v852, %v3051
  %v3053 = vpop.f32.mrb[0].mxu0
  %v3054 = vadd.f32 %v852, %v3053
  %v3055 = vpop.f32.mrb[0].mxu0
  %v3056 = vadd.f32 %v857, %v3055
  %v3057 = vpop.f32.mrb[0].mxu0
  %v3058 = vadd.f32 %v857, %v3057
  %3059 = vmatprep.mubr.bf16.mxu0 %v435
  %3060 = vmatmul.mubr.bf16.gmra.mrb[0].mxu0 %v434
  %v3061 = vpop.f32.mrb[0].mxu0
  %v3062 = vadd.f32 %v862, %v3061
  %v3063 = vpop.f32.mrb[0].mxu0
  %v3064 = vadd.f32 %v862, %v3063
  %v3065 = vpop.f32.mrb[0].mxu0
  %v3066 = vadd.f32 %v867, %v3065
  %v3067 = vpop.f32.mrb[0].mxu0
  %v3068 = vadd.f32 %v867, %v3067
  %3069 = vdwg.mxu0
  %3070 = vmatprep.subr.bf16.mxu0 %v2042
  %3071 = vmatpush1.bf16.msra.mxu0 %v2041
  %3072 = vmatprep.subr.bf16.mxu0 %v2055
  %3073 = vmatpush1.bf16.msra.mxu0 %v2054
  %3074 = vmatprep.subr.bf16.mxu0 %v2068
  %3075 = vmatpush1.bf16.msra.mxu0 %v2067
  %3076 = vmatprep.subr.bf16.mxu0 %v2081
  %3077 = vmatpush1.bf16.msra.mxu0 %v2080
  %3078 = vmatprep.subr.bf16.mxu0 %v2094
  %3079 = vmatpush1.bf16.msra.mxu0 %v2093
  %3080 = vmatprep.subr.bf16.mxu0 %v2107
  %3081 = vmatpush1.bf16.msra.mxu0 %v2106
  %3082 = vmatprep.subr.bf16.mxu0 %v2120
  %3083 = vmatpush1.bf16.msra.mxu0 %v2119
  %3084 = vmatprep.subr.bf16.mxu0 %v2482
  %3085 = vmatpush1.bf16.msra.mxu0 %v2479
  %3086 = vmatprep.subr.bf16.mxu0 0
  %3087 = vmatpush1.bf16.msra.mxu0 0
  %3088 = vmatprep.subr.bf16.mxu0 0
  %3089 = vmatpush1.bf16.msra.mxu0 0
  %3090 = vmatprep.subr.bf16.mxu0 0
  %3091 = vmatpush1.bf16.msra.mxu0 0
  %3092 = vmatprep.subr.bf16.mxu0 0
  %3093 = vmatpush1.bf16.msra.mxu0 0
  %3094 = vmatprep.subr.bf16.mxu0 0
  %3095 = vmatpush1.bf16.msra.mxu0 0
  %3096 = vmatprep.subr.bf16.mxu0 0
  %3097 = vmatpush1.bf16.msra.mxu0 0
  %3098 = vmatprep.subr.bf16.mxu0 0
  %3099 = vmatpush1.bf16.msra.mxu0 0
  %3100 = vmatprep.subr.bf16.mxu0 0
  %3101 = vmatpush1.bf16.msra.mxu0 0
  %3102 = vmatprep.mubr.bf16.mxu0 0
  %3103 = vmatmul.mubr.bf16.gmra.mrb[0].mxu0 %v2442
  %v3104 = vpop.f32.mrb[0].mxu0
  %v3105 = vadd.f32 %v2992, %v3104
  %v3106 = vpop.f32.mrb[0].mxu0
  %v3107 = vadd.f32 %v2994, %v3106
  %v3108 = vpop.f32.mrb[0].mxu0
  %v3109 = vadd.f32 %v2996, %v3108
  %v3110 = vpop.f32.mrb[0].mxu0
  %v3111 = vadd.f32 %v2998, %v3110
  %3112 = vmatprep.mubr.bf16.mxu0 0
  %3113 = vmatmul.mubr.bf16.gmra.mrb[0].mxu0 %v2445
  %v3114 = vpop.f32.mrb[0].mxu0
  %v3115 = vadd.f32 %v3002, %v3114
  %v3116 = vpop.f32.mrb[0].mxu0
  %v3117 = vadd.f32 %v3004, %v3116
  %v3118 = vpop.f32.mrb[0].mxu0
  %v3119 = vadd.f32 %v3006, %v3118
  %v3120 = vpop.f32.mrb[0].mxu0
  %v3121 = vadd.f32 %v3008, %v3120
  %3122 = vmatprep.mubr.bf16.mxu0 0
  %3123 = vmatmul.mubr.bf16.gmra.mrb[0].mxu0 %v2448
  %v3124 = vpop.f32.mrb[0].mxu0
  %v3125 = vadd.f32 %v3012, %v3124
  %v3126 = vpop.f32.mrb[0].mxu0
  %v3127 = vadd.f32 %v3014, %v3126
  %v3128 = vpop.f32.mrb[0].mxu0
  %v3129 = vadd.f32 %v3016, %v3128
  %v3130 = vpop.f32.mrb[0].mxu0
  %v3131 = vadd.f32 %v3018, %v3130
  %3132 = vmatprep.mubr.bf16.mxu0 0
  %3133 = vmatmul.mubr.bf16.gmra.mrb[0].mxu0 %v2451
  %v3134 = vpop.f32.mrb[0].mxu0
  %v3135 = vadd.f32 %v3022, %v3134
  %v3136 = vpop.f32.mrb[0].mxu0
  %v3137 = vadd.f32 %v3024, %v3136
  %v3138 = vpop.f32.mrb[0].mxu0
  %v3139 = vadd.f32 %v3026, %v3138
  %v3140 = vpop.f32.mrb[0].mxu0
  %v3141 = vadd.f32 %v3028, %v3140
  %3142 = vmatprep.mubr.bf16.mxu0 0
  %3143 = vmatmul.mubr.bf16.gmra.mrb[0].mxu0 %v2454
  %v3144 = vpop.f32.mrb[0].mxu0
  %v3145 = vadd.f32 %v3032, %v3144
  %v3146 = vpop.f32.mrb[0].mxu0
  %v3147 = vadd.f32 %v3034, %v3146
  %v3148 = vpop.f32.mrb[0].mxu0
  %v3149 = vadd.f32 %v3036, %v3148
  %v3150 = vpop.f32.mrb[0].mxu0
  %v3151 = vadd.f32 %v3038, %v3150
  %3152 = vmatprep.mubr.bf16.mxu0 0
  %3153 = vmatmul.mubr.bf16.gmra.mrb[0].mxu0 %v2457
  %v3154 = vpop.f32.mrb[0].mxu0
  %v3155 = vadd.f32 %v3042, %v3154
  %v3156 = vpop.f32.mrb[0].mxu0
  %v3157 = vadd.f32 %v3044, %v3156
  %v3158 = vpop.f32.mrb[0].mxu0
  %v3159 = vadd.f32 %v3046, %v3158
  %v3160 = vpop.f32.mrb[0].mxu0
  %v3161 = vadd.f32 %v3048, %v3160
  %3162 = vmatprep.mubr.bf16.mxu0 0
  %3163 = vmatmul.mubr.bf16.gmra.mrb[0].mxu0 %v2460
  %v3164 = vpop.f32.mrb[0].mxu0
  %v3165 = vadd.f32 %v3052, %v3164
  %v3166 = vpop.f32.mrb[0].mxu0
  %v3167 = vadd.f32 %v3054, %v3166
  %v3168 = vpop.f32.mrb[0].mxu0
  %v3169 = vadd.f32 %v3056, %v3168
  %v3170 = vpop.f32.mrb[0].mxu0
  %v3171 = vadd.f32 %v3058, %v3170
  %3172 = vmatprep.mubr.bf16.mxu0 0
  %3173 = vmatmul.mubr.bf16.gmra.mrb[0].mxu0 %v2463
  %v3174 = vpop.f32.mrb[0].mxu0
  %v3175 = vadd.f32 %v3062, %v3174
  %v3176 = vpop.f32.mrb[0].mxu0
  %v3177 = vadd.f32 %v3064, %v3176
  %v3178 = vpop.f32.mrb[0].mxu0
  %v3179 = vadd.f32 %v3066, %v3178
  %v3180 = vpop.f32.mrb[0].mxu0
  %v3181 = vadd.f32 %v3068, %v3180
  %3182 = vdwg.mxu0
  %3183 = vmatprep.subr.bf16.mxu0 %v1836
  %3184 = vmatpush1.bf16.msra.mxu0 %v1835
  %3185 = vmatprep.subr.bf16.mxu0 %v1849
  %3186 = vmatpush1.bf16.msra.mxu0 %v1848
  %3187 = vmatprep.subr.bf16.mxu0 %v1862
  %3188 = vmatpush1.bf16.msra.mxu0 %v1861
  %3189 = vmatprep.subr.bf16.mxu0 %v1875
  %3190 = vmatpush1.bf16.msra.mxu0 %v1874
  %3191 = vmatprep.subr.bf16.mxu0 %v1888
  %3192 = vmatpush1.bf16.msra.mxu0 %v1887
  %3193 = vmatprep.subr.bf16.mxu0 %v1901
  %3194 = vmatpush1.bf16.msra.mxu0 %v1900
  %3195 = vmatprep.subr.bf16.mxu0 %v1914
  %3196 = vmatpush1.bf16.msra.mxu0 %v1913
  %3197 = vmatprep.subr.bf16.mxu0 %v1927
  %3198 = vmatpush1.bf16.msra.mxu0 %v1926
  %3199 = vmatprep.subr.bf16.mxu0 %v1940
  %3200 = vmatpush1.bf16.msra.mxu0 %v1939
  %3201 = vmatprep.subr.bf16.mxu0 %v1953
  %3202 = vmatpush1.bf16.msra.mxu0 %v1952
  %3203 = vmatprep.subr.bf16.mxu0 %v1966
  %3204 = vmatpush1.bf16.msra.mxu0 %v1965
  %3205 = vmatprep.subr.bf16.mxu0 %v1979
  %3206 = vmatpush1.bf16.msra.mxu0 %v1978
  %3207 = vmatprep.subr.bf16.mxu0 %v1992
  %3208 = vmatpush1.bf16.msra.mxu0 %v1991
  %3209 = vmatprep.subr.bf16.mxu0 %v2005
  %3210 = vmatpush1.bf16.msra.mxu0 %v2004
  %3211 = vmatprep.subr.bf16.mxu0 %v2018
  %3212 = vmatpush1.bf16.msra.mxu0 %v2017
  %3213 = vmatprep.subr.bf16.mxu0 %v2031
  %3214 = vmatpush1.bf16.msra.mxu0 %v2030
  %3215 = vmatprep.mubr.bf16.mxu0 %v414
  %3216 = vmatmul.mubr.bf16.gmra.mrb[0].mxu0 %v413
  %v3217 = vpop.f32.mrb[0].mxu0
  %v3218 = vadd.f32 %v792, %v3217
  %v3219 = vpop.f32.mrb[0].mxu0
  %v3220 = vadd.f32 %v792, %v3219
  %v3221 = vpop.f32.mrb[0].mxu0
  %v3222 = vadd.f32 %v797, %v3221
  %v3223 = vpop.f32.mrb[0].mxu0
  %v3224 = vadd.f32 %v797, %v3223
  %3225 = vmatprep.mubr.bf16.mxu0 %v417
  %3226 = vmatmul.mubr.bf16.gmra.mrb[0].mxu0 %v416
  %v3227 = vpop.f32.mrb[0].mxu0
  %v3228 = vadd.f32 %v802, %v3227
  %v3229 = vpop.f32.mrb[0].mxu0
  %v3230 = vadd.f32 %v802, %v3229
  %v3231 = vpop.f32.mrb[0].mxu0
  %v3232 = vadd.f32 %v807, %v3231
  %v3233 = vpop.f32.mrb[0].mxu0
  %v3234 = vadd.f32 %v807, %v3233
  %3235 = vmatprep.mubr.bf16.mxu0 %v420
  %3236 = vmatmul.mubr.bf16.gmra.mrb[0].mxu0 %v419
  %v3237 = vpop.f32.mrb[0].mxu0
  %v3238 = vadd.f32 %v812, %v3237
  %v3239 = vpop.f32.mrb[0].mxu0
  %v3240 = vadd.f32 %v812, %v3239
  %v3241 = vpop.f32.mrb[0].mxu0
  %v3242 = vadd.f32 %v817, %v3241
  %v3243 = vpop.f32.mrb[0].mxu0
  %v3244 = vadd.f32 %v817, %v3243
  %3245 = vmatprep.mubr.bf16.mxu0 %v423
  %3246 = vmatmul.mubr.bf16.gmra.mrb[0].mxu0 %v422
  %v3247 = vpop.f32.mrb[0].mxu0
  %v3248 = vadd.f32 %v822, %v3247
  %v3249 = vpop.f32.mrb[0].mxu0
  %v3250 = vadd.f32 %v822, %v3249
  %v3251 = vpop.f32.mrb[0].mxu0
  %v3252 = vadd.f32 %v827, %v3251
  %v3253 = vpop.f32.mrb[0].mxu0
  %v3254 = vadd.f32 %v827, %v3253
  %3255 = vmatprep.mubr.bf16.mxu0 %v426
  %3256 = vmatmul.mubr.bf16.gmra.mrb[0].mxu0 %v425
  %v3257 = vpop.f32.mrb[0].mxu0
  %v3258 = vadd.f32 %v832, %v3257
  %v3259 = vpop.f32.mrb[0].mxu0
  %v3260 = vadd.f32 %v832, %v3259
  %v3261 = vpop.f32.mrb[0].mxu0
  %v3262 = vadd.f32 %v837, %v3261
  %v3263 = vpop.f32.mrb[0].mxu0
  %v3264 = vadd.f32 %v837, %v3263
  %3265 = vmatprep.mubr.bf16.mxu0 %v429
  %3266 = vmatmul.mubr.bf16.gmra.mrb[0].mxu0 %v428
  %v3267 = vpop.f32.mrb[0].mxu0
  %v3268 = vadd.f32 %v842, %v3267
  %v3269 = vpop.f32.mrb[0].mxu0
  %v3270 = vadd.f32 %v842, %v3269
  %v3271 = vpop.f32.mrb[0].mxu0
  %v3272 = vadd.f32 %v847, %v3271
  %v3273 = vpop.f32.mrb[0].mxu0
  %v3274 = vadd.f32 %v847, %v3273
  %3275 = vmatprep.mubr.bf16.mxu0 %v432
  %3276 = vmatmul.mubr.bf16.gmra.mrb[0].mxu0 %v431
  %v3277 = vpop.f32.mrb[0].mxu0
  %v3278 = vadd.f32 %v852, %v3277
  %v3279 = vpop.f32.mrb[0].mxu0
  %v3280 = vadd.f32 %v852, %v3279
  %v3281 = vpop.f32.mrb[0].mxu0
  %v3282 = vadd.f32 %v857, %v3281
  %v3283 = vpop.f32.mrb[0].mxu0
  %v3284 = vadd.f32 %v857, %v3283
  %3285 = vmatprep.mubr.bf16.mxu0 %v435
  %3286 = vmatmul.mubr.bf16.gmra.mrb[0].mxu0 %v434
  %v3287 = vpop.f32.mrb[0].mxu0
  %v3288 = vadd.f32 %v862, %v3287
  %v3289 = vpop.f32.mrb[0].mxu0
  %v3290 = vadd.f32 %v862, %v3289
  %v3291 = vpop.f32.mrb[0].mxu0
  %v3292 = vadd.f32 %v867, %v3291
  %v3293 = vpop.f32.mrb[0].mxu0
  %v3294 = vadd.f32 %v867, %v3293
  %3295 = vdwg.mxu0
  %3296 = vmatprep.subr.bf16.mxu0 %v2044
  %3297 = vmatpush1.bf16.msra.mxu0 %v2043
  %3298 = vmatprep.subr.bf16.mxu0 %v2057
  %3299 = vmatpush1.bf16.msra.mxu0 %v2056
  %3300 = vmatprep.subr.bf16.mxu0 %v2070
  %3301 = vmatpush1.bf16.msra.mxu0 %v2069
  %3302 = vmatprep.subr.bf16.mxu0 %v2083
  %3303 = vmatpush1.bf16.msra.mxu0 %v2082
  %3304 = vmatprep.subr.bf16.mxu0 %v2096
  %3305 = vmatpush1.bf16.msra.mxu0 %v2095
  %3306 = vmatprep.subr.bf16.mxu0 %v2109
  %3307 = vmatpush1.bf16.msra.mxu0 %v2108
  %3308 = vmatprep.subr.bf16.mxu0 %v2122
  %3309 = vmatpush1.bf16.msra.mxu0 %v2121
  %3310 = vmatprep.subr.bf16.mxu0 %v2488
  %3311 = vmatpush1.bf16.msra.mxu0 %v2485
  %3312 = vmatprep.subr.bf16.mxu0 0
  %3313 = vmatpush1.bf16.msra.mxu0 0
  %3314 = vmatprep.subr.bf16.mxu0 0
  %3315 = vmatpush1.bf16.msra.mxu0 0
  %3316 = vmatprep.subr.bf16.mxu0 0
  %3317 = vmatpush1.bf16.msra.mxu0 0
  %3318 = vmatprep.subr.bf16.mxu0 0
  %3319 = vmatpush1.bf16.msra.mxu0 0
  %3320 = vmatprep.subr.bf16.mxu0 0
  %3321 = vmatpush1.bf16.msra.mxu0 0
  %3322 = vmatprep.subr.bf16.mxu0 0
  %3323 = vmatpush1.bf16.msra.mxu0 0
  %3324 = vmatprep.subr.bf16.mxu0 0
  %3325 = vmatpush1.bf16.msra.mxu0 0
  %3326 = vmatprep.subr.bf16.mxu0 0
  %3327 = vmatpush1.bf16.msra.mxu0 0
  %3328 = vmatprep.mubr.bf16.mxu0 0
  %3329 = vmatmul.mubr.bf16.gmra.mrb[0].mxu0 %v2442
  %v3330 = vpop.f32.mrb[0].mxu0
  %v3331 = vadd.f32 %v3218, %v3330
  %v3332 = vpop.f32.mrb[0].mxu0
  %v3333 = vadd.f32 %v3220, %v3332
  %v3334 = vpop.f32.mrb[0].mxu0
  %v3335 = vadd.f32 %v3222, %v3334
  %v3336 = vpop.f32.mrb[0].mxu0
  %v3337 = vadd.f32 %v3224, %v3336
  %3338 = vmatprep.mubr.bf16.mxu0 0
  %3339 = vmatmul.mubr.bf16.gmra.mrb[0].mxu0 %v2445
  %v3340 = vpop.f32.mrb[0].mxu0
  %v3341 = vadd.f32 %v3228, %v3340
  %v3342 = vpop.f32.mrb[0].mxu0
  %v3343 = vadd.f32 %v3230, %v3342
  %v3344 = vpop.f32.mrb[0].mxu0
  %v3345 = vadd.f32 %v3232, %v3344
  %v3346 = vpop.f32.mrb[0].mxu0
  %v3347 = vadd.f32 %v3234, %v3346
  %3348 = vmatprep.mubr.bf16.mxu0 0
  %3349 = vmatmul.mubr.bf16.gmra.mrb[0].mxu0 %v2448
  %v3350 = vpop.f32.mrb[0].mxu0
  %v3351 = vadd.f32 %v3238, %v3350
  %v3352 = vpop.f32.mrb[0].mxu0
  %v3353 = vadd.f32 %v3240, %v3352
  %v3354 = vpop.f32.mrb[0].mxu0
  %v3355 = vadd.f32 %v3242, %v3354
  %v3356 = vpop.f32.mrb[0].mxu0
  %v3357 = vadd.f32 %v3244, %v3356
  %3358 = vmatprep.mubr.bf16.mxu0 0
  %3359 = vmatmul.mubr.bf16.gmra.mrb[0].mxu0 %v2451
  %v3360 = vpop.f32.mrb[0].mxu0
  %v3361 = vadd.f32 %v3248, %v3360
  %v3362 = vpop.f32.mrb[0].mxu0
  %v3363 = vadd.f32 %v3250, %v3362
  %v3364 = vpop.f32.mrb[0].mxu0
  %v3365 = vadd.f32 %v3252, %v3364
  %v3366 = vpop.f32.mrb[0].mxu0
  %v3367 = vadd.f32 %v3254, %v3366
  %3368 = vmatprep.mubr.bf16.mxu0 0
  %3369 = vmatmul.mubr.bf16.gmra.mrb[0].mxu0 %v2454
  %v3370 = vpop.f32.mrb[0].mxu0
  %v3371 = vadd.f32 %v3258, %v3370
  %v3372 = vpop.f32.mrb[0].mxu0
  %v3373 = vadd.f32 %v3260, %v3372
  %v3374 = vpop.f32.mrb[0].mxu0
  %v3375 = vadd.f32 %v3262, %v3374
  %v3376 = vpop.f32.mrb[0].mxu0
  %v3377 = vadd.f32 %v3264, %v3376
  %3378 = vmatprep.mubr.bf16.mxu0 0
  %3379 = vmatmul.mubr.bf16.gmra.mrb[0].mxu0 %v2457
  %v3380 = vpop.f32.mrb[0].mxu0
  %v3381 = vadd.f32 %v3268, %v3380
  %v3382 = vpop.f32.mrb[0].mxu0
  %v3383 = vadd.f32 %v3270, %v3382
  %v3384 = vpop.f32.mrb[0].mxu0
  %v3385 = vadd.f32 %v3272, %v3384
  %v3386 = vpop.f32.mrb[0].mxu0
  %v3387 = vadd.f32 %v3274, %v3386
  %3388 = vmatprep.mubr.bf16.mxu0 0
  %3389 = vmatmul.mubr.bf16.gmra.mrb[0].mxu0 %v2460
  %v3390 = vpop.f32.mrb[0].mxu0
  %v3391 = vadd.f32 %v3278, %v3390
  %v3392 = vpop.f32.mrb[0].mxu0
  %v3393 = vadd.f32 %v3280, %v3392
  %v3394 = vpop.f32.mrb[0].mxu0
  %v3395 = vadd.f32 %v3282, %v3394
  %v3396 = vpop.f32.mrb[0].mxu0
  %v3397 = vadd.f32 %v3284, %v3396
  %3398 = vmatprep.mubr.bf16.mxu0 0
  %3399 = vmatmul.mubr.bf16.gmra.mrb[0].mxu0 %v2463
  %v3400 = vpop.f32.mrb[0].mxu0
  %v3401 = vadd.f32 %v3288, %v3400
  %v3402 = vpop.f32.mrb[0].mxu0
  %v3403 = vadd.f32 %v3290, %v3402
  %v3404 = vpop.f32.mrb[0].mxu0
  %v3405 = vadd.f32 %v3292, %v3404
  %v3406 = vpop.f32.mrb[0].mxu0
  %v3407 = vadd.f32 %v3294, %v3406
  %3408 = vdwg.mxu0
  %3409 = vmatprep.subr.bf16.mxu0 %v1838
  %3410 = vmatpush1.bf16.msra.mxu0 %v1837
  %3411 = vmatprep.subr.bf16.mxu0 %v1851
  %3412 = vmatpush1.bf16.msra.mxu0 %v1850
  %3413 = vmatprep.subr.bf16.mxu0 %v1864
  %3414 = vmatpush1.bf16.msra.mxu0 %v1863
  %3415 = vmatprep.subr.bf16.mxu0 %v1877
  %3416 = vmatpush1.bf16.msra.mxu0 %v1876
  %3417 = vmatprep.subr.bf16.mxu0 %v1890
  %3418 = vmatpush1.bf16.msra.mxu0 %v1889
  %3419 = vmatprep.subr.bf16.mxu0 %v1903
  %3420 = vmatpush1.bf16.msra.mxu0 %v1902
  %3421 = vmatprep.subr.bf16.mxu0 %v1916
  %3422 = vmatpush1.bf16.msra.mxu0 %v1915
  %3423 = vmatprep.subr.bf16.mxu0 %v1929
  %3424 = vmatpush1.bf16.msra.mxu0 %v1928
  %3425 = vmatprep.subr.bf16.mxu0 %v1942
  %3426 = vmatpush1.bf16.msra.mxu0 %v1941
  %3427 = vmatprep.subr.bf16.mxu0 %v1955
  %3428 = vmatpush1.bf16.msra.mxu0 %v1954
  %3429 = vmatprep.subr.bf16.mxu0 %v1968
  %3430 = vmatpush1.bf16.msra.mxu0 %v1967
  %3431 = vmatprep.subr.bf16.mxu0 %v1981
  %3432 = vmatpush1.bf16.msra.mxu0 %v1980
  %3433 = vmatprep.subr.bf16.mxu0 %v1994
  %3434 = vmatpush1.bf16.msra.mxu0 %v1993
  %3435 = vmatprep.subr.bf16.mxu0 %v2007
  %3436 = vmatpush1.bf16.msra.mxu0 %v2006
  %3437 = vmatprep.subr.bf16.mxu0 %v2020
  %3438 = vmatpush1.bf16.msra.mxu0 %v2019
  %3439 = vmatprep.subr.bf16.mxu0 %v2033
  %3440 = vmatpush1.bf16.msra.mxu0 %v2032
  %3441 = vmatprep.mubr.bf16.mxu0 %v414
  %3442 = vmatmul.mubr.bf16.gmra.mrb[0].mxu0 %v413
  %v3443 = vpop.f32.mrb[0].mxu0
  %v3444 = vadd.f32 %v792, %v3443
  %v3445 = vpop.f32.mrb[0].mxu0
  %v3446 = vadd.f32 %v792, %v3445
  %v3447 = vpop.f32.mrb[0].mxu0
  %v3448 = vadd.f32 %v797, %v3447
  %v3449 = vpop.f32.mrb[0].mxu0
  %v3450 = vadd.f32 %v797, %v3449
  %3451 = vmatprep.mubr.bf16.mxu0 %v417
  %3452 = vmatmul.mubr.bf16.gmra.mrb[0].mxu0 %v416
  %v3453 = vpop.f32.mrb[0].mxu0
  %v3454 = vadd.f32 %v802, %v3453
  %v3455 = vpop.f32.mrb[0].mxu0
  %v3456 = vadd.f32 %v802, %v3455
  %v3457 = vpop.f32.mrb[0].mxu0
  %v3458 = vadd.f32 %v807, %v3457
  %v3459 = vpop.f32.mrb[0].mxu0
  %v3460 = vadd.f32 %v807, %v3459
  %3461 = vmatprep.mubr.bf16.mxu0 %v420
  %3462 = vmatmul.mubr.bf16.gmra.mrb[0].mxu0 %v419
  %v3463 = vpop.f32.mrb[0].mxu0
  %v3464 = vadd.f32 %v812, %v3463
  %v3465 = vpop.f32.mrb[0].mxu0
  %v3466 = vadd.f32 %v812, %v3465
  %v3467 = vpop.f32.mrb[0].mxu0
  %v3468 = vadd.f32 %v817, %v3467
  %v3469 = vpop.f32.mrb[0].mxu0
  %v3470 = vadd.f32 %v817, %v3469
  %3471 = vmatprep.mubr.bf16.mxu0 %v423
  %3472 = vmatmul.mubr.bf16.gmra.mrb[0].mxu0 %v422
  %v3473 = vpop.f32.mrb[0].mxu0
  %v3474 = vadd.f32 %v822, %v3473
  %v3475 = vpop.f32.mrb[0].mxu0
  %v3476 = vadd.f32 %v822, %v3475
  %v3477 = vpop.f32.mrb[0].mxu0
  %v3478 = vadd.f32 %v827, %v3477
  %v3479 = vpop.f32.mrb[0].mxu0
  %v3480 = vadd.f32 %v827, %v3479
  %3481 = vmatprep.mubr.bf16.mxu0 %v426
  %3482 = vmatmul.mubr.bf16.gmra.mrb[0].mxu0 %v425
  %v3483 = vpop.f32.mrb[0].mxu0
  %v3484 = vadd.f32 %v832, %v3483
  %v3485 = vpop.f32.mrb[0].mxu0
  %v3486 = vadd.f32 %v832, %v3485
  %v3487 = vpop.f32.mrb[0].mxu0
  %v3488 = vadd.f32 %v837, %v3487
  %v3489 = vpop.f32.mrb[0].mxu0
  %v3490 = vadd.f32 %v837, %v3489
  %3491 = vmatprep.mubr.bf16.mxu0 %v429
  %3492 = vmatmul.mubr.bf16.gmra.mrb[0].mxu0 %v428
  %v3493 = vpop.f32.mrb[0].mxu0
  %v3494 = vadd.f32 %v842, %v3493
  %v3495 = vpop.f32.mrb[0].mxu0
  %v3496 = vadd.f32 %v842, %v3495
  %v3497 = vpop.f32.mrb[0].mxu0
  %v3498 = vadd.f32 %v847, %v3497
  %v3499 = vpop.f32.mrb[0].mxu0
  %v3500 = vadd.f32 %v847, %v3499
  %3501 = vmatprep.mubr.bf16.mxu0 %v432
  %3502 = vmatmul.mubr.bf16.gmra.mrb[0].mxu0 %v431
  %v3503 = vpop.f32.mrb[0].mxu0
  %v3504 = vadd.f32 %v852, %v3503
  %v3505 = vpop.f32.mrb[0].mxu0
  %v3506 = vadd.f32 %v852, %v3505
  %v3507 = vpop.f32.mrb[0].mxu0
  %v3508 = vadd.f32 %v857, %v3507
  %v3509 = vpop.f32.mrb[0].mxu0
  %v3510 = vadd.f32 %v857, %v3509
  %3511 = vmatprep.mubr.bf16.mxu0 %v435
  %3512 = vmatmul.mubr.bf16.gmra.mrb[0].mxu0 %v434
  %v3513 = vpop.f32.mrb[0].mxu0
  %v3514 = vadd.f32 %v862, %v3513
  %v3515 = vpop.f32.mrb[0].mxu0
  %v3516 = vadd.f32 %v862, %v3515
  %v3517 = vpop.f32.mrb[0].mxu0
  %v3518 = vadd.f32 %v867, %v3517
  %v3519 = vpop.f32.mrb[0].mxu0
  %v3520 = vadd.f32 %v867, %v3519
  %3521 = vdwg.mxu0
  %3522 = vmatprep.subr.bf16.mxu0 %v2046
  %3523 = vmatpush1.bf16.msra.mxu0 %v2045
  %3524 = vmatprep.subr.bf16.mxu0 %v2059
  %3525 = vmatpush1.bf16.msra.mxu0 %v2058
  %3526 = vmatprep.subr.bf16.mxu0 %v2072
  %3527 = vmatpush1.bf16.msra.mxu0 %v2071
  %3528 = vmatprep.subr.bf16.mxu0 %v2085
  %3529 = vmatpush1.bf16.msra.mxu0 %v2084
  %3530 = vmatprep.subr.bf16.mxu0 %v2098
  %3531 = vmatpush1.bf16.msra.mxu0 %v2097
  %3532 = vmatprep.subr.bf16.mxu0 %v2111
  %3533 = vmatpush1.bf16.msra.mxu0 %v2110
  %3534 = vmatprep.subr.bf16.mxu0 %v2124
  %3535 = vmatpush1.bf16.msra.mxu0 %v2123
  %3536 = vmatprep.subr.bf16.mxu0 %v2494
  %3537 = vmatpush1.bf16.msra.mxu0 %v2491
  %3538 = vmatprep.subr.bf16.mxu0 0
  %3539 = vmatpush1.bf16.msra.mxu0 0
  %3540 = vmatprep.subr.bf16.mxu0 0
  %3541 = vmatpush1.bf16.msra.mxu0 0
  %3542 = vmatprep.subr.bf16.mxu0 0
  %3543 = vmatpush1.bf16.msra.mxu0 0
  %3544 = vmatprep.subr.bf16.mxu0 0
  %3545 = vmatpush1.bf16.msra.mxu0 0
  %3546 = vmatprep.subr.bf16.mxu0 0
  %3547 = vmatpush1.bf16.msra.mxu0 0
  %3548 = vmatprep.subr.bf16.mxu0 0
  %3549 = vmatpush1.bf16.msra.mxu0 0
  %3550 = vmatprep.subr.bf16.mxu0 0
  %3551 = vmatpush1.bf16.msra.mxu0 0
  %3552 = vmatprep.subr.bf16.mxu0 0
  %3553 = vmatpush1.bf16.msra.mxu0 0
  %3554 = vmatprep.mubr.bf16.mxu0 0
  %3555 = vmatmul.mubr.bf16.gmra.mrb[0].mxu0 %v2442
  %v3556 = vpop.f32.mrb[0].mxu0
  %v3557 = vadd.f32 %v3444, %v3556
  %v3558 = vpop.f32.mrb[0].mxu0
  %v3559 = vadd.f32 %v3446, %v3558
  %v3560 = vpop.f32.mrb[0].mxu0
  %v3561 = vadd.f32 %v3448, %v3560
  %v3562 = vpop.f32.mrb[0].mxu0
  %v3563 = vadd.f32 %v3450, %v3562
  %3564 = vmatprep.mubr.bf16.mxu0 0
  %3565 = vmatmul.mubr.bf16.gmra.mrb[0].mxu0 %v2445
  %v3566 = vpop.f32.mrb[0].mxu0
  %v3567 = vadd.f32 %v3454, %v3566
  %v3568 = vpop.f32.mrb[0].mxu0
  %v3569 = vadd.f32 %v3456, %v3568
  %v3570 = vpop.f32.mrb[0].mxu0
  %v3571 = vadd.f32 %v3458, %v3570
  %v3572 = vpop.f32.mrb[0].mxu0
  %v3573 = vadd.f32 %v3460, %v3572
  %3574 = vmatprep.mubr.bf16.mxu0 0
  %3575 = vmatmul.mubr.bf16.gmra.mrb[0].mxu0 %v2448
  %v3576 = vpop.f32.mrb[0].mxu0
  %v3577 = vadd.f32 %v3464, %v3576
  %v3578 = vpop.f32.mrb[0].mxu0
  %v3579 = vadd.f32 %v3466, %v3578
  %v3580 = vpop.f32.mrb[0].mxu0
  %v3581 = vadd.f32 %v3468, %v3580
  %v3582 = vpop.f32.mrb[0].mxu0
  %v3583 = vadd.f32 %v3470, %v3582
  %3584 = vmatprep.mubr.bf16.mxu0 0
  %3585 = vmatmul.mubr.bf16.gmra.mrb[0].mxu0 %v2451
  %v3586 = vpop.f32.mrb[0].mxu0
  %v3587 = vadd.f32 %v3474, %v3586
  %v3588 = vpop.f32.mrb[0].mxu0
  %v3589 = vadd.f32 %v3476, %v3588
  %v3590 = vpop.f32.mrb[0].mxu0
  %v3591 = vadd.f32 %v3478, %v3590
  %v3592 = vpop.f32.mrb[0].mxu0
  %v3593 = vadd.f32 %v3480, %v3592
  %3594 = vmatprep.mubr.bf16.mxu0 0
  %3595 = vmatmul.mubr.bf16.gmra.mrb[0].mxu0 %v2454
  %v3596 = vpop.f32.mrb[0].mxu0
  %v3597 = vadd.f32 %v3484, %v3596
  %v3598 = vpop.f32.mrb[0].mxu0
  %v3599 = vadd.f32 %v3486, %v3598
  %v3600 = vpop.f32.mrb[0].mxu0
  %v3601 = vadd.f32 %v3488, %v3600
  %v3602 = vpop.f32.mrb[0].mxu0
  %v3603 = vadd.f32 %v3490, %v3602
  %3604 = vmatprep.mubr.bf16.mxu0 0
  %3605 = vmatmul.mubr.bf16.gmra.mrb[0].mxu0 %v2457
  %v3606 = vpop.f32.mrb[0].mxu0
  %v3607 = vadd.f32 %v3494, %v3606
  %v3608 = vpop.f32.mrb[0].mxu0
  %v3609 = vadd.f32 %v3496, %v3608
  %v3610 = vpop.f32.mrb[0].mxu0
  %v3611 = vadd.f32 %v3498, %v3610
  %v3612 = vpop.f32.mrb[0].mxu0
  %v3613 = vadd.f32 %v3500, %v3612
  %3614 = vmatprep.mubr.bf16.mxu0 0
  %3615 = vmatmul.mubr.bf16.gmra.mrb[0].mxu0 %v2460
  %v3616 = vpop.f32.mrb[0].mxu0
  %v3617 = vadd.f32 %v3504, %v3616
  %v3618 = vpop.f32.mrb[0].mxu0
  %v3619 = vadd.f32 %v3506, %v3618
  %v3620 = vpop.f32.mrb[0].mxu0
  %v3621 = vadd.f32 %v3508, %v3620
  %v3622 = vpop.f32.mrb[0].mxu0
  %v3623 = vadd.f32 %v3510, %v3622
  %3624 = vmatprep.mubr.bf16.mxu0 0
  %3625 = vmatmul.mubr.bf16.gmra.mrb[0].mxu0 %v2463
  %v3626 = vpop.f32.mrb[0].mxu0
  %v3627 = vadd.f32 %v3514, %v3626
  %v3628 = vpop.f32.mrb[0].mxu0
  %v3629 = vadd.f32 %v3516, %v3628
  %v3630 = vpop.f32.mrb[0].mxu0
  %v3631 = vadd.f32 %v3518, %v3630
  %v3632 = vpop.f32.mrb[0].mxu0
  %v3633 = vadd.f32 %v3520, %v3632
  %3634 = vdwg.mxu0
  %3635 = vmatprep.subr.bf16.mxu0 %v1840
  %3636 = vmatpush1.bf16.msra.mxu0 %v1839
  %3637 = vmatprep.subr.bf16.mxu0 %v1853
  %3638 = vmatpush1.bf16.msra.mxu0 %v1852
  %3639 = vmatprep.subr.bf16.mxu0 %v1866
  %3640 = vmatpush1.bf16.msra.mxu0 %v1865
  %3641 = vmatprep.subr.bf16.mxu0 %v1879
  %3642 = vmatpush1.bf16.msra.mxu0 %v1878
  %3643 = vmatprep.subr.bf16.mxu0 %v1892
  %3644 = vmatpush1.bf16.msra.mxu0 %v1891
  %3645 = vmatprep.subr.bf16.mxu0 %v1905
  %3646 = vmatpush1.bf16.msra.mxu0 %v1904
  %3647 = vmatprep.subr.bf16.mxu0 %v1918
  %3648 = vmatpush1.bf16.msra.mxu0 %v1917
  %3649 = vmatprep.subr.bf16.mxu0 %v1931
  %3650 = vmatpush1.bf16.msra.mxu0 %v1930
  %3651 = vmatprep.subr.bf16.mxu0 %v1944
  %3652 = vmatpush1.bf16.msra.mxu0 %v1943
  %3653 = vmatprep.subr.bf16.mxu0 %v1957
  %3654 = vmatpush1.bf16.msra.mxu0 %v1956
  %3655 = vmatprep.subr.bf16.mxu0 %v1970
  %3656 = vmatpush1.bf16.msra.mxu0 %v1969
  %3657 = vmatprep.subr.bf16.mxu0 %v1983
  %3658 = vmatpush1.bf16.msra.mxu0 %v1982
  %3659 = vmatprep.subr.bf16.mxu0 %v1996
  %3660 = vmatpush1.bf16.msra.mxu0 %v1995
  %3661 = vmatprep.subr.bf16.mxu0 %v2009
  %3662 = vmatpush1.bf16.msra.mxu0 %v2008
  %3663 = vmatprep.subr.bf16.mxu0 %v2022
  %3664 = vmatpush1.bf16.msra.mxu0 %v2021
  %3665 = vmatprep.subr.bf16.mxu0 %v2035
  %3666 = vmatpush1.bf16.msra.mxu0 %v2034
  %3667 = vmatprep.mubr.bf16.mxu0 %v414
  %3668 = vmatmul.mubr.bf16.gmra.mrb[0].mxu0 %v413
  %v3669 = vpop.f32.mrb[0].mxu0
  %v3670 = vadd.f32 %v792, %v3669
  %v3671 = vpop.f32.mrb[0].mxu0
  %v3672 = vadd.f32 %v792, %v3671
  %v3673 = vpop.f32.mrb[0].mxu0
  %v3674 = vadd.f32 %v797, %v3673
  %v3675 = vpop.f32.mrb[0].mxu0
  %v3676 = vadd.f32 %v797, %v3675
  %3677 = vmatprep.mubr.bf16.mxu0 %v417
  %3678 = vmatmul.mubr.bf16.gmra.mrb[0].mxu0 %v416
  %v3679 = vpop.f32.mrb[0].mxu0
  %v3680 = vadd.f32 %v802, %v3679
  %v3681 = vpop.f32.mrb[0].mxu0
  %v3682 = vadd.f32 %v802, %v3681
  %v3683 = vpop.f32.mrb[0].mxu0
  %v3684 = vadd.f32 %v807, %v3683
  %v3685 = vpop.f32.mrb[0].mxu0
  %v3686 = vadd.f32 %v807, %v3685
  %3687 = vmatprep.mubr.bf16.mxu0 %v420
  %3688 = vmatmul.mubr.bf16.gmra.mrb[0].mxu0 %v419
  %v3689 = vpop.f32.mrb[0].mxu0
  %v3690 = vadd.f32 %v812, %v3689
  %v3691 = vpop.f32.mrb[0].mxu0
  %v3692 = vadd.f32 %v812, %v3691
  %v3693 = vpop.f32.mrb[0].mxu0
  %v3694 = vadd.f32 %v817, %v3693
  %v3695 = vpop.f32.mrb[0].mxu0
  %v3696 = vadd.f32 %v817, %v3695
  %3697 = vmatprep.mubr.bf16.mxu0 %v423
  %3698 = vmatmul.mubr.bf16.gmra.mrb[0].mxu0 %v422
  %v3699 = vpop.f32.mrb[0].mxu0
  %v3700 = vadd.f32 %v822, %v3699
  %v3701 = vpop.f32.mrb[0].mxu0
  %v3702 = vadd.f32 %v822, %v3701
  %v3703 = vpop.f32.mrb[0].mxu0
  %v3704 = vadd.f32 %v827, %v3703
  %v3705 = vpop.f32.mrb[0].mxu0
  %v3706 = vadd.f32 %v827, %v3705
  %3707 = vmatprep.mubr.bf16.mxu0 %v426
  %3708 = vmatmul.mubr.bf16.gmra.mrb[0].mxu0 %v425
  %v3709 = vpop.f32.mrb[0].mxu0
  %v3710 = vadd.f32 %v832, %v3709
  %v3711 = vpop.f32.mrb[0].mxu0
  %v3712 = vadd.f32 %v832, %v3711
  %v3713 = vpop.f32.mrb[0].mxu0
  %v3714 = vadd.f32 %v837, %v3713
  %v3715 = vpop.f32.mrb[0].mxu0
  %v3716 = vadd.f32 %v837, %v3715
  %3717 = vmatprep.mubr.bf16.mxu0 %v429
  %3718 = vmatmul.mubr.bf16.gmra.mrb[0].mxu0 %v428
  %v3719 = vpop.f32.mrb[0].mxu0
  %v3720 = vadd.f32 %v842, %v3719
  %v3721 = vpop.f32.mrb[0].mxu0
  %v3722 = vadd.f32 %v842, %v3721
  %v3723 = vpop.f32.mrb[0].mxu0
  %v3724 = vadd.f32 %v847, %v3723
  %v3725 = vpop.f32.mrb[0].mxu0
  %v3726 = vadd.f32 %v847, %v3725
  %3727 = vmatprep.mubr.bf16.mxu0 %v432
  %3728 = vmatmul.mubr.bf16.gmra.mrb[0].mxu0 %v431
  %v3729 = vpop.f32.mrb[0].mxu0
  %v3730 = vadd.f32 %v852, %v3729
  %v3731 = vpop.f32.mrb[0].mxu0
  %v3732 = vadd.f32 %v852, %v3731
  %v3733 = vpop.f32.mrb[0].mxu0
  %v3734 = vadd.f32 %v857, %v3733
  %v3735 = vpop.f32.mrb[0].mxu0
  %v3736 = vadd.f32 %v857, %v3735
  %3737 = vmatprep.mubr.bf16.mxu0 %v435
  %3738 = vmatmul.mubr.bf16.gmra.mrb[0].mxu0 %v434
  %v3739 = vpop.f32.mrb[0].mxu0
  %v3740 = vadd.f32 %v862, %v3739
  %v3741 = vpop.f32.mrb[0].mxu0
  %v3742 = vadd.f32 %v862, %v3741
  %v3743 = vpop.f32.mrb[0].mxu0
  %v3744 = vadd.f32 %v867, %v3743
  %v3745 = vpop.f32.mrb[0].mxu0
  %v3746 = vadd.f32 %v867, %v3745
  %3747 = vdwg.mxu0
  %3748 = vmatprep.subr.bf16.mxu0 %v2048
  %3749 = vmatpush1.bf16.msra.mxu0 %v2047
  %3750 = vmatprep.subr.bf16.mxu0 %v2061
  %3751 = vmatpush1.bf16.msra.mxu0 %v2060
  %3752 = vmatprep.subr.bf16.mxu0 %v2074
  %3753 = vmatpush1.bf16.msra.mxu0 %v2073
  %3754 = vmatprep.subr.bf16.mxu0 %v2087
  %3755 = vmatpush1.bf16.msra.mxu0 %v2086
  %3756 = vmatprep.subr.bf16.mxu0 %v2100
  %3757 = vmatpush1.bf16.msra.mxu0 %v2099
  %3758 = vmatprep.subr.bf16.mxu0 %v2113
  %3759 = vmatpush1.bf16.msra.mxu0 %v2112
  %3760 = vmatprep.subr.bf16.mxu0 %v2126
  %3761 = vmatpush1.bf16.msra.mxu0 %v2125
  %3762 = vmatprep.subr.bf16.mxu0 %v2500
  %3763 = vmatpush1.bf16.msra.mxu0 %v2497
  %3764 = vmatprep.subr.bf16.mxu0 0
  %3765 = vmatpush1.bf16.msra.mxu0 0
  %3766 = vmatprep.subr.bf16.mxu0 0
  %3767 = vmatpush1.bf16.msra.mxu0 0
  %3768 = vmatprep.subr.bf16.mxu0 0
  %3769 = vmatpush1.bf16.msra.mxu0 0
  %3770 = vmatprep.subr.bf16.mxu0 0
  %3771 = vmatpush1.bf16.msra.mxu0 0
  %3772 = vmatprep.subr.bf16.mxu0 0
  %3773 = vmatpush1.bf16.msra.mxu0 0
  %3774 = vmatprep.subr.bf16.mxu0 0
  %3775 = vmatpush1.bf16.msra.mxu0 0
  %3776 = vmatprep.subr.bf16.mxu0 0
  %3777 = vmatpush1.bf16.msra.mxu0 0
  %3778 = vmatprep.subr.bf16.mxu0 0
  %3779 = vmatpush1.bf16.msra.mxu0 0
  %3780 = vmatprep.mubr.bf16.mxu0 0
  %3781 = vmatmul.mubr.bf16.gmra.mrb[0].mxu0 %v2442
  %v3782 = vpop.f32.mrb[0].mxu0
  %v3783 = vadd.f32 %v3670, %v3782
  %v3784 = vpop.f32.mrb[0].mxu0
  %v3785 = vadd.f32 %v3672, %v3784
  %v3786 = vpop.f32.mrb[0].mxu0
  %v3787 = vadd.f32 %v3674, %v3786
  %v3788 = vpop.f32.mrb[0].mxu0
  %v3789 = vadd.f32 %v3676, %v3788
  %3790 = vmatprep.mubr.bf16.mxu0 0
  %3791 = vmatmul.mubr.bf16.gmra.mrb[0].mxu0 %v2445
  %v3792 = vpop.f32.mrb[0].mxu0
  %v3793 = vadd.f32 %v3680, %v3792
  %v3794 = vpop.f32.mrb[0].mxu0
  %v3795 = vadd.f32 %v3682, %v3794
  %v3796 = vpop.f32.mrb[0].mxu0
  %v3797 = vadd.f32 %v3684, %v3796
  %v3798 = vpop.f32.mrb[0].mxu0
  %v3799 = vadd.f32 %v3686, %v3798
  %3800 = vmatprep.mubr.bf16.mxu0 0
  %3801 = vmatmul.mubr.bf16.gmra.mrb[0].mxu0 %v2448
  %v3802 = vpop.f32.mrb[0].mxu0
  %v3803 = vadd.f32 %v3690, %v3802
  %v3804 = vpop.f32.mrb[0].mxu0
  %v3805 = vadd.f32 %v3692, %v3804
  %v3806 = vpop.f32.mrb[0].mxu0
  %v3807 = vadd.f32 %v3694, %v3806
  %v3808 = vpop.f32.mrb[0].mxu0
  %v3809 = vadd.f32 %v3696, %v3808
  %3810 = vmatprep.mubr.bf16.mxu0 0
  %3811 = vmatmul.mubr.bf16.gmra.mrb[0].mxu0 %v2451
  %v3812 = vpop.f32.mrb[0].mxu0
  %v3813 = vadd.f32 %v3700, %v3812
  %v3814 = vpop.f32.mrb[0].mxu0
  %v3815 = vadd.f32 %v3702, %v3814
  %v3816 = vpop.f32.mrb[0].mxu0
  %v3817 = vadd.f32 %v3704, %v3816
  %v3818 = vpop.f32.mrb[0].mxu0
  %v3819 = vadd.f32 %v3706, %v3818
  %3820 = vmatprep.mubr.bf16.mxu0 0
  %3821 = vmatmul.mubr.bf16.gmra.mrb[0].mxu0 %v2454
  %v3822 = vpop.f32.mrb[0].mxu0
  %v3823 = vadd.f32 %v3710, %v3822
  %v3824 = vpop.f32.mrb[0].mxu0
  %v3825 = vadd.f32 %v3712, %v3824
  %v3826 = vpop.f32.mrb[0].mxu0
  %v3827 = vadd.f32 %v3714, %v3826
  %v3828 = vpop.f32.mrb[0].mxu0
  %v3829 = vadd.f32 %v3716, %v3828
  %3830 = vmatprep.mubr.bf16.mxu0 0
  %3831 = vmatmul.mubr.bf16.gmra.mrb[0].mxu0 %v2457
  %v3832 = vpop.f32.mrb[0].mxu0
  %v3833 = vadd.f32 %v3720, %v3832
  %v3834 = vpop.f32.mrb[0].mxu0
  %v3835 = vadd.f32 %v3722, %v3834
  %v3836 = vpop.f32.mrb[0].mxu0
  %v3837 = vadd.f32 %v3724, %v3836
  %v3838 = vpop.f32.mrb[0].mxu0
  %v3839 = vadd.f32 %v3726, %v3838
  %3840 = vmatprep.mubr.bf16.mxu0 0
  %3841 = vmatmul.mubr.bf16.gmra.mrb[0].mxu0 %v2460
  %v3842 = vpop.f32.mrb[0].mxu0
  %v3843 = vadd.f32 %v3730, %v3842
  %v3844 = vpop.f32.mrb[0].mxu0
  %v3845 = vadd.f32 %v3732, %v3844
  %v3846 = vpop.f32.mrb[0].mxu0
  %v3847 = vadd.f32 %v3734, %v3846
  %v3848 = vpop.f32.mrb[0].mxu0
  %v3849 = vadd.f32 %v3736, %v3848
  %3850 = vmatprep.mubr.bf16.mxu0 0
  %3851 = vmatmul.mubr.bf16.gmra.mrb[0].mxu0 %v2463
  %v3852 = vpop.f32.mrb[0].mxu0
  %v3853 = vadd.f32 %v3740, %v3852
  %v3854 = vpop.f32.mrb[0].mxu0
  %v3855 = vadd.f32 %v3742, %v3854
  %v3856 = vpop.f32.mrb[0].mxu0
  %v3857 = vadd.f32 %v3744, %v3856
  %v3858 = vpop.f32.mrb[0].mxu0
  %v3859 = vadd.f32 %v3746, %v3858
  %3860 = vdwg.mxu0
  %3861 = vmatprep.subr.bf16.mxu0 0
  %3862 = vmatpush1.bf16.msra.mxu0 %v1841
  %3863 = vmatprep.subr.bf16.mxu0 0
  %3864 = vmatpush1.bf16.msra.mxu0 %v1854
  %3865 = vmatprep.subr.bf16.mxu0 0
  %3866 = vmatpush1.bf16.msra.mxu0 %v1867
  %3867 = vmatprep.subr.bf16.mxu0 0
  %3868 = vmatpush1.bf16.msra.mxu0 %v1880
  %3869 = vmatprep.subr.bf16.mxu0 0
  %3870 = vmatpush1.bf16.msra.mxu0 %v1893
  %3871 = vmatprep.subr.bf16.mxu0 0
  %3872 = vmatpush1.bf16.msra.mxu0 %v1906
  %3873 = vmatprep.subr.bf16.mxu0 0
  %3874 = vmatpush1.bf16.msra.mxu0 %v1919
  %3875 = vmatprep.subr.bf16.mxu0 0
  %3876 = vmatpush1.bf16.msra.mxu0 %v1932
  %3877 = vmatprep.subr.bf16.mxu0 0
  %3878 = vmatpush1.bf16.msra.mxu0 %v1945
  %3879 = vmatprep.subr.bf16.mxu0 0
  %3880 = vmatpush1.bf16.msra.mxu0 %v1958
  %3881 = vmatprep.subr.bf16.mxu0 0
  %3882 = vmatpush1.bf16.msra.mxu0 %v1971
  %3883 = vmatprep.subr.bf16.mxu0 0
  %3884 = vmatpush1.bf16.msra.mxu0 %v1984
  %3885 = vmatprep.subr.bf16.mxu0 0
  %3886 = vmatpush1.bf16.msra.mxu0 %v1997
  %3887 = vmatprep.subr.bf16.mxu0 0
  %3888 = vmatpush1.bf16.msra.mxu0 %v2010
  %3889 = vmatprep.subr.bf16.mxu0 0
  %3890 = vmatpush1.bf16.msra.mxu0 %v2023
  %3891 = vmatprep.subr.bf16.mxu0 0
  %3892 = vmatpush1.bf16.msra.mxu0 %v2036
  %3893 = vmatprep.mubr.bf16.mxu0 %v414
  %3894 = vmatmul.mubr.bf16.gmra.mrb[0].mxu0 %v413
  %v3895 = vpop.f32.mrb[0].mxu0
  %v3896 = vadd.f32 %v792, %v3895
  %v3897 = vpop.f32.mrb[0].mxu0
  %v3898 = vpop.f32.mrb[0].mxu0
  %v3899 = vadd.f32 %v797, %v3898
  %v3900 = vpop.f32.mrb[0].mxu0
  %3901 = vmatprep.mubr.bf16.mxu0 %v417
  %3902 = vmatmul.mubr.bf16.gmra.mrb[0].mxu0 %v416
  %v3903 = vpop.f32.mrb[0].mxu0
  %v3904 = vadd.f32 %v802, %v3903
  %v3905 = vpop.f32.mrb[0].mxu0
  %v3906 = vpop.f32.mrb[0].mxu0
  %v3907 = vadd.f32 %v807, %v3906
  %v3908 = vpop.f32.mrb[0].mxu0
  %3909 = vmatprep.mubr.bf16.mxu0 %v420
  %3910 = vmatmul.mubr.bf16.gmra.mrb[0].mxu0 %v419
  %v3911 = vpop.f32.mrb[0].mxu0
  %v3912 = vadd.f32 %v812, %v3911
  %v3913 = vpop.f32.mrb[0].mxu0
  %v3914 = vpop.f32.mrb[0].mxu0
  %v3915 = vadd.f32 %v817, %v3914
  %v3916 = vpop.f32.mrb[0].mxu0
  %3917 = vmatprep.mubr.bf16.mxu0 %v423
  %3918 = vmatmul.mubr.bf16.gmra.mrb[0].mxu0 %v422
  %v3919 = vpop.f32.mrb[0].mxu0
  %v3920 = vadd.f32 %v822, %v3919
  %v3921 = vpop.f32.mrb[0].mxu0
  %v3922 = vpop.f32.mrb[0].mxu0
  %v3923 = vadd.f32 %v827, %v3922
  %v3924 = vpop.f32.mrb[0].mxu0
  %3925 = vmatprep.mubr.bf16.mxu0 %v426
  %3926 = vmatmul.mubr.bf16.gmra.mrb[0].mxu0 %v425
  %v3927 = vpop.f32.mrb[0].mxu0
  %v3928 = vadd.f32 %v832, %v3927
  %v3929 = vpop.f32.mrb[0].mxu0
  %v3930 = vpop.f32.mrb[0].mxu0
  %v3931 = vadd.f32 %v837, %v3930
  %v3932 = vpop.f32.mrb[0].mxu0
  %3933 = vmatprep.mubr.bf16.mxu0 %v429
  %3934 = vmatmul.mubr.bf16.gmra.mrb[0].mxu0 %v428
  %v3935 = vpop.f32.mrb[0].mxu0
  %v3936 = vadd.f32 %v842, %v3935
  %v3937 = vpop.f32.mrb[0].mxu0
  %v3938 = vpop.f32.mrb[0].mxu0
  %v3939 = vadd.f32 %v847, %v3938
  %v3940 = vpop.f32.mrb[0].mxu0
  %3941 = vmatprep.mubr.bf16.mxu0 %v432
  %3942 = vmatmul.mubr.bf16.gmra.mrb[0].mxu0 %v431
  %v3943 = vpop.f32.mrb[0].mxu0
  %v3944 = vadd.f32 %v852, %v3943
  %v3945 = vpop.f32.mrb[0].mxu0
  %v3946 = vpop.f32.mrb[0].mxu0
  %v3947 = vadd.f32 %v857, %v3946
  %v3948 = vpop.f32.mrb[0].mxu0
  %3949 = vmatprep.mubr.bf16.mxu0 %v435
  %3950 = vmatmul.mubr.bf16.gmra.mrb[0].mxu0 %v434
  %v3951 = vpop.f32.mrb[0].mxu0
  %v3952 = vadd.f32 %v862, %v3951
  %v3953 = vpop.f32.mrb[0].mxu0
  %v3954 = vpop.f32.mrb[0].mxu0
  %v3955 = vadd.f32 %v867, %v3954
  %v3956 = vpop.f32.mrb[0].mxu0
  %3957 = vdwg.mxu0
  %3958 = vmatprep.subr.bf16.mxu0 0
  %3959 = vmatpush1.bf16.msra.mxu0 %v2049
  %3960 = vmatprep.subr.bf16.mxu0 0
  %3961 = vmatpush1.bf16.msra.mxu0 %v2062
  %3962 = vmatprep.subr.bf16.mxu0 0
  %3963 = vmatpush1.bf16.msra.mxu0 %v2075
  %3964 = vmatprep.subr.bf16.mxu0 0
  %3965 = vmatpush1.bf16.msra.mxu0 %v2088
  %3966 = vmatprep.subr.bf16.mxu0 0
  %3967 = vmatpush1.bf16.msra.mxu0 %v2101
  %3968 = vmatprep.subr.bf16.mxu0 0
  %3969 = vmatpush1.bf16.msra.mxu0 %v2114
  %3970 = vmatprep.subr.bf16.mxu0 0
  %3971 = vmatpush1.bf16.msra.mxu0 %v2127
  %3972 = vmatprep.subr.bf16.mxu0 0
  %3973 = vmatpush1.bf16.msra.mxu0 %v2503
  %3974 = vmatprep.subr.bf16.mxu0 0
  %3975 = vmatpush1.bf16.msra.mxu0 0
  %3976 = vmatprep.subr.bf16.mxu0 0
  %3977 = vmatpush1.bf16.msra.mxu0 0
  %3978 = vmatprep.subr.bf16.mxu0 0
  %3979 = vmatpush1.bf16.msra.mxu0 0
  %3980 = vmatprep.subr.bf16.mxu0 0
  %3981 = vmatpush1.bf16.msra.mxu0 0
  %3982 = vmatprep.subr.bf16.mxu0 0
  %3983 = vmatpush1.bf16.msra.mxu0 0
  %3984 = vmatprep.subr.bf16.mxu0 0
  %3985 = vmatpush1.bf16.msra.mxu0 0
  %3986 = vmatprep.subr.bf16.mxu0 0
  %3987 = vmatpush1.bf16.msra.mxu0 0
  %3988 = vmatprep.subr.bf16.mxu0 0
  %3989 = vmatpush1.bf16.msra.mxu0 0
  %3990 = vmatprep.mubr.bf16.mxu0 0
  %3991 = vmatmul.mubr.bf16.gmra.mrb[0].mxu0 %v2442
  %v3992 = vpop.f32.mrb[0].mxu0
  %v3993 = vadd.f32 %v3896, %v3992
  %v3994 = vpop.f32.mrb[0].mxu0
  %v3995 = vpop.f32.mrb[0].mxu0
  %v3996 = vadd.f32 %v3899, %v3995
  %v3997 = vpop.f32.mrb[0].mxu0
  %3998 = vmatprep.mubr.bf16.mxu0 0
  %3999 = vmatmul.mubr.bf16.gmra.mrb[0].mxu0 %v2445
  %v4000 = vpop.f32.mrb[0].mxu0
  %v4001 = vadd.f32 %v3904, %v4000
  %v4002 = vpop.f32.mrb[0].mxu0
  %v4003 = vpop.f32.mrb[0].mxu0
  %v4004 = vadd.f32 %v3907, %v4003
  %v4005 = vpop.f32.mrb[0].mxu0
  %4006 = vmatprep.mubr.bf16.mxu0 0
  %4007 = vmatmul.mubr.bf16.gmra.mrb[0].mxu0 %v2448
  %v4008 = vpop.f32.mrb[0].mxu0
  %v4009 = vadd.f32 %v3912, %v4008
  %v4010 = vpop.f32.mrb[0].mxu0
  %v4011 = vpop.f32.mrb[0].mxu0
  %v4012 = vadd.f32 %v3915, %v4011
  %v4013 = vpop.f32.mrb[0].mxu0
  %4014 = vmatprep.mubr.bf16.mxu0 0
  %4015 = vmatmul.mubr.bf16.gmra.mrb[0].mxu0 %v2451
  %v4016 = vpop.f32.mrb[0].mxu0
  %v4017 = vadd.f32 %v3920, %v4016
  %v4018 = vpop.f32.mrb[0].mxu0
  %v4019 = vpop.f32.mrb[0].mxu0
  %v4020 = vadd.f32 %v3923, %v4019
  %v4021 = vpop.f32.mrb[0].mxu0
  %4022 = vmatprep.mubr.bf16.mxu0 0
  %4023 = vmatmul.mubr.bf16.gmra.mrb[0].mxu0 %v2454
  %v4024 = vpop.f32.mrb[0].mxu0
  %v4025 = vadd.f32 %v3928, %v4024
  %v4026 = vpop.f32.mrb[0].mxu0
  %v4027 = vpop.f32.mrb[0].mxu0
  %v4028 = vadd.f32 %v3931, %v4027
  %v4029 = vpop.f32.mrb[0].mxu0
  %4030 = vmatprep.mubr.bf16.mxu0 0
  %4031 = vmatmul.mubr.bf16.gmra.mrb[0].mxu0 %v2457
  %v4032 = vpop.f32.mrb[0].mxu0
  %v4033 = vadd.f32 %v3936, %v4032
  %v4034 = vpop.f32.mrb[0].mxu0
  %v4035 = vpop.f32.mrb[0].mxu0
  %v4036 = vadd.f32 %v3939, %v4035
  %v4037 = vpop.f32.mrb[0].mxu0
  %4038 = vmatprep.mubr.bf16.mxu0 0
  %4039 = vmatmul.mubr.bf16.gmra.mrb[0].mxu0 %v2460
  %v4040 = vpop.f32.mrb[0].mxu0
  %v4041 = vadd.f32 %v3944, %v4040
  %v4042 = vpop.f32.mrb[0].mxu0
  %v4043 = vpop.f32.mrb[0].mxu0
  %v4044 = vadd.f32 %v3947, %v4043
  %v4045 = vpop.f32.mrb[0].mxu0
  %4046 = vmatprep.mubr.bf16.mxu0 0
  %4047 = vmatmul.mubr.bf16.gmra.mrb[0].mxu0 %v2463
  %v4048 = vpop.f32.mrb[0].mxu0
  %v4049 = vadd.f32 %v3952, %v4048
  %v4050 = vpop.f32.mrb[0].mxu0
  %v4051 = vpop.f32.mrb[0].mxu0
  %v4052 = vadd.f32 %v3955, %v4051
  %v4053 = vpop.f32.mrb[0].mxu0
  %4054 = vdwg.mxu0
  %v4055 = vand.u32 2147483647, %v2653
  %v4056 = vand.u32 2147483647, %v2655
  %v4057 = vand.u32 2147483647, %v2879
  %v4058 = vand.u32 2147483647, %v2881
  %v4059 = vand.u32 2147483647, %v3105
  %v4060 = vand.u32 2147483647, %v3107
  %v4061 = vand.u32 2147483647, %v3331
  %v4062 = vand.u32 2147483647, %v3333
  %v4063 = vand.u32 2147483647, %v3557
  %v4064 = vand.u32 2147483647, %v3559
  %v4065 = vand.u32 2147483647, %v3783
  %v4066 = vand.u32 2147483647, %v3785
  %v4067 = vand.u32 2147483647, %v3993
  %v4068 = vand.u32 2147483647, %v2657
  %v4069 = vand.u32 2147483647, %v2659
  %v4070 = vand.u32 2147483647, %v2883
  %v4071 = vand.u32 2147483647, %v2885
  %v4072 = vand.u32 2147483647, %v3109
  %v4073 = vand.u32 2147483647, %v3111
  %v4074 = vand.u32 2147483647, %v3335
  %v4075 = vand.u32 2147483647, %v3337
  %v4076 = vand.u32 2147483647, %v3561
  %v4077 = vand.u32 2147483647, %v3563
  %v4078 = vand.u32 2147483647, %v3787
  %v4079 = vand.u32 2147483647, %v3789
  %v4080 = vand.u32 2147483647, %v3996
  %v4081 = vand.u32 2147483647, %v2663
  %v4082 = vand.u32 2147483647, %v2665
  %v4083 = vand.u32 2147483647, %v2889
  %v4084 = vand.u32 2147483647, %v2891
  %v4085 = vand.u32 2147483647, %v3115
  %v4086 = vand.u32 2147483647, %v3117
  %v4087 = vand.u32 2147483647, %v3341
  %v4088 = vand.u32 2147483647, %v3343
  %v4089 = vand.u32 2147483647, %v3567
  %v4090 = vand.u32 2147483647, %v3569
  %v4091 = vand.u32 2147483647, %v3793
  %v4092 = vand.u32 2147483647, %v3795
  %v4093 = vand.u32 2147483647, %v4001
  %v4094 = vand.u32 2147483647, %v2667
  %v4095 = vand.u32 2147483647, %v2669
  %v4096 = vand.u32 2147483647, %v2893
  %v4097 = vand.u32 2147483647, %v2895
  %v4098 = vand.u32 2147483647, %v3119
  %v4099 = vand.u32 2147483647, %v3121
  %v4100 = vand.u32 2147483647, %v3345
  %v4101 = vand.u32 2147483647, %v3347
  %v4102 = vand.u32 2147483647, %v3571
  %v4103 = vand.u32 2147483647, %v3573
  %v4104 = vand.u32 2147483647, %v3797
  %v4105 = vand.u32 2147483647, %v3799
  %v4106 = vand.u32 2147483647, %v4004
  %v4107 = vand.u32 2147483647, %v2673
  %v4108 = vand.u32 2147483647, %v2675
  %v4109 = vand.u32 2147483647, %v2899
  %v4110 = vand.u32 2147483647, %v2901
  %v4111 = vand.u32 2147483647, %v3125
  %v4112 = vand.u32 2147483647, %v3127
  %v4113 = vand.u32 2147483647, %v3351
  %v4114 = vand.u32 2147483647, %v3353
  %v4115 = vand.u32 2147483647, %v3577
  %v4116 = vand.u32 2147483647, %v3579
  %v4117 = vand.u32 2147483647, %v3803
  %v4118 = vand.u32 2147483647, %v3805
  %v4119 = vand.u32 2147483647, %v4009
  %v4120 = vand.u32 2147483647, %v2677
  %v4121 = vand.u32 2147483647, %v2679
  %v4122 = vand.u32 2147483647, %v2903
  %v4123 = vand.u32 2147483647, %v2905
  %v4124 = vand.u32 2147483647, %v3129
  %v4125 = vand.u32 2147483647, %v3131
  %v4126 = vand.u32 2147483647, %v3355
  %v4127 = vand.u32 2147483647, %v3357
  %v4128 = vand.u32 2147483647, %v3581
  %v4129 = vand.u32 2147483647, %v3583
  %v4130 = vand.u32 2147483647, %v3807
  %v4131 = vand.u32 2147483647, %v3809
  %v4132 = vand.u32 2147483647, %v4012
  %v4133 = vand.u32 2147483647, %v2683
  %v4134 = vand.u32 2147483647, %v2685
  %v4135 = vand.u32 2147483647, %v2909
  %v4136 = vand.u32 2147483647, %v2911
  %v4137 = vand.u32 2147483647, %v3135
  %v4138 = vand.u32 2147483647, %v3137
  %v4139 = vand.u32 2147483647, %v3361
  %v4140 = vand.u32 2147483647, %v3363
  %v4141 = vand.u32 2147483647, %v3587
  %v4142 = vand.u32 2147483647, %v3589
  %v4143 = vand.u32 2147483647, %v3813
  %v4144 = vand.u32 2147483647, %v3815
  %v4145 = vand.u32 2147483647, %v4017
  %v4146 = vand.u32 2147483647, %v2687
  %v4147 = vand.u32 2147483647, %v2689
  %v4148 = vand.u32 2147483647, %v2913
  %v4149 = vand.u32 2147483647, %v2915
  %v4150 = vand.u32 2147483647, %v3139
  %v4151 = vand.u32 2147483647, %v3141
  %v4152 = vand.u32 2147483647, %v3365
  %v4153 = vand.u32 2147483647, %v3367
  %v4154 = vand.u32 2147483647, %v3591
  %v4155 = vand.u32 2147483647, %v3593
  %v4156 = vand.u32 2147483647, %v3817
  %v4157 = vand.u32 2147483647, %v3819
  %v4158 = vand.u32 2147483647, %v4020
  %v4159 = vand.u32 2147483647, %v2693
  %v4160 = vand.u32 2147483647, %v2695
  %v4161 = vand.u32 2147483647, %v2919
  %v4162 = vand.u32 2147483647, %v2921
  %v4163 = vand.u32 2147483647, %v3145
  %v4164 = vand.u32 2147483647, %v3147
  %v4165 = vand.u32 2147483647, %v3371
  %v4166 = vand.u32 2147483647, %v3373
  %v4167 = vand.u32 2147483647, %v3597
  %v4168 = vand.u32 2147483647, %v3599
  %v4169 = vand.u32 2147483647, %v3823
  %v4170 = vand.u32 2147483647, %v3825
  %v4171 = vand.u32 2147483647, %v4025
  %v4172 = vand.u32 2147483647, %v2697
  %v4173 = vand.u32 2147483647, %v2699
  %v4174 = vand.u32 2147483647, %v2923
  %v4175 = vand.u32 2147483647, %v2925
  %v4176 = vand.u32 2147483647, %v3149
  %v4177 = vand.u32 2147483647, %v3151
  %v4178 = vand.u32 2147483647, %v3375
  %v4179 = vand.u32 2147483647, %v3377
  %v4180 = vand.u32 2147483647, %v3601
  %v4181 = vand.u32 2147483647, %v3603
  %v4182 = vand.u32 2147483647, %v3827
  %v4183 = vand.u32 2147483647, %v3829
  %v4184 = vand.u32 2147483647, %v4028
  %v4185 = vand.u32 2147483647, %v2703
  %v4186 = vand.u32 2147483647, %v2705
  %v4187 = vand.u32 2147483647, %v2929
  %v4188 = vand.u32 2147483647, %v2931
  %v4189 = vand.u32 2147483647, %v3155
  %v4190 = vand.u32 2147483647, %v3157
  %v4191 = vand.u32 2147483647, %v3381
  %v4192 = vand.u32 2147483647, %v3383
  %v4193 = vand.u32 2147483647, %v3607
  %v4194 = vand.u32 2147483647, %v3609
  %v4195 = vand.u32 2147483647, %v3833
  %v4196 = vand.u32 2147483647, %v3835
  %v4197 = vand.u32 2147483647, %v4033
  %v4198 = vand.u32 2147483647, %v2707
  %v4199 = vand.u32 2147483647, %v2709
  %v4200 = vand.u32 2147483647, %v2933
  %v4201 = vand.u32 2147483647, %v2935
  %v4202 = vand.u32 2147483647, %v3159
  %v4203 = vand.u32 2147483647, %v3161
  %v4204 = vand.u32 2147483647, %v3385
  %v4205 = vand.u32 2147483647, %v3387
  %v4206 = vand.u32 2147483647, %v3611
  %v4207 = vand.u32 2147483647, %v3613
  %v4208 = vand.u32 2147483647, %v3837
  %v4209 = vand.u32 2147483647, %v3839
  %v4210 = vand.u32 2147483647, %v4036
  %v4211 = vand.u32 2147483647, %v2713
  %v4212 = vand.u32 2147483647, %v2715
  %v4213 = vand.u32 2147483647, %v2939
  %v4214 = vand.u32 2147483647, %v2941
  %v4215 = vand.u32 2147483647, %v3165
  %v4216 = vand.u32 2147483647, %v3167
  %v4217 = vand.u32 2147483647, %v3391
  %v4218 = vand.u32 2147483647, %v3393
  %v4219 = vand.u32 2147483647, %v3617
  %v4220 = vand.u32 2147483647, %v3619
  %v4221 = vand.u32 2147483647, %v3843
  %v4222 = vand.u32 2147483647, %v3845
  %v4223 = vand.u32 2147483647, %v4041
  %v4224 = vand.u32 2147483647, %v2717
  %v4225 = vand.u32 2147483647, %v2719
  %v4226 = vand.u32 2147483647, %v2943
  %v4227 = vand.u32 2147483647, %v2945
  %v4228 = vand.u32 2147483647, %v3169
  %v4229 = vand.u32 2147483647, %v3171
  %v4230 = vand.u32 2147483647, %v3395
  %v4231 = vand.u32 2147483647, %v3397
  %v4232 = vand.u32 2147483647, %v3621
  %v4233 = vand.u32 2147483647, %v3623
  %v4234 = vand.u32 2147483647, %v3847
  %v4235 = vand.u32 2147483647, %v3849
  %v4236 = vand.u32 2147483647, %v4044
  %v4237 = vand.u32 2147483647, %v2723
  %v4238 = vand.u32 2147483647, %v2725
  %v4239 = vand.u32 2147483647, %v2949
  %v4240 = vand.u32 2147483647, %v2951
  %v4241 = vand.u32 2147483647, %v3175
  %v4242 = vand.u32 2147483647, %v3177
  %v4243 = vand.u32 2147483647, %v3401
  %v4244 = vand.u32 2147483647, %v3403
  %v4245 = vand.u32 2147483647, %v3627
  %v4246 = vand.u32 2147483647, %v3629
  %v4247 = vand.u32 2147483647, %v3853
  %v4248 = vand.u32 2147483647, %v3855
  %v4249 = vand.u32 2147483647, %v4049
  %v4250 = vand.u32 2147483647, %v2727
  %v4251 = vand.u32 2147483647, %v2729
  %v4252 = vand.u32 2147483647, %v2953
  %v4253 = vand.u32 2147483647, %v2955
  %v4254 = vand.u32 2147483647, %v3179
  %v4255 = vand.u32 2147483647, %v3181
  %v4256 = vand.u32 2147483647, %v3405
  %v4257 = vand.u32 2147483647, %v3407
  %v4258 = vand.u32 2147483647, %v3631
  %v4259 = vand.u32 2147483647, %v3633
  %v4260 = vand.u32 2147483647, %v3857
  %v4261 = vand.u32 2147483647, %v3859
  %v4262 = vand.u32 2147483647, %v4052
  %4263 = vst [vmem:[%s4] sm:$0xff] %v4055
  %4264 = vst [vmem:[%s4 + $0x8] sm:$0xff] %v4056
  %4265 = vst [vmem:[%s4 + $0x10] sm:$0xff] %v4057
  %4266 = vst [vmem:[%s4 + $0x18] sm:$0xff] %v4058
  %4267 = vst [vmem:[%s4 + $0x20] sm:$0xff] %v4059
  %4268 = vst [vmem:[%s4 + $0x28] sm:$0xff] %v4060
  %4269 = vst [vmem:[%s4 + $0x30] sm:$0xff] %v4061
  %4270 = vst [vmem:[%s4 + $0x38] sm:$0xff] %v4062
  %4271 = vst [vmem:[%s4 + $0x40] sm:$0xff] %v4063
  %4272 = vst [vmem:[%s4 + $0x48] sm:$0xff] %v4064
  %4273 = vst [vmem:[%s4 + $0x50] sm:$0xff] %v4065
  %4274 = vst [vmem:[%s4 + $0x58] sm:$0xff] %v4066
  %vm4275 = vcmask 515072
  %4276 = vst.msk [vmem:[%s4 + $0x60] sm:$0xff] %vm4275, %v4067
  %4277 = vst [vmem:[%s4 + $0x68] sm:$0xff] %v4068
  %4278 = vst [vmem:[%s4 + $0x70] sm:$0xff] %v4069
  %4279 = vst [vmem:[%s4 + $0x78] sm:$0xff] %v4070
  %4280 = vst [vmem:[%s4 + $0x80] sm:$0xff] %v4071
  %4281 = vst [vmem:[%s4 + $0x88] sm:$0xff] %v4072
  %4282 = vst [vmem:[%s4 + $0x90] sm:$0xff] %v4073
  %4283 = vst [vmem:[%s4 + $0x98] sm:$0xff] %v4074
  %4284 = vst [vmem:[%s4 + $0xa0] sm:$0xff] %v4075
  %4285 = vst [vmem:[%s4 + $0xa8] sm:$0xff] %v4076
  %4286 = vst [vmem:[%s4 + $0xb0] sm:$0xff] %v4077
  %4287 = vst [vmem:[%s4 + $0xb8] sm:$0xff] %v4078
  %4288 = vst [vmem:[%s4 + $0xc0] sm:$0xff] %v4079
  %4289 = vst.msk [vmem:[%s4 + $0xc8] sm:$0xff] %vm4275, %v4080
  %4290 = vst [vmem:[%s4 + $0xd0] sm:$0xff] %v4081
  %4291 = vst [vmem:[%s4 + $0xd8] sm:$0xff] %v4082
  %4292 = vst [vmem:[%s4 + $0xe0] sm:$0xff] %v4083
  %4293 = vst [vmem:[%s4 + $0xe8] sm:$0xff] %v4084
  %4294 = vst [vmem:[%s4 + $0xf0] sm:$0xff] %v4085
  %4295 = vst [vmem:[%s4 + $0xf8] sm:$0xff] %v4086
  %4296 = vst [vmem:[%s4 + $0x100] sm:$0xff] %v4087
  %4297 = vst [vmem:[%s4 + $0x108] sm:$0xff] %v4088
  %4298 = vst [vmem:[%s4 + $0x110] sm:$0xff] %v4089
  %4299 = vst [vmem:[%s4 + $0x118] sm:$0xff] %v4090
  %4300 = vst [vmem:[%s4 + $0x120] sm:$0xff] %v4091
  %4301 = vst [vmem:[%s4 + $0x128] sm:$0xff] %v4092
  %4302 = vst.msk [vmem:[%s4 + $0x130] sm:$0xff] %vm4275, %v4093
  %4303 = vst [vmem:[%s4 + $0x138] sm:$0xff] %v4094
  %4304 = vst [vmem:[%s4 + $0x140] sm:$0xff] %v4095
  %4305 = vst [vmem:[%s4 + $0x148] sm:$0xff] %v4096
  %4306 = vst [vmem:[%s4 + $0x150] sm:$0xff] %v4097
  %4307 = vst [vmem:[%s4 + $0x158] sm:$0xff] %v4098
  %4308 = vst [vmem:[%s4 + $0x160] sm:$0xff] %v4099
  %4309 = vst [vmem:[%s4 + $0x168] sm:$0xff] %v4100
  %4310 = vst [vmem:[%s4 + $0x170] sm:$0xff] %v4101
  %4311 = vst [vmem:[%s4 + $0x178] sm:$0xff] %v4102
  %4312 = vst [vmem:[%s4 + $0x180] sm:$0xff] %v4103
  %4313 = vst [vmem:[%s4 + $0x188] sm:$0xff] %v4104
  %4314 = vst [vmem:[%s4 + $0x190] sm:$0xff] %v4105
  %4315 = vst.msk [vmem:[%s4 + $0x198] sm:$0xff] %vm4275, %v4106
  %4316 = vst [vmem:[%s4 + $0x1a0] sm:$0xff] %v4107
  %4317 = vst [vmem:[%s4 + $0x1a8] sm:$0xff] %v4108
  %4318 = vst [vmem:[%s4 + $0x1b0] sm:$0xff] %v4109
  %4319 = vst [vmem:[%s4 + $0x1b8] sm:$0xff] %v4110
  %4320 = vst [vmem:[%s4 + $0x1c0] sm:$0xff] %v4111
  %4321 = vst [vmem:[%s4 + $0x1c8] sm:$0xff] %v4112
  %4322 = vst [vmem:[%s4 + $0x1d0] sm:$0xff] %v4113
  %4323 = vst [vmem:[%s4 + $0x1d8] sm:$0xff] %v4114
  %4324 = vst [vmem:[%s4 + $0x1e0] sm:$0xff] %v4115
  %4325 = vst [vmem:[%s4 + $0x1e8] sm:$0xff] %v4116
  %4326 = vst [vmem:[%s4 + $0x1f0] sm:$0xff] %v4117
  %4327 = vst [vmem:[%s4 + $0x1f8] sm:$0xff] %v4118
  %4328 = vst.msk [vmem:[%s4 + $0x200] sm:$0xff] %vm4275, %v4119
  %4329 = vst [vmem:[%s4 + $0x208] sm:$0xff] %v4120
  %4330 = vst [vmem:[%s4 + $0x210] sm:$0xff] %v4121
  %4331 = vst [vmem:[%s4 + $0x218] sm:$0xff] %v4122
  %4332 = vst [vmem:[%s4 + $0x220] sm:$0xff] %v4123
  %4333 = vst [vmem:[%s4 + $0x228] sm:$0xff] %v4124
  %4334 = vst [vmem:[%s4 + $0x230] sm:$0xff] %v4125
  %4335 = vst [vmem:[%s4 + $0x238] sm:$0xff] %v4126
  %4336 = vst [vmem:[%s4 + $0x240] sm:$0xff] %v4127
  %4337 = vst [vmem:[%s4 + $0x248] sm:$0xff] %v4128
  %4338 = vst [vmem:[%s4 + $0x250] sm:$0xff] %v4129
  %4339 = vst [vmem:[%s4 + $0x258] sm:$0xff] %v4130
  %4340 = vst [vmem:[%s4 + $0x260] sm:$0xff] %v4131
  %4341 = vst.msk [vmem:[%s4 + $0x268] sm:$0xff] %vm4275, %v4132
  %4342 = vst [vmem:[%s4 + $0x270] sm:$0xff] %v4133
  %4343 = vst [vmem:[%s4 + $0x278] sm:$0xff] %v4134
  %4344 = vst [vmem:[%s4 + $0x280] sm:$0xff] %v4135
  %4345 = vst [vmem:[%s4 + $0x288] sm:$0xff] %v4136
  %4346 = vst [vmem:[%s4 + $0x290] sm:$0xff] %v4137
  %4347 = vst [vmem:[%s4 + $0x298] sm:$0xff] %v4138
  %4348 = vst [vmem:[%s4 + $0x2a0] sm:$0xff] %v4139
  %4349 = vst [vmem:[%s4 + $0x2a8] sm:$0xff] %v4140
  %4350 = vst [vmem:[%s4 + $0x2b0] sm:$0xff] %v4141
  %4351 = vst [vmem:[%s4 + $0x2b8] sm:$0xff] %v4142
  %4352 = vst [vmem:[%s4 + $0x2c0] sm:$0xff] %v4143
  %4353 = vst [vmem:[%s4 + $0x2c8] sm:$0xff] %v4144
  %4354 = vst.msk [vmem:[%s4 + $0x2d0] sm:$0xff] %vm4275, %v4145
  %4355 = vst [vmem:[%s4 + $0x2d8] sm:$0xff] %v4146
  %4356 = vst [vmem:[%s4 + $0x2e0] sm:$0xff] %v4147
  %4357 = vst [vmem:[%s4 + $0x2e8] sm:$0xff] %v4148
  %4358 = vst [vmem:[%s4 + $0x2f0] sm:$0xff] %v4149
  %4359 = vst [vmem:[%s4 + $0x2f8] sm:$0xff] %v4150
  %4360 = vst [vmem:[%s4 + $0x300] sm:$0xff] %v4151
  %4361 = vst [vmem:[%s4 + $0x308] sm:$0xff] %v4152
  %4362 = vst [vmem:[%s4 + $0x310] sm:$0xff] %v4153
  %4363 = vst [vmem:[%s4 + $0x318] sm:$0xff] %v4154
  %4364 = vst [vmem:[%s4 + $0x320] sm:$0xff] %v4155
  %4365 = vst [vmem:[%s4 + $0x328] sm:$0xff] %v4156
  %4366 = vst [vmem:[%s4 + $0x330] sm:$0xff] %v4157
  %4367 = vst.msk [vmem:[%s4 + $0x338] sm:$0xff] %vm4275, %v4158
  %4368 = vst [vmem:[%s4 + $0x340] sm:$0xff] %v4159
  %4369 = vst [vmem:[%s4 + $0x348] sm:$0xff] %v4160
  %4370 = vst [vmem:[%s4 + $0x350] sm:$0xff] %v4161
  %4371 = vst [vmem:[%s4 + $0x358] sm:$0xff] %v4162
  %4372 = vst [vmem:[%s4 + $0x360] sm:$0xff] %v4163
  %4373 = vst [vmem:[%s4 + $0x368] sm:$0xff] %v4164
  %4374 = vst [vmem:[%s4 + $0x370] sm:$0xff] %v4165
  %4375 = vst [vmem:[%s4 + $0x378] sm:$0xff] %v4166
  %4376 = vst [vmem:[%s4 + $0x380] sm:$0xff] %v4167
  %4377 = vst [vmem:[%s4 + $0x388] sm:$0xff] %v4168
  %4378 = vst [vmem:[%s4 + $0x390] sm:$0xff] %v4169
  %4379 = vst [vmem:[%s4 + $0x398] sm:$0xff] %v4170
  %4380 = vst.msk [vmem:[%s4 + $0x3a0] sm:$0xff] %vm4275, %v4171
  %4381 = vst [vmem:[%s4 + $0x3a8] sm:$0xff] %v4172
  %4382 = vst [vmem:[%s4 + $0x3b0] sm:$0xff] %v4173
  %4383 = vst [vmem:[%s4 + $0x3b8] sm:$0xff] %v4174
  %4384 = vst [vmem:[%s4 + $0x3c0] sm:$0xff] %v4175
  %4385 = vst [vmem:[%s4 + $0x3c8] sm:$0xff] %v4176
  %4386 = vst [vmem:[%s4 + $0x3d0] sm:$0xff] %v4177
  %4387 = vst [vmem:[%s4 + $0x3d8] sm:$0xff] %v4178
  %4388 = vst [vmem:[%s4 + $0x3e0] sm:$0xff] %v4179
  %4389 = vst [vmem:[%s4 + $0x3e8] sm:$0xff] %v4180
  %4390 = vst [vmem:[%s4 + $0x3f0] sm:$0xff] %v4181
  %4391 = vst [vmem:[%s4 + $0x3f8] sm:$0xff] %v4182
  %4392 = vst [vmem:[%s4 + $0x400] sm:$0xff] %v4183
  %4393 = vst.msk [vmem:[%s4 + $0x408] sm:$0xff] %vm4275, %v4184
  %4394 = vst [vmem:[%s4 + $0x410] sm:$0xff] %v4185
  %4395 = vst [vmem:[%s4 + $0x418] sm:$0xff] %v4186
  %4396 = vst [vmem:[%s4 + $0x420] sm:$0xff] %v4187
  %4397 = vst [vmem:[%s4 + $0x428] sm:$0xff] %v4188
  %4398 = vst [vmem:[%s4 + $0x430] sm:$0xff] %v4189
  %4399 = vst [vmem:[%s4 + $0x438] sm:$0xff] %v4190
  %4400 = vst [vmem:[%s4 + $0x440] sm:$0xff] %v4191
  %4401 = vst [vmem:[%s4 + $0x448] sm:$0xff] %v4192
  %4402 = vst [vmem:[%s4 + $0x450] sm:$0xff] %v4193
  %4403 = vst [vmem:[%s4 + $0x458] sm:$0xff] %v4194
  %4404 = vst [vmem:[%s4 + $0x460] sm:$0xff] %v4195
  %4405 = vst [vmem:[%s4 + $0x468] sm:$0xff] %v4196
  %4406 = vst.msk [vmem:[%s4 + $0x470] sm:$0xff] %vm4275, %v4197
  %4407 = vst [vmem:[%s4 + $0x478] sm:$0xff] %v4198
  %4408 = vst [vmem:[%s4 + $0x480] sm:$0xff] %v4199
  %4409 = vst [vmem:[%s4 + $0x488] sm:$0xff] %v4200
  %4410 = vst [vmem:[%s4 + $0x490] sm:$0xff] %v4201
  %4411 = vst [vmem:[%s4 + $0x498] sm:$0xff] %v4202
  %4412 = vst [vmem:[%s4 + $0x4a0] sm:$0xff] %v4203
  %4413 = vst [vmem:[%s4 + $0x4a8] sm:$0xff] %v4204
  %4414 = vst [vmem:[%s4 + $0x4b0] sm:$0xff] %v4205
  %4415 = vst [vmem:[%s4 + $0x4b8] sm:$0xff] %v4206
  %4416 = vst [vmem:[%s4 + $0x4c0] sm:$0xff] %v4207
  %4417 = vst [vmem:[%s4 + $0x4c8] sm:$0xff] %v4208
  %4418 = vst [vmem:[%s4 + $0x4d0] sm:$0xff] %v4209
  %4419 = vst.msk [vmem:[%s4 + $0x4d8] sm:$0xff] %vm4275, %v4210
  %4420 = vst [vmem:[%s4 + $0x4e0] sm:$0xff] %v4211
  %4421 = vst [vmem:[%s4 + $0x4e8] sm:$0xff] %v4212
  %4422 = vst [vmem:[%s4 + $0x4f0] sm:$0xff] %v4213
  %4423 = vst [vmem:[%s4 + $0x4f8] sm:$0xff] %v4214
  %4424 = vst [vmem:[%s4 + $0x500] sm:$0xff] %v4215
  %4425 = vst [vmem:[%s4 + $0x508] sm:$0xff] %v4216
  %4426 = vst [vmem:[%s4 + $0x510] sm:$0xff] %v4217
  %4427 = vst [vmem:[%s4 + $0x518] sm:$0xff] %v4218
  %4428 = vst [vmem:[%s4 + $0x520] sm:$0xff] %v4219
  %4429 = vst [vmem:[%s4 + $0x528] sm:$0xff] %v4220
  %4430 = vst [vmem:[%s4 + $0x530] sm:$0xff] %v4221
  %4431 = vst [vmem:[%s4 + $0x538] sm:$0xff] %v4222
  %4432 = vst.msk [vmem:[%s4 + $0x540] sm:$0xff] %vm4275, %v4223
  %4433 = vst [vmem:[%s4 + $0x548] sm:$0xff] %v4224
  %4434 = vst [vmem:[%s4 + $0x550] sm:$0xff] %v4225
  %4435 = vst [vmem:[%s4 + $0x558] sm:$0xff] %v4226
  %4436 = vst [vmem:[%s4 + $0x560] sm:$0xff] %v4227
  %4437 = vst [vmem:[%s4 + $0x568] sm:$0xff] %v4228
  %4438 = vst [vmem:[%s4 + $0x570] sm:$0xff] %v4229
  %4439 = vst [vmem:[%s4 + $0x578] sm:$0xff] %v4230
  %4440 = vst [vmem:[%s4 + $0x580] sm:$0xff] %v4231
  %4441 = vst [vmem:[%s4 + $0x588] sm:$0xff] %v4232
  %4442 = vst [vmem:[%s4 + $0x590] sm:$0xff] %v4233
  %4443 = vst [vmem:[%s4 + $0x598] sm:$0xff] %v4234
  %4444 = vst [vmem:[%s4 + $0x5a0] sm:$0xff] %v4235
  %4445 = vst.msk [vmem:[%s4 + $0x5a8] sm:$0xff] %vm4275, %v4236
  %4446 = vst [vmem:[%s4 + $0x5b0] sm:$0xff] %v4237
  %4447 = vst [vmem:[%s4 + $0x5b8] sm:$0xff] %v4238
  %4448 = vst [vmem:[%s4 + $0x5c0] sm:$0xff] %v4239
  %4449 = vst [vmem:[%s4 + $0x5c8] sm:$0xff] %v4240
  %4450 = vst [vmem:[%s4 + $0x5d0] sm:$0xff] %v4241
  %4451 = vst [vmem:[%s4 + $0x5d8] sm:$0xff] %v4242
  %4452 = vst [vmem:[%s4 + $0x5e0] sm:$0xff] %v4243
  %4453 = vst [vmem:[%s4 + $0x5e8] sm:$0xff] %v4244
  %4454 = vst [vmem:[%s4 + $0x5f0] sm:$0xff] %v4245
  %4455 = vst [vmem:[%s4 + $0x5f8] sm:$0xff] %v4246
  %4456 = vst [vmem:[%s4 + $0x600] sm:$0xff] %v4247
  %4457 = vst [vmem:[%s4 + $0x608] sm:$0xff] %v4248
  %4458 = vst.msk [vmem:[%s4 + $0x610] sm:$0xff] %vm4275, %v4249
  %4459 = vst [vmem:[%s4 + $0x618] sm:$0xff] %v4250
  %4460 = vst [vmem:[%s4 + $0x620] sm:$0xff] %v4251
  %4461 = vst [vmem:[%s4 + $0x628] sm:$0xff] %v4252
  %4462 = vst [vmem:[%s4 + $0x630] sm:$0xff] %v4253
  %4463 = vst [vmem:[%s4 + $0x638] sm:$0xff] %v4254
  %4464 = vst [vmem:[%s4 + $0x640] sm:$0xff] %v4255
  %4465 = vst [vmem:[%s4 + $0x648] sm:$0xff] %v4256
  %4466 = vst [vmem:[%s4 + $0x650] sm:$0xff] %v4257
  %4467 = vst [vmem:[%s4 + $0x658] sm:$0xff] %v4258
  %4468 = vst [vmem:[%s4 + $0x660] sm:$0xff] %v4259
  %4469 = vst [vmem:[%s4 + $0x668] sm:$0xff] %v4260
  %4470 = vst [vmem:[%s4 + $0x670] sm:$0xff] %v4261
  %4471 = vst.msk [vmem:[%s4 + $0x678] sm:$0xff] %vm4275, %v4262
  // Predicated region
  $region18: #{model_forward.1} parent=0 // pred_check
    _
  $region19: #{model_forward.1} parent=0 // pred_check_branch
    %4473 = sbr.rel (0) target = $region21
  $region20: #{model_forward.1} parent=0 // pred_region
    _
  $region21: #{model_forward.1} parent=0 // pred_fallthru
    _
  // Predicated region
  $region22: #{model_forward.1} parent=0 // pred_check
    _
  $region23: #{model_forward.1} parent=0 // pred_check_branch
    %4475 = sbr.rel (0) target = $region25
  $region24: #{model_forward.1} parent=0 // pred_region
    _
  $region25: #{model_forward.1} parent=0 // pred_fallthru
    _

</llo_original>
